<compile_context>
chip_gen: v5e
topology: v5e:2x2
jax: 0.10.0
libtpu: 0.0.40
codegen_flags: <defaults>
</compile_context>

<pallas_src>
import numpy as np
import jax
import jax.numpy as jnp
from jax.experimental import pallas as pl
from jax.experimental.pallas import tpu as pltpu


_LPAD = 8  # sublane-aligned left-halo offset used by the in-kernel scratch


def _sepconv_kernel(x_ref, dw1_ref, wp1_ref, b1_ref,
                    dw2_ref, wp2_ref, b2_ref, o_ref, ypad_ref):
    """Fused SeparableConv2D forward for one batch block (NHWC in VMEM).

    x_ref:    (B, H+2, W+2, C_in)   input with a 1-pixel zero halo
    dw1_ref:  (9, C_in)             depthwise-1 taps (tap-major)
    wp1_ref:  (C_in, C_out)         pointwise-1 weights with BN1/BN2 folded in
    b1_ref:   (1, C_out)            folded BN1/BN2 bias
    dw2_ref:  (9, C_out)            depthwise-2 taps
    wp2_ref:  (C_out, C_out)        pointwise-2 weights with BN3/BN4 folded in
    b2_ref:   (1, C_out)            folded BN3/BN4 bias
    o_ref:    (B, H, W, C_out)      output block
    ypad_ref: (B, H+2, W+9, C_out)  VMEM scratch: zero-halo'd block-1 output
    """
    B, H, W, C_out = o_ref.shape
    C_in = x_ref.shape[3]

    # ---- block 1: depthwise 3x3 as 9 shifted-slice multiply-adds (VPU) -----
    dw1 = dw1_ref[...]                                          # (9, C_in)
    acc = jnp.zeros((B, H, W, C_in), jnp.float32)
    for k in range(9):
        dy, dx = k // 3, k % 3
        acc = acc + x_ref[:, dy:dy + H, dx:dx + W, :].astype(jnp.float32) * dw1[k]

    # pointwise 1x1 (+ folded BN1/BN2) + ReLU: one MXU matmul, M = B*H*W
    y = jnp.dot(acc.reshape(B * H * W, C_in), wp1_ref[...],
                preferred_element_type=jnp.float32)             # (B*H*W, C_out)
    y = jnp.maximum(y + b1_ref[...], 0.0)

    # ---- block 2: build a zero halo around block-1's output in VMEM --------
    # Writing y at column offset _LPAD (a multiple of 8) keeps the store
    # sublane-aligned / unmasked; halo rows and columns stay zero.
    ypad_ref[...] = jnp.zeros(ypad_ref.shape, ypad_ref.dtype)
    ypad_ref[:, 1:H + 1, _LPAD:_LPAD + W, :] = y.reshape(B, H, W, C_out)

    dw2 = dw2_ref[...]                                          # (9, C_out)
    acc2 = jnp.zeros((B, H, W, C_out), jnp.float32)
    for k in range(9):
        dy, dx = k // 3, k % 3
        c0 = _LPAD - 1 + dx
        acc2 = acc2 + ypad_ref[:, dy:dy + H, c0:c0 + W, :] * dw2[k]

    h = jnp.dot(acc2.reshape(B * H * W, C_out), wp2_ref[...],
                preferred_element_type=jnp.float32)
    h = jnp.maximum(h + b2_ref[...], 0.0)

    # residual add (forward: x = x0 + x after the second block)
    o_ref[...] = (y + h).reshape(B, H, W, C_out).astype(o_ref.dtype)


def separable_conv2d(x, params, *, block_n=8, eps=1e-5):
    """SeparableConv2D.forward (num_layers=2 default) for NCHW input x.

    params: dict with
      dw1: (C_in, 1, 3, 3)    pw1: (C_out, C_in, 1, 1)
      dw2: (C_out, 1, 3, 3)   pw2: (C_out, C_out, 1, 1)
      bn1..bn4: (gamma, beta, running_mean, running_var) per BatchNorm2d.
    """
    N, C_in, H, W = x.shape
    C_out = params["pw1"].shape[0]

    # TODO(synk): BatchNorm is applied in inference mode (running stats folded into
    # per-channel scale/shift); training-mode batch statistics are not computed here.
    def fold(gamma, beta, mean, var):
        s = gamma / jnp.sqrt(var + eps)
        return s, beta - mean * s

    s1, t1 = fold(*params["bn1"])          # (C_in,)
    s2, t2 = fold(*params["bn2"])          # (C_out,)
    s3, t3 = fold(*params["bn3"])          # (C_out,)
    s4, t4 = fold(*params["bn4"])          # (C_out,)

    wp1 = params["pw1"][:, :, 0, 0]        # (C_out, C_in)
    wp2 = params["pw2"][:, :, 0, 0]        # (C_out, C_out)

    # Fold BN (before and after each 1x1 conv) into the pointwise weights / bias.
    wp1_eff = (wp1 * s1[None, :] * s2[:, None]).T              # (C_in, C_out)
    b1_eff = (s2 * (wp1 @ t1) + t2)[None, :]                   # (1, C_out)
    wp2_eff = (wp2 * s3[None, :] * s4[:, None]).T              # (C_out, C_out)
    b2_eff = (s4 * (wp2 @ t3) + t4)[None, :]                   # (1, C_out)

    dw1_t = params["dw1"][:, 0].reshape(C_in, 9).T             # (9, C_in)
    dw2_t = params["dw2"][:, 0].reshape(C_out, 9).T            # (9, C_out)

    # NCHW -> NHWC (+ 1-pixel zero halo): channels land on the lane axis and the
    # 3x3 taps become plain static slices inside the kernel.
    x_pad = jnp.pad(jnp.transpose(x, (0, 2, 3, 1)).astype(jnp.float32),
                    ((0, 0), (1, 1), (1, 1), (0, 0)))

    bn = min(block_n, N)
    assert N % bn == 0, "batch must be divisible by the batch block size"
    grid = (N // bn,)

    # Per-step VMEM (f32, lane-padded to 128) is tiny at these shapes; when growing
    # block_n for large inputs, keep 2*(in + out) blocks + scratch under the scoped
    # VMEM limit (32 MiB default; 64 MiB physical per-TC on v7x, 128 MiB on v5e/v6e).
    out_nhwc = pl.pallas_call(
        _sepconv_kernel,
        out_shape=jax.ShapeDtypeStruct((N, H, W, C_out), x.dtype),
        grid_spec=pltpu.PrefetchScalarGridSpec(
            num_scalar_prefetch=0,
            grid=grid,
            in_specs=[
                pl.BlockSpec((bn, H + 2, W + 2, C_in), lambda i: (i, 0, 0, 0)),
                pl.BlockSpec((9, C_in), lambda i: (0, 0)),
                pl.BlockSpec((C_in, C_out), lambda i: (0, 0)),
                pl.BlockSpec((1, C_out), lambda i: (0, 0)),
                pl.BlockSpec((9, C_out), lambda i: (0, 0)),
                pl.BlockSpec((C_out, C_out), lambda i: (0, 0)),
                pl.BlockSpec((1, C_out), lambda i: (0, 0)),
            ],
            out_specs=pl.BlockSpec((bn, H, W, C_out), lambda i: (i, 0, 0, 0)),
            scratch_shapes=[pltpu.VMEM((bn, H + 2, W + 9, C_out), jnp.float32)],
        ),
        compiler_params=pltpu.CompilerParams(
            dimension_semantics=("parallel",)),
    )(x_pad, dw1_t, wp1_eff, b1_eff, dw2_t, wp2_eff, b2_eff)

    return jnp.transpose(out_nhwc, (0, 3, 1, 2))               # back to NCHW


def _ref_separable_conv2d(x, params, eps=1e-5):
    """Pure-JAX reference (inference-mode BN), NCHW."""
    hp = jax.lax.Precision.HIGHEST

    def dw(h, w):
        return jax.lax.conv_general_dilated(
            h, w, window_strides=(1, 1), padding=((1, 1), (1, 1)),
            dimension_numbers=("NCHW", "OIHW", "NCHW"),
            feature_group_count=h.shape[1], precision=hp)

    def pw(h, w):
        return jax.lax.conv_general_dilated(
            h, w, window_strides=(1, 1), padding="VALID",
            dimension_numbers=("NCHW", "OIHW", "NCHW"), precision=hp)

    def bn(h, gbmv):
        g, b, m, v = gbmv
        s = g / jnp.sqrt(v + eps)
        return h * s[None, :, None, None] + (b - m * s)[None, :, None, None]

    h = jnp.maximum(bn(pw(bn(dw(x, params["dw1"]), params["bn1"]),
                          params["pw1"]), params["bn2"]), 0.0)
    x0 = h
    h = jnp.maximum(bn(pw(bn(dw(h, params["dw2"]), params["bn3"]),
                          params["pw2"]), params["bn4"]), 0.0)
    return x0 + h


if __name__ == "__main__":
    key = jax.random.PRNGKey(0)
    N, C_in, C_out, H, W = 2, 4, 8, 16, 16
    ks = jax.random.split(key, 10)

    x = jax.random.normal(ks[0], (N, C_in, H, W), dtype=jnp.float32)
    dw1 = 0.3 * jax.random.normal(ks[1], (C_in, 1, 3, 3), dtype=jnp.float32)
    pw1 = 0.3 * jax.random.normal(ks[2], (C_out, C_in, 1, 1), dtype=jnp.float32)
    dw2 = 0.3 * jax.random.normal(ks[3], (C_out, 1, 3, 3), dtype=jnp.float32)
    pw2 = 0.3 * jax.random.normal(ks[4], (C_out, C_out, 1, 1), dtype=jnp.float32)

    def bn_params(k, c):
        k1, k2, k3, k4 = jax.random.split(k, 4)
        gamma = 1.0 + 0.2 * jax.random.normal(k1, (c,), dtype=jnp.float32)
        beta = 0.1 * jax.random.normal(k2, (c,), dtype=jnp.float32)
        mean = 0.1 * jax.random.normal(k3, (c,), dtype=jnp.float32)
        var = 0.5 + jax.random.uniform(k4, (c,), dtype=jnp.float32)
        return (gamma, beta, mean, var)

    params = dict(
        dw1=dw1, pw1=pw1, dw2=dw2, pw2=pw2,
        bn1=bn_params(ks[5], C_in), bn2=bn_params(ks[6], C_out),
        bn3=bn_params(ks[7], C_out), bn4=bn_params(ks[8], C_out),
    )

    y = jax.jit(separable_conv2d)(x, params)
    y = jax.block_until_ready(y)

    y_ref = _ref_separable_conv2d(x, params)

    assert y.shape == (N, C_out, H, W)
    np.testing.assert_allclose(np.asarray(y), np.asarray(y_ref),
                               rtol=1e-4, atol=1e-4)
    print("KERNEL_OK")
</pallas_src>

<mosaic_0001>
module attributes {stable_mosaic.version = 11 : i64} {
  func.func @_sepconv_kernel(%arg0: i32, %arg1: memref<2x18x18x4xf32, #tpu.memory_space<vmem>>, %arg2: memref<9x4xf32, #tpu.memory_space<vmem>>, %arg3: memref<4x8xf32, #tpu.memory_space<vmem>>, %arg4: memref<1x8xf32, #tpu.memory_space<vmem>>, %arg5: memref<9x8xf32, #tpu.memory_space<vmem>>, %arg6: memref<8x8xf32, #tpu.memory_space<vmem>>, %arg7: memref<1x8xf32, #tpu.memory_space<vmem>>, %arg8: memref<2x16x16x8xf32, #tpu.memory_space<vmem>>, %arg9: memref<2x18x25x8xf32, #tpu.memory_space<vmem>>) attributes {dimension_semantics = [#tpu.dimension_semantics<parallel>], iteration_bounds = array<i64: 1>, scalar_prefetch = 0 : i64, scratch_operands = 1 : i64, tpu.core_type = #tpu.core_type<tc>, window_params = [{transform_indices = @transform_0, window_bounds = array<i64: 2, 18, 18, 4>}, {pipeline_mode = #tpu.pipeline_mode<synchronous>, transform_indices = @transform_1, window_bounds = array<i64: 9, 4>}, {pipeline_mode = #tpu.pipeline_mode<synchronous>, transform_indices = @transform_2, window_bounds = array<i64: 4, 8>}, {pipeline_mode = #tpu.pipeline_mode<synchronous>, transform_indices = @transform_3, window_bounds = array<i64: 1, 8>}, {pipeline_mode = #tpu.pipeline_mode<synchronous>, transform_indices = @transform_4, window_bounds = array<i64: 9, 8>}, {pipeline_mode = #tpu.pipeline_mode<synchronous>, transform_indices = @transform_5, window_bounds = array<i64: 8, 8>}, {pipeline_mode = #tpu.pipeline_mode<synchronous>, transform_indices = @transform_6, window_bounds = array<i64: 1, 8>}, {transform_indices = @transform_7, window_bounds = array<i64: 2, 16, 16, 8>}]} {
    %c0 = arith.constant 0 : index
    %c0_0 = arith.constant 0 : index
    %0 = vector.load %arg2[%c0, %c0_0] : memref<9x4xf32, #tpu.memory_space<vmem>>, vector<9x4xf32>
    %cst = arith.constant 0.000000e+00 : f32
    %1 = vector.broadcast %cst : f32 to vector<2x16x16x4xf32>
    %c0_1 = arith.constant 0 : index
    %c0_2 = arith.constant 0 : index
    %c0_3 = arith.constant 0 : index
    %c0_4 = arith.constant 0 : index
    %2 = vector.load %arg1[%c0_1, %c0_2, %c0_3, %c0_4] : memref<2x18x18x4xf32, #tpu.memory_space<vmem>>, vector<2x16x16x4xf32>
    %3 = vector.extract_strided_slice %0 {offsets = [0, 0], sizes = [1, 4], strides = [1, 1]} : vector<9x4xf32> to vector<1x4xf32>
    %4 = vector.shape_cast %3 : vector<1x4xf32> to vector<4xf32>
    %5 = vector.shape_cast %4 : vector<4xf32> to vector<1x1x1x4xf32>
    %6 = vector.broadcast %5 : vector<1x1x1x4xf32> to vector<2x16x16x4xf32>
    %7 = arith.mulf %2, %6 : vector<2x16x16x4xf32>
    %8 = arith.addf %1, %7 : vector<2x16x16x4xf32>
    %c0_5 = arith.constant 0 : index
    %c0_6 = arith.constant 0 : index
    %c1 = arith.constant 1 : index
    %c0_7 = arith.constant 0 : index
    %9 = vector.load %arg1[%c0_5, %c0_6, %c1, %c0_7] : memref<2x18x18x4xf32, #tpu.memory_space<vmem>>, vector<2x16x16x4xf32>
    %10 = vector.extract_strided_slice %0 {offsets = [1, 0], sizes = [1, 4], strides = [1, 1]} : vector<9x4xf32> to vector<1x4xf32>
    %11 = vector.shape_cast %10 : vector<1x4xf32> to vector<4xf32>
    %12 = vector.shape_cast %11 : vector<4xf32> to vector<1x1x1x4xf32>
    %13 = vector.broadcast %12 : vector<1x1x1x4xf32> to vector<2x16x16x4xf32>
    %14 = arith.mulf %9, %13 : vector<2x16x16x4xf32>
    %15 = arith.addf %8, %14 : vector<2x16x16x4xf32>
    %c0_8 = arith.constant 0 : index
    %c0_9 = arith.constant 0 : index
    %c2 = arith.constant 2 : index
    %c0_10 = arith.constant 0 : index
    %16 = vector.load %arg1[%c0_8, %c0_9, %c2, %c0_10] : memref<2x18x18x4xf32, #tpu.memory_space<vmem>>, vector<2x16x16x4xf32>
    %17 = vector.extract_strided_slice %0 {offsets = [2, 0], sizes = [1, 4], strides = [1, 1]} : vector<9x4xf32> to vector<1x4xf32>
    %18 = vector.shape_cast %17 : vector<1x4xf32> to vector<4xf32>
    %19 = vector.shape_cast %18 : vector<4xf32> to vector<1x1x1x4xf32>
    %20 = vector.broadcast %19 : vector<1x1x1x4xf32> to vector<2x16x16x4xf32>
    %21 = arith.mulf %16, %20 : vector<2x16x16x4xf32>
    %22 = arith.addf %15, %21 : vector<2x16x16x4xf32>
    %c0_11 = arith.constant 0 : index
    %c1_12 = arith.constant 1 : index
    %c0_13 = arith.constant 0 : index
    %c0_14 = arith.constant 0 : index
    %23 = vector.load %arg1[%c0_11, %c1_12, %c0_13, %c0_14] : memref<2x18x18x4xf32, #tpu.memory_space<vmem>>, vector<2x16x16x4xf32>
    %24 = vector.extract_strided_slice %0 {offsets = [3, 0], sizes = [1, 4], strides = [1, 1]} : vector<9x4xf32> to vector<1x4xf32>
    %25 = vector.shape_cast %24 : vector<1x4xf32> to vector<4xf32>
    %26 = vector.shape_cast %25 : vector<4xf32> to vector<1x1x1x4xf32>
    %27 = vector.broadcast %26 : vector<1x1x1x4xf32> to vector<2x16x16x4xf32>
    %28 = arith.mulf %23, %27 : vector<2x16x16x4xf32>
    %29 = arith.addf %22, %28 : vector<2x16x16x4xf32>
    %c0_15 = arith.constant 0 : index
    %c1_16 = arith.constant 1 : index
    %c1_17 = arith.constant 1 : index
    %c0_18 = arith.constant 0 : index
    %30 = vector.load %arg1[%c0_15, %c1_16, %c1_17, %c0_18] : memref<2x18x18x4xf32, #tpu.memory_space<vmem>>, vector<2x16x16x4xf32>
    %31 = vector.extract_strided_slice %0 {offsets = [4, 0], sizes = [1, 4], strides = [1, 1]} : vector<9x4xf32> to vector<1x4xf32>
    %32 = vector.shape_cast %31 : vector<1x4xf32> to vector<4xf32>
    %33 = vector.shape_cast %32 : vector<4xf32> to vector<1x1x1x4xf32>
    %34 = vector.broadcast %33 : vector<1x1x1x4xf32> to vector<2x16x16x4xf32>
    %35 = arith.mulf %30, %34 : vector<2x16x16x4xf32>
    %36 = arith.addf %29, %35 : vector<2x16x16x4xf32>
    %c0_19 = arith.constant 0 : index
    %c1_20 = arith.constant 1 : index
    %c2_21 = arith.constant 2 : index
    %c0_22 = arith.constant 0 : index
    %37 = vector.load %arg1[%c0_19, %c1_20, %c2_21, %c0_22] : memref<2x18x18x4xf32, #tpu.memory_space<vmem>>, vector<2x16x16x4xf32>
    %38 = vector.extract_strided_slice %0 {offsets = [5, 0], sizes = [1, 4], strides = [1, 1]} : vector<9x4xf32> to vector<1x4xf32>
    %39 = vector.shape_cast %38 : vector<1x4xf32> to vector<4xf32>
    %40 = vector.shape_cast %39 : vector<4xf32> to vector<1x1x1x4xf32>
    %41 = vector.broadcast %40 : vector<1x1x1x4xf32> to vector<2x16x16x4xf32>
    %42 = arith.mulf %37, %41 : vector<2x16x16x4xf32>
    %43 = arith.addf %36, %42 : vector<2x16x16x4xf32>
    %c0_23 = arith.constant 0 : index
    %c2_24 = arith.constant 2 : index
    %c0_25 = arith.constant 0 : index
    %c0_26 = arith.constant 0 : index
    %44 = vector.load %arg1[%c0_23, %c2_24, %c0_25, %c0_26] : memref<2x18x18x4xf32, #tpu.memory_space<vmem>>, vector<2x16x16x4xf32>
    %45 = vector.extract_strided_slice %0 {offsets = [6, 0], sizes = [1, 4], strides = [1, 1]} : vector<9x4xf32> to vector<1x4xf32>
    %46 = vector.shape_cast %45 : vector<1x4xf32> to vector<4xf32>
    %47 = vector.shape_cast %46 : vector<4xf32> to vector<1x1x1x4xf32>
    %48 = vector.broadcast %47 : vector<1x1x1x4xf32> to vector<2x16x16x4xf32>
    %49 = arith.mulf %44, %48 : vector<2x16x16x4xf32>
    %50 = arith.addf %43, %49 : vector<2x16x16x4xf32>
    %c0_27 = arith.constant 0 : index
    %c2_28 = arith.constant 2 : index
    %c1_29 = arith.constant 1 : index
    %c0_30 = arith.constant 0 : index
    %51 = vector.load %arg1[%c0_27, %c2_28, %c1_29, %c0_30] : memref<2x18x18x4xf32, #tpu.memory_space<vmem>>, vector<2x16x16x4xf32>
    %52 = vector.extract_strided_slice %0 {offsets = [7, 0], sizes = [1, 4], strides = [1, 1]} : vector<9x4xf32> to vector<1x4xf32>
    %53 = vector.shape_cast %52 : vector<1x4xf32> to vector<4xf32>
    %54 = vector.shape_cast %53 : vector<4xf32> to vector<1x1x1x4xf32>
    %55 = vector.broadcast %54 : vector<1x1x1x4xf32> to vector<2x16x16x4xf32>
    %56 = arith.mulf %51, %55 : vector<2x16x16x4xf32>
    %57 = arith.addf %50, %56 : vector<2x16x16x4xf32>
    %c0_31 = arith.constant 0 : index
    %c2_32 = arith.constant 2 : index
    %c2_33 = arith.constant 2 : index
    %c0_34 = arith.constant 0 : index
    %58 = vector.load %arg1[%c0_31, %c2_32, %c2_33, %c0_34] : memref<2x18x18x4xf32, #tpu.memory_space<vmem>>, vector<2x16x16x4xf32>
    %59 = vector.extract_strided_slice %0 {offsets = [8, 0], sizes = [1, 4], strides = [1, 1]} : vector<9x4xf32> to vector<1x4xf32>
    %60 = vector.shape_cast %59 : vector<1x4xf32> to vector<4xf32>
    %61 = vector.shape_cast %60 : vector<4xf32> to vector<1x1x1x4xf32>
    %62 = vector.broadcast %61 : vector<1x1x1x4xf32> to vector<2x16x16x4xf32>
    %63 = arith.mulf %58, %62 : vector<2x16x16x4xf32>
    %64 = arith.addf %57, %63 : vector<2x16x16x4xf32>
    %65 = vector.shape_cast %64 : vector<2x16x16x4xf32> to vector<512x4xf32>
    %c0_35 = arith.constant 0 : index
    %c0_36 = arith.constant 0 : index
    %66 = vector.load %arg3[%c0_35, %c0_36] : memref<4x8xf32, #tpu.memory_space<vmem>>, vector<4x8xf32>
    %cst_37 = arith.constant dense<0.000000e+00> : vector<512x8xf32>
    %67 = tpu.matmul %65, %66, %cst_37 {dimension_numbers = #tpu.dot_dimension_numbers<[1], [0], [0], [1], [0, 0, 1, 1], [], []>} : vector<512x4xf32>, vector<4x8xf32>, vector<512x8xf32> -> vector<512x8xf32>
    %c0_38 = arith.constant 0 : index
    %c0_39 = arith.constant 0 : index
    %68 = vector.load %arg4[%c0_38, %c0_39] : memref<1x8xf32, #tpu.memory_space<vmem>>, vector<1x8xf32>
    %69 = vector.broadcast %68 : vector<1x8xf32> to vector<512x8xf32>
    %70 = arith.addf %67, %69 : vector<512x8xf32>
    %cst_40 = arith.constant 0.000000e+00 : f32
    %71 = vector.broadcast %cst_40 : f32 to vector<512x8xf32>
    %72 = arith.maximumf %70, %71 : vector<512x8xf32>
    %cst_41 = arith.constant 0.000000e+00 : f32
    %73 = vector.broadcast %cst_41 : f32 to vector<2x18x25x8xf32>
    %c0_42 = arith.constant 0 : index
    %c0_43 = arith.constant 0 : index
    %c0_44 = arith.constant 0 : index
    %c0_45 = arith.constant 0 : index
    %74 = vector.load %arg9[%c0_42, %c0_43, %c0_44, %c0_45] : memref<2x18x25x8xf32, #tpu.memory_space<vmem>>, vector<2x18x25x8xf32>
    tpu.vector_store %arg9[%c0_42, %c0_43, %c0_44, %c0_45], %73 {strides = array<i32>} : memref<2x18x25x8xf32, #tpu.memory_space<vmem>>, vector<2x18x25x8xf32>,
    %75 = vector.shape_cast %72 : vector<512x8xf32> to vector<2x16x16x8xf32>
    %c0_46 = arith.constant 0 : index
    %c1_47 = arith.constant 1 : index
    %c8 = arith.constant 8 : index
    %c0_48 = arith.constant 0 : index
    %76 = vector.load %arg9[%c0_46, %c1_47, %c8, %c0_48] : memref<2x18x25x8xf32, #tpu.memory_space<vmem>>, vector<2x16x16x8xf32>
    tpu.vector_store %arg9[%c0_46, %c1_47, %c8, %c0_48], %75 {strides = array<i32>} : memref<2x18x25x8xf32, #tpu.memory_space<vmem>>, vector<2x16x16x8xf32>,
    %c0_49 = arith.constant 0 : index
    %c0_50 = arith.constant 0 : index
    %77 = vector.load %arg5[%c0_49, %c0_50] : memref<9x8xf32, #tpu.memory_space<vmem>>, vector<9x8xf32>
    %cst_51 = arith.constant 0.000000e+00 : f32
    %78 = vector.broadcast %cst_51 : f32 to vector<2x16x16x8xf32>
    %c0_52 = arith.constant 0 : index
    %c0_53 = arith.constant 0 : index
    %c7 = arith.constant 7 : index
    %c0_54 = arith.constant 0 : index
    %79 = vector.load %arg9[%c0_52, %c0_53, %c7, %c0_54] : memref<2x18x25x8xf32, #tpu.memory_space<vmem>>, vector<2x16x16x8xf32>
    %80 = vector.extract_strided_slice %77 {offsets = [0, 0], sizes = [1, 8], strides = [1, 1]} : vector<9x8xf32> to vector<1x8xf32>
    %81 = vector.shape_cast %80 : vector<1x8xf32> to vector<8xf32>
    %82 = vector.shape_cast %81 : vector<8xf32> to vector<1x1x1x8xf32>
    %83 = vector.broadcast %82 : vector<1x1x1x8xf32> to vector<2x16x16x8xf32>
    %84 = arith.mulf %79, %83 : vector<2x16x16x8xf32>
    %85 = arith.addf %78, %84 : vector<2x16x16x8xf32>
    %c0_55 = arith.constant 0 : index
    %c0_56 = arith.constant 0 : index
    %c8_57 = arith.constant 8 : index
    %c0_58 = arith.constant 0 : index
    %86 = vector.load %arg9[%c0_55, %c0_56, %c8_57, %c0_58] : memref<2x18x25x8xf32, #tpu.memory_space<vmem>>, vector<2x16x16x8xf32>
    %87 = vector.extract_strided_slice %77 {offsets = [1, 0], sizes = [1, 8], strides = [1, 1]} : vector<9x8xf32> to vector<1x8xf32>
    %88 = vector.shape_cast %87 : vector<1x8xf32> to vector<8xf32>
    %89 = vector.shape_cast %88 : vector<8xf32> to vector<1x1x1x8xf32>
    %90 = vector.broadcast %89 : vector<1x1x1x8xf32> to vector<2x16x16x8xf32>
    %91 = arith.mulf %86, %90 : vector<2x16x16x8xf32>
    %92 = arith.addf %85, %91 : vector<2x16x16x8xf32>
    %c0_59 = arith.constant 0 : index
    %c0_60 = arith.constant 0 : index
    %c9 = arith.constant 9 : index
    %c0_61 = arith.constant 0 : index
    %93 = vector.load %arg9[%c0_59, %c0_60, %c9, %c0_61] : memref<2x18x25x8xf32, #tpu.memory_space<vmem>>, vector<2x16x16x8xf32>
    %94 = vector.extract_strided_slice %77 {offsets = [2, 0], sizes = [1, 8], strides = [1, 1]} : vector<9x8xf32> to vector<1x8xf32>
    %95 = vector.shape_cast %94 : vector<1x8xf32> to vector<8xf32>
    %96 = vector.shape_cast %95 : vector<8xf32> to vector<1x1x1x8xf32>
    %97 = vector.broadcast %96 : vector<1x1x1x8xf32> to vector<2x16x16x8xf32>
    %98 = arith.mulf %93, %97 : vector<2x16x16x8xf32>
    %99 = arith.addf %92, %98 : vector<2x16x16x8xf32>
    %c0_62 = arith.constant 0 : index
    %c1_63 = arith.constant 1 : index
    %c7_64 = arith.constant 7 : index
    %c0_65 = arith.constant 0 : index
    %100 = vector.load %arg9[%c0_62, %c1_63, %c7_64, %c0_65] : memref<2x18x25x8xf32, #tpu.memory_space<vmem>>, vector<2x16x16x8xf32>
    %101 = vector.extract_strided_slice %77 {offsets = [3, 0], sizes = [1, 8], strides = [1, 1]} : vector<9x8xf32> to vector<1x8xf32>
    %102 = vector.shape_cast %101 : vector<1x8xf32> to vector<8xf32>
    %103 = vector.shape_cast %102 : vector<8xf32> to vector<1x1x1x8xf32>
    %104 = vector.broadcast %103 : vector<1x1x1x8xf32> to vector<2x16x16x8xf32>
    %105 = arith.mulf %100, %104 : vector<2x16x16x8xf32>
    %106 = arith.addf %99, %105 : vector<2x16x16x8xf32>
    %c0_66 = arith.constant 0 : index
    %c1_67 = arith.constant 1 : index
    %c8_68 = arith.constant 8 : index
    %c0_69 = arith.constant 0 : index
    %107 = vector.load %arg9[%c0_66, %c1_67, %c8_68, %c0_69] : memref<2x18x25x8xf32, #tpu.memory_space<vmem>>, vector<2x16x16x8xf32>
    %108 = vector.extract_strided_slice %77 {offsets = [4, 0], sizes = [1, 8], strides = [1, 1]} : vector<9x8xf32> to vector<1x8xf32>
    %109 = vector.shape_cast %108 : vector<1x8xf32> to vector<8xf32>
    %110 = vector.shape_cast %109 : vector<8xf32> to vector<1x1x1x8xf32>
    %111 = vector.broadcast %110 : vector<1x1x1x8xf32> to vector<2x16x16x8xf32>
    %112 = arith.mulf %107, %111 : vector<2x16x16x8xf32>
    %113 = arith.addf %106, %112 : vector<2x16x16x8xf32>
    %c0_70 = arith.constant 0 : index
    %c1_71 = arith.constant 1 : index
    %c9_72 = arith.constant 9 : index
    %c0_73 = arith.constant 0 : index
    %114 = vector.load %arg9[%c0_70, %c1_71, %c9_72, %c0_73] : memref<2x18x25x8xf32, #tpu.memory_space<vmem>>, vector<2x16x16x8xf32>
    %115 = vector.extract_strided_slice %77 {offsets = [5, 0], sizes = [1, 8], strides = [1, 1]} : vector<9x8xf32> to vector<1x8xf32>
    %116 = vector.shape_cast %115 : vector<1x8xf32> to vector<8xf32>
    %117 = vector.shape_cast %116 : vector<8xf32> to vector<1x1x1x8xf32>
    %118 = vector.broadcast %117 : vector<1x1x1x8xf32> to vector<2x16x16x8xf32>
    %119 = arith.mulf %114, %118 : vector<2x16x16x8xf32>
    %120 = arith.addf %113, %119 : vector<2x16x16x8xf32>
    %c0_74 = arith.constant 0 : index
    %c2_75 = arith.constant 2 : index
    %c7_76 = arith.constant 7 : index
    %c0_77 = arith.constant 0 : index
    %121 = vector.load %arg9[%c0_74, %c2_75, %c7_76, %c0_77] : memref<2x18x25x8xf32, #tpu.memory_space<vmem>>, vector<2x16x16x8xf32>
    %122 = vector.extract_strided_slice %77 {offsets = [6, 0], sizes = [1, 8], strides = [1, 1]} : vector<9x8xf32> to vector<1x8xf32>
    %123 = vector.shape_cast %122 : vector<1x8xf32> to vector<8xf32>
    %124 = vector.shape_cast %123 : vector<8xf32> to vector<1x1x1x8xf32>
    %125 = vector.broadcast %124 : vector<1x1x1x8xf32> to vector<2x16x16x8xf32>
    %126 = arith.mulf %121, %125 : vector<2x16x16x8xf32>
    %127 = arith.addf %120, %126 : vector<2x16x16x8xf32>
    %c0_78 = arith.constant 0 : index
    %c2_79 = arith.constant 2 : index
    %c8_80 = arith.constant 8 : index
    %c0_81 = arith.constant 0 : index
    %128 = vector.load %arg9[%c0_78, %c2_79, %c8_80, %c0_81] : memref<2x18x25x8xf32, #tpu.memory_space<vmem>>, vector<2x16x16x8xf32>
    %129 = vector.extract_strided_slice %77 {offsets = [7, 0], sizes = [1, 8], strides = [1, 1]} : vector<9x8xf32> to vector<1x8xf32>
    %130 = vector.shape_cast %129 : vector<1x8xf32> to vector<8xf32>
    %131 = vector.shape_cast %130 : vector<8xf32> to vector<1x1x1x8xf32>
    %132 = vector.broadcast %131 : vector<1x1x1x8xf32> to vector<2x16x16x8xf32>
    %133 = arith.mulf %128, %132 : vector<2x16x16x8xf32>
    %134 = arith.addf %127, %133 : vector<2x16x16x8xf32>
    %c0_82 = arith.constant 0 : index
    %c2_83 = arith.constant 2 : index
    %c9_84 = arith.constant 9 : index
    %c0_85 = arith.constant 0 : index
    %135 = vector.load %arg9[%c0_82, %c2_83, %c9_84, %c0_85] : memref<2x18x25x8xf32, #tpu.memory_space<vmem>>, vector<2x16x16x8xf32>
    %136 = vector.extract_strided_slice %77 {offsets = [8, 0], sizes = [1, 8], strides = [1, 1]} : vector<9x8xf32> to vector<1x8xf32>
    %137 = vector.shape_cast %136 : vector<1x8xf32> to vector<8xf32>
    %138 = vector.shape_cast %137 : vector<8xf32> to vector<1x1x1x8xf32>
    %139 = vector.broadcast %138 : vector<1x1x1x8xf32> to vector<2x16x16x8xf32>
    %140 = arith.mulf %135, %139 : vector<2x16x16x8xf32>
    %141 = arith.addf %134, %140 : vector<2x16x16x8xf32>
    %142 = vector.shape_cast %141 : vector<2x16x16x8xf32> to vector<512x8xf32>
    %c0_86 = arith.constant 0 : index
    %c0_87 = arith.constant 0 : index
    %143 = vector.load %arg6[%c0_86, %c0_87] : memref<8x8xf32, #tpu.memory_space<vmem>>, vector<8x8xf32>
    %cst_88 = arith.constant dense<0.000000e+00> : vector<512x8xf32>
    %144 = tpu.matmul %142, %143, %cst_88 {dimension_numbers = #tpu.dot_dimension_numbers<[1], [0], [0], [1], [0, 0, 1, 1], [], []>} : vector<512x8xf32>, vector<8x8xf32>, vector<512x8xf32> -> vector<512x8xf32>
    %c0_89 = arith.constant 0 : index
    %c0_90 = arith.constant 0 : index
    %145 = vector.load %arg7[%c0_89, %c0_90] : memref<1x8xf32, #tpu.memory_space<vmem>>, vector<1x8xf32>
    %146 = vector.broadcast %145 : vector<1x8xf32> to vector<512x8xf32>
    %147 = arith.addf %144, %146 : vector<512x8xf32>
    %cst_91 = arith.constant 0.000000e+00 : f32
    %148 = vector.broadcast %cst_91 : f32 to vector<512x8xf32>
    %149 = arith.maximumf %147, %148 : vector<512x8xf32>
    %150 = arith.addf %72, %149 : vector<512x8xf32>
    %151 = vector.shape_cast %150 : vector<512x8xf32> to vector<2x16x16x8xf32>
    %c0_92 = arith.constant 0 : index
    %c0_93 = arith.constant 0 : index
    %c0_94 = arith.constant 0 : index
    %c0_95 = arith.constant 0 : index
    %152 = vector.load %arg8[%c0_92, %c0_93, %c0_94, %c0_95] : memref<2x16x16x8xf32, #tpu.memory_space<vmem>>, vector<2x16x16x8xf32>
    tpu.vector_store %arg8[%c0_92, %c0_93, %c0_94, %c0_95], %151 {strides = array<i32>} : memref<2x16x16x8xf32, #tpu.memory_space<vmem>>, vector<2x16x16x8xf32>,
    return
  }
  func.func @transform_0(%arg0: i32) -> (i32, i32, i32, i32) {
    %c0_i32 = arith.constant 0 : i32
    %c0_i32_0 = arith.constant 0 : i32
    %c0_i32_1 = arith.constant 0 : i32
    %c0_i32_2 = arith.constant 0 : i32
    return %arg0, %c0_i32, %c0_i32_0, %c0_i32_1 : i32, i32, i32, i32
  }
  func.func @transform_1(%arg0: i32) -> (i32, i32) {
    %c0_i32 = arith.constant 0 : i32
    %c0_i32_0 = arith.constant 0 : i32
    %c0_i32_1 = arith.constant 0 : i32
    return %c0_i32, %c0_i32_0 : i32, i32
  }
  func.func @transform_2(%arg0: i32) -> (i32, i32) {
    %c0_i32 = arith.constant 0 : i32
    %c0_i32_0 = arith.constant 0 : i32
    %c0_i32_1 = arith.constant 0 : i32
    return %c0_i32, %c0_i32_0 : i32, i32
  }
  func.func @transform_3(%arg0: i32) -> (i32, i32) {
    %c0_i32 = arith.constant 0 : i32
    %c0_i32_0 = arith.constant 0 : i32
    %c0_i32_1 = arith.constant 0 : i32
    return %c0_i32, %c0_i32_0 : i32, i32
  }
  func.func @transform_4(%arg0: i32) -> (i32, i32) {
    %c0_i32 = arith.constant 0 : i32
    %c0_i32_0 = arith.constant 0 : i32
    %c0_i32_1 = arith.constant 0 : i32
    return %c0_i32, %c0_i32_0 : i32, i32
  }
  func.func @transform_5(%arg0: i32) -> (i32, i32) {
    %c0_i32 = arith.constant 0 : i32
    %c0_i32_0 = arith.constant 0 : i32
    %c0_i32_1 = arith.constant 0 : i32
    return %c0_i32, %c0_i32_0 : i32, i32
  }
  func.func @transform_6(%arg0: i32) -> (i32, i32) {
    %c0_i32 = arith.constant 0 : i32
    %c0_i32_0 = arith.constant 0 : i32
    %c0_i32_1 = arith.constant 0 : i32
    return %c0_i32, %c0_i32_0 : i32, i32
  }
  func.func @transform_7(%arg0: i32) -> (i32, i32, i32, i32) {
    %c0_i32 = arith.constant 0 : i32
    %c0_i32_0 = arith.constant 0 : i32
    %c0_i32_1 = arith.constant 0 : i32
    %c0_i32_2 = arith.constant 0 : i32
    return %arg0, %c0_i32, %c0_i32_0, %c0_i32_1 : i32, i32, i32, i32
  }
}

</mosaic_0001>

<llo_original>
// kernel: squeeze.7
$region0: #{squeeze.7}
  %s0 = inlined_call_operand.vmem [shape: f32[8,3,3], index: 0, kind: input, shape index: {}]
  %s1 = inlined_call_operand.vmem [shape: f32[8,9], index: 1, kind: output, shape index: {}]
  $region1: #{squeeze.7} parent=0
    #allocation0 [shape = 'u8[12288]{0}', space=vmem, size = 0x3000, scoped, tag = 'scoped mem for input reshape']
    %s3 = ssub.s32 16, 1
    %s4 = scalar_lea.vmem %s0, 8
    %v5 = vld [vmem:[%s4] sm:%s3]
    %s6 = scalar_lea.vmem [#allocation0], 16
    %7 = vst [vmem:[%s6] sm:%s3] %v5
    %s8 = scalar_lea.vmem %s0, 4
    %v9 = vld [vmem:[%s8] sm:%s3]
    %s10 = scalar_lea.vmem [#allocation0], 8
    %11 = vst [vmem:[%s10] sm:%s3] %v9
    %v12 = vld [vmem:[%s0] sm:%s3]
    %13 = vst [vmem:[#allocation0] sm:%s3] %v12
    %v14 = vld [vmem:[#allocation0] sm:$0x7]
    %vm15 = vcmask 64512
    %16 = vst.msk [vmem:[%s1] sm:$0x7] %vm15, %v14
    %s17 = scalar_lea.vmem [#allocation0], 8
    %v18 = vld [vmem:[%s17] sm:$0x7]
    %vm19 = vcmask 64512
    %s20 = scalar_lea.vmem %s1, 3
    %21 = vst.msk [vmem:[%s20] sm:$0x7] %vm19, %v18
    %s22 = scalar_lea.vmem [#allocation0], 16
    %v23 = vld [vmem:[%s22] sm:$0x7]
    %vm24 = vcmask 64512
    %s25 = scalar_lea.vmem %s1, 6
    %26 = vst.msk [vmem:[%s25] sm:$0x7] %vm24, %v23

// kernel: separable_conv2d.1
$region0: #{separable_conv2d.1}
  #allocation0 [shape = 'u32[]', space=smem, size = 0x4, offset = 0x4, fixed_abs, tag = 'smem constant byte address 0x4 - core index']
  #allocation1 [shape = 'u32[72,128]{1,0:T(1,128)}', space=vmem, size = 0x9000, scoped, tag = 'internal scratch']
  #allocation2 [shape = 'f32[2,18,25,8]{3,2,1,0:T(8,128)}', space=vmem, size = 0x90000, scoped, tag = 'scratch operand']
  %s0 = inlined_call_operand.vmem [shape: f32[2,18,18,4], index: 0, kind: input, shape index: {}]
  %s1 = inlined_call_operand.vmem [shape: f32[9,4], index: 1, kind: input, shape index: {}]
  %s2 = inlined_call_operand.vmem [shape: f32[4,8], index: 2, kind: input, shape index: {}]
  %s3 = inlined_call_operand.vmem [shape: f32[1,8], index: 3, kind: input, shape index: {}]
  %s4 = inlined_call_operand.vmem [shape: f32[9,8], index: 4, kind: input, shape index: {}]
  %s5 = inlined_call_operand.vmem [shape: f32[8,8], index: 5, kind: input, shape index: {}]
  %s6 = inlined_call_operand.vmem [shape: f32[1,8], index: 6, kind: input, shape index: {}]
  %s7 = inlined_call_operand.vmem [shape: f32[2,16,16,8], index: 7, kind: output, shape index: {}]
  %s8 = sld [smem:[#allocation0]]
  $region38: #{separable_conv2d.1} parent=0
    _
  %s10 = ssub.s32 1, %s8
  %s11 = scalar_select 0, %s10, %s8
  // Predicated region
  $region2: #{separable_conv2d.1} parent=0 // pred_check
    _
  $region3: #{separable_conv2d.1} parent=0 // pred_check_branch
    %13 = sbr.rel (0) target = $region5
  $region4: #{separable_conv2d.1} parent=0 // pred_region
    _
  $region5: #{separable_conv2d.1} parent=0 // pred_fallthru
    _
  // Predicated region
  $region6: #{separable_conv2d.1} parent=0 // pred_check
    _
  $region7: #{separable_conv2d.1} parent=0 // pred_check_branch
    %15 = sbr.rel (0) target = $region9
  $region8: #{separable_conv2d.1} parent=0 // pred_region
    _
  $region9: #{separable_conv2d.1} parent=0 // pred_fallthru
    _
  // Predicated region
  $region10: #{separable_conv2d.1} parent=0 // pred_check
    _
  $region11: #{separable_conv2d.1} parent=0 // pred_check_branch
    %17 = sbr.rel (0) target = $region13
  $region12: #{separable_conv2d.1} parent=0 // pred_region
    _
  $region13: #{separable_conv2d.1} parent=0 // pred_fallthru
    _
  // Predicated region
  $region14: #{separable_conv2d.1} parent=0 // pred_check
    _
  $region15: #{separable_conv2d.1} parent=0 // pred_check_branch
    %19 = sbr.rel (0) target = $region17
  $region16: #{separable_conv2d.1} parent=0 // pred_region
    _
  $region17: #{separable_conv2d.1} parent=0 // pred_fallthru
    _
  // Predicated region
  $region18: #{separable_conv2d.1} parent=0 // pred_check
    _
  $region19: #{separable_conv2d.1} parent=0 // pred_check_branch
    %21 = sbr.rel (0) target = $region21
  $region20: #{separable_conv2d.1} parent=0 // pred_region
    _
  $region21: #{separable_conv2d.1} parent=0 // pred_fallthru
    _
  // Predicated region
  $region22: #{separable_conv2d.1} parent=0 // pred_check
    _
  $region23: #{separable_conv2d.1} parent=0 // pred_check_branch
    %23 = sbr.rel (0) target = $region25
  $region24: #{separable_conv2d.1} parent=0 // pred_region
    _
  $region25: #{separable_conv2d.1} parent=0 // pred_fallthru
    _
  // Predicated region
  $region26: #{separable_conv2d.1} parent=0 // pred_check
    _
  $region27: #{separable_conv2d.1} parent=0 // pred_check_branch
    %25 = sbr.rel (0) target = $region29
  $region28: #{separable_conv2d.1} parent=0 // pred_region
    _
  $region29: #{separable_conv2d.1} parent=0 // pred_fallthru
    _
  %v26 = vld [vmem:[%s1] sm:$0xff]
  %v27 = vld [vmem:[%s1 + $0x8] sm:$0x1]
  %v28 = vld [vmem:[%s0] sm:$0xff]
  %v29 = vld [vmem:[%s0 + $0x8] sm:$0xff]
  %v30 = vld [vmem:[%s0 + $0x18] sm:$0xff]
  %v31 = vld [vmem:[%s0 + $0x20] sm:$0xff]
  %v32 = vld [vmem:[%s0 + $0x30] sm:$0xff]
  %v33 = vld [vmem:[%s0 + $0x38] sm:$0xff]
  %v34 = vld [vmem:[%s0 + $0x48] sm:$0xff]
  %v35 = vld [vmem:[%s0 + $0x50] sm:$0xff]
  %v36 = vld [vmem:[%s0 + $0x60] sm:$0xff]
  %v37 = vld [vmem:[%s0 + $0x68] sm:$0xff]
  %v38 = vld [vmem:[%s0 + $0x78] sm:$0xff]
  %v39 = vld [vmem:[%s0 + $0x80] sm:$0xff]
  %v40 = vld [vmem:[%s0 + $0x90] sm:$0xff]
  %v41 = vld [vmem:[%s0 + $0x98] sm:$0xff]
  %v42 = vld [vmem:[%s0 + $0xa8] sm:$0xff]
  %v43 = vld [vmem:[%s0 + $0xb0] sm:$0xff]
  %v44 = vld [vmem:[%s0 + $0xc0] sm:$0xff]
  %v45 = vld [vmem:[%s0 + $0xc8] sm:$0xff]
  %v46 = vld [vmem:[%s0 + $0xd8] sm:$0xff]
  %v47 = vld [vmem:[%s0 + $0xe0] sm:$0xff]
  %v48 = vld [vmem:[%s0 + $0xf0] sm:$0xff]
  %v49 = vld [vmem:[%s0 + $0xf8] sm:$0xff]
  %v50 = vld [vmem:[%s0 + $0x108] sm:$0xff]
  %v51 = vld [vmem:[%s0 + $0x110] sm:$0xff]
  %v52 = vld [vmem:[%s0 + $0x120] sm:$0xff]
  %v53 = vld [vmem:[%s0 + $0x128] sm:$0xff]
  %v54 = vld [vmem:[%s0 + $0x138] sm:$0xff]
  %v55 = vld [vmem:[%s0 + $0x140] sm:$0xff]
  %v56 = vld [vmem:[%s0 + $0x150] sm:$0xff]
  %v57 = vld [vmem:[%s0 + $0x158] sm:$0xff]
  %v58 = vld [vmem:[%s0 + $0x168] sm:$0xff]
  %v59 = vld [vmem:[%s0 + $0x170] sm:$0xff]
  %v60 = vld [vmem:[%s0 + $0x1b0] sm:$0xff]
  %v61 = vld [vmem:[%s0 + $0x1b8] sm:$0xff]
  %v62 = vld [vmem:[%s0 + $0x1c8] sm:$0xff]
  %v63 = vld [vmem:[%s0 + $0x1d0] sm:$0xff]
  %v64 = vld [vmem:[%s0 + $0x1e0] sm:$0xff]
  %v65 = vld [vmem:[%s0 + $0x1e8] sm:$0xff]
  %v66 = vld [vmem:[%s0 + $0x1f8] sm:$0xff]
  %v67 = vld [vmem:[%s0 + $0x200] sm:$0xff]
  %v68 = vld [vmem:[%s0 + $0x210] sm:$0xff]
  %v69 = vld [vmem:[%s0 + $0x218] sm:$0xff]
  %v70 = vld [vmem:[%s0 + $0x228] sm:$0xff]
  %v71 = vld [vmem:[%s0 + $0x230] sm:$0xff]
  %v72 = vld [vmem:[%s0 + $0x240] sm:$0xff]
  %v73 = vld [vmem:[%s0 + $0x248] sm:$0xff]
  %v74 = vld [vmem:[%s0 + $0x258] sm:$0xff]
  %v75 = vld [vmem:[%s0 + $0x260] sm:$0xff]
  %v76 = vld [vmem:[%s0 + $0x270] sm:$0xff]
  %v77 = vld [vmem:[%s0 + $0x278] sm:$0xff]
  %v78 = vld [vmem:[%s0 + $0x288] sm:$0xff]
  %v79 = vld [vmem:[%s0 + $0x290] sm:$0xff]
  %v80 = vld [vmem:[%s0 + $0x2a0] sm:$0xff]
  %v81 = vld [vmem:[%s0 + $0x2a8] sm:$0xff]
  %v82 = vld [vmem:[%s0 + $0x2b8] sm:$0xff]
  %v83 = vld [vmem:[%s0 + $0x2c0] sm:$0xff]
  %v84 = vld [vmem:[%s0 + $0x2d0] sm:$0xff]
  %v85 = vld [vmem:[%s0 + $0x2d8] sm:$0xff]
  %v86 = vld [vmem:[%s0 + $0x2e8] sm:$0xff]
  %v87 = vld [vmem:[%s0 + $0x2f0] sm:$0xff]
  %v88 = vld [vmem:[%s0 + $0x300] sm:$0xff]
  %v89 = vld [vmem:[%s0 + $0x308] sm:$0xff]
  %v90 = vld [vmem:[%s0 + $0x318] sm:$0xff]
  %v91 = vld [vmem:[%s0 + $0x320] sm:$0xff]
  %v92 = vperm.slane %v26, 0
  %v93 = vmul.f32 %v28, %v92
  %v94 = vmul.f32 %v29, %v92
  %v95 = vmul.f32 %v30, %v92
  %v96 = vmul.f32 %v31, %v92
  %v97 = vmul.f32 %v32, %v92
  %v98 = vmul.f32 %v33, %v92
  %v99 = vmul.f32 %v34, %v92
  %v100 = vmul.f32 %v35, %v92
  %v101 = vmul.f32 %v36, %v92
  %v102 = vmul.f32 %v37, %v92
  %v103 = vmul.f32 %v38, %v92
  %v104 = vmul.f32 %v39, %v92
  %v105 = vmul.f32 %v40, %v92
  %v106 = vmul.f32 %v41, %v92
  %v107 = vmul.f32 %v42, %v92
  %v108 = vmul.f32 %v43, %v92
  %v109 = vmul.f32 %v44, %v92
  %v110 = vmul.f32 %v45, %v92
  %v111 = vmul.f32 %v46, %v92
  %v112 = vmul.f32 %v47, %v92
  %v113 = vmul.f32 %v48, %v92
  %v114 = vmul.f32 %v49, %v92
  %v115 = vmul.f32 %v50, %v92
  %v116 = vmul.f32 %v51, %v92
  %v117 = vmul.f32 %v52, %v92
  %v118 = vmul.f32 %v53, %v92
  %v119 = vmul.f32 %v54, %v92
  %v120 = vmul.f32 %v55, %v92
  %v121 = vmul.f32 %v56, %v92
  %v122 = vmul.f32 %v57, %v92
  %v123 = vmul.f32 %v58, %v92
  %v124 = vmul.f32 %v59, %v92
  %v125 = vmul.f32 %v60, %v92
  %v126 = vmul.f32 %v61, %v92
  %v127 = vmul.f32 %v62, %v92
  %v128 = vmul.f32 %v63, %v92
  %v129 = vmul.f32 %v64, %v92
  %v130 = vmul.f32 %v65, %v92
  %v131 = vmul.f32 %v66, %v92
  %v132 = vmul.f32 %v67, %v92
  %v133 = vmul.f32 %v68, %v92
  %v134 = vmul.f32 %v69, %v92
  %v135 = vmul.f32 %v70, %v92
  %v136 = vmul.f32 %v71, %v92
  %v137 = vmul.f32 %v72, %v92
  %v138 = vmul.f32 %v73, %v92
  %v139 = vmul.f32 %v74, %v92
  %v140 = vmul.f32 %v75, %v92
  %v141 = vmul.f32 %v76, %v92
  %v142 = vmul.f32 %v77, %v92
  %v143 = vmul.f32 %v78, %v92
  %v144 = vmul.f32 %v79, %v92
  %v145 = vmul.f32 %v80, %v92
  %v146 = vmul.f32 %v81, %v92
  %v147 = vmul.f32 %v82, %v92
  %v148 = vmul.f32 %v83, %v92
  %v149 = vmul.f32 %v84, %v92
  %v150 = vmul.f32 %v85, %v92
  %v151 = vmul.f32 %v86, %v92
  %v152 = vmul.f32 %v87, %v92
  %v153 = vmul.f32 %v88, %v92
  %v154 = vmul.f32 %v89, %v92
  %v155 = vmul.f32 %v90, %v92
  %v156 = vmul.f32 %v91, %v92
  %v157 = vadd.f32 %v93, 0.0
  %v158 = vadd.f32 %v94, 0.0
  %v159 = vadd.f32 %v95, 0.0
  %v160 = vadd.f32 %v96, 0.0
  %v161 = vadd.f32 %v97, 0.0
  %v162 = vadd.f32 %v98, 0.0
  %v163 = vadd.f32 %v99, 0.0
  %v164 = vadd.f32 %v100, 0.0
  %v165 = vadd.f32 %v101, 0.0
  %v166 = vadd.f32 %v102, 0.0
  %v167 = vadd.f32 %v103, 0.0
  %v168 = vadd.f32 %v104, 0.0
  %v169 = vadd.f32 %v105, 0.0
  %v170 = vadd.f32 %v106, 0.0
  %v171 = vadd.f32 %v107, 0.0
  %v172 = vadd.f32 %v108, 0.0
  %v173 = vadd.f32 %v109, 0.0
  %v174 = vadd.f32 %v110, 0.0
  %v175 = vadd.f32 %v111, 0.0
  %v176 = vadd.f32 %v112, 0.0
  %v177 = vadd.f32 %v113, 0.0
  %v178 = vadd.f32 %v114, 0.0
  %v179 = vadd.f32 %v115, 0.0
  %v180 = vadd.f32 %v116, 0.0
  %v181 = vadd.f32 %v117, 0.0
  %v182 = vadd.f32 %v118, 0.0
  %v183 = vadd.f32 %v119, 0.0
  %v184 = vadd.f32 %v120, 0.0
  %v185 = vadd.f32 %v121, 0.0
  %v186 = vadd.f32 %v122, 0.0
  %v187 = vadd.f32 %v123, 0.0
  %v188 = vadd.f32 %v124, 0.0
  %v189 = vadd.f32 %v125, 0.0
  %v190 = vadd.f32 %v126, 0.0
  %v191 = vadd.f32 %v127, 0.0
  %v192 = vadd.f32 %v128, 0.0
  %v193 = vadd.f32 %v129, 0.0
  %v194 = vadd.f32 %v130, 0.0
  %v195 = vadd.f32 %v131, 0.0
  %v196 = vadd.f32 %v132, 0.0
  %v197 = vadd.f32 %v133, 0.0
  %v198 = vadd.f32 %v134, 0.0
  %v199 = vadd.f32 %v135, 0.0
  %v200 = vadd.f32 %v136, 0.0
  %v201 = vadd.f32 %v137, 0.0
  %v202 = vadd.f32 %v138, 0.0
  %v203 = vadd.f32 %v139, 0.0
  %v204 = vadd.f32 %v140, 0.0
  %v205 = vadd.f32 %v141, 0.0
  %v206 = vadd.f32 %v142, 0.0
  %v207 = vadd.f32 %v143, 0.0
  %v208 = vadd.f32 %v144, 0.0
  %v209 = vadd.f32 %v145, 0.0
  %v210 = vadd.f32 %v146, 0.0
  %v211 = vadd.f32 %v147, 0.0
  %v212 = vadd.f32 %v148, 0.0
  %v213 = vadd.f32 %v149, 0.0
  %v214 = vadd.f32 %v150, 0.0
  %v215 = vadd.f32 %v151, 0.0
  %v216 = vadd.f32 %v152, 0.0
  %v217 = vadd.f32 %v153, 0.0
  %v218 = vadd.f32 %v154, 0.0
  %v219 = vadd.f32 %v155, 0.0
  %v220 = vadd.f32 %v156, 0.0
  %v221 = vld [vmem:[%s0 + $0x1] sm:$0xff]
  %v222 = vld [vmem:[%s0 + $0x9] sm:$0xff]
  %v223 = vld [vmem:[%s0 + $0x19] sm:$0xff]
  %v224 = vld [vmem:[%s0 + $0x21] sm:$0xff]
  %v225 = vld [vmem:[%s0 + $0x31] sm:$0xff]
  %v226 = vld [vmem:[%s0 + $0x39] sm:$0xff]
  %v227 = vld [vmem:[%s0 + $0x49] sm:$0xff]
  %v228 = vld [vmem:[%s0 + $0x51] sm:$0xff]
  %v229 = vld [vmem:[%s0 + $0x61] sm:$0xff]
  %v230 = vld [vmem:[%s0 + $0x69] sm:$0xff]
  %v231 = vld [vmem:[%s0 + $0x79] sm:$0xff]
  %v232 = vld [vmem:[%s0 + $0x81] sm:$0xff]
  %v233 = vld [vmem:[%s0 + $0x91] sm:$0xff]
  %v234 = vld [vmem:[%s0 + $0x99] sm:$0xff]
  %v235 = vld [vmem:[%s0 + $0xa9] sm:$0xff]
  %v236 = vld [vmem:[%s0 + $0xb1] sm:$0xff]
  %v237 = vld [vmem:[%s0 + $0xc1] sm:$0xff]
  %v238 = vld [vmem:[%s0 + $0xc9] sm:$0xff]
  %v239 = vld [vmem:[%s0 + $0xd9] sm:$0xff]
  %v240 = vld [vmem:[%s0 + $0xe1] sm:$0xff]
  %v241 = vld [vmem:[%s0 + $0xf1] sm:$0xff]
  %v242 = vld [vmem:[%s0 + $0xf9] sm:$0xff]
  %v243 = vld [vmem:[%s0 + $0x109] sm:$0xff]
  %v244 = vld [vmem:[%s0 + $0x111] sm:$0xff]
  %v245 = vld [vmem:[%s0 + $0x121] sm:$0xff]
  %v246 = vld [vmem:[%s0 + $0x129] sm:$0xff]
  %v247 = vld [vmem:[%s0 + $0x139] sm:$0xff]
  %v248 = vld [vmem:[%s0 + $0x141] sm:$0xff]
  %v249 = vld [vmem:[%s0 + $0x151] sm:$0xff]
  %v250 = vld [vmem:[%s0 + $0x159] sm:$0xff]
  %v251 = vld [vmem:[%s0 + $0x169] sm:$0xff]
  %v252 = vld [vmem:[%s0 + $0x171] sm:$0xff]
  %v253 = vld [vmem:[%s0 + $0x1b1] sm:$0xff]
  %v254 = vld [vmem:[%s0 + $0x1b9] sm:$0xff]
  %v255 = vld [vmem:[%s0 + $0x1c9] sm:$0xff]
  %v256 = vld [vmem:[%s0 + $0x1d1] sm:$0xff]
  %v257 = vld [vmem:[%s0 + $0x1e1] sm:$0xff]
  %v258 = vld [vmem:[%s0 + $0x1e9] sm:$0xff]
  %v259 = vld [vmem:[%s0 + $0x1f9] sm:$0xff]
  %v260 = vld [vmem:[%s0 + $0x201] sm:$0xff]
  %v261 = vld [vmem:[%s0 + $0x211] sm:$0xff]
  %v262 = vld [vmem:[%s0 + $0x219] sm:$0xff]
  %v263 = vld [vmem:[%s0 + $0x229] sm:$0xff]
  %v264 = vld [vmem:[%s0 + $0x231] sm:$0xff]
  %v265 = vld [vmem:[%s0 + $0x241] sm:$0xff]
  %v266 = vld [vmem:[%s0 + $0x249] sm:$0xff]
  %v267 = vld [vmem:[%s0 + $0x259] sm:$0xff]
  %v268 = vld [vmem:[%s0 + $0x261] sm:$0xff]
  %v269 = vld [vmem:[%s0 + $0x271] sm:$0xff]
  %v270 = vld [vmem:[%s0 + $0x279] sm:$0xff]
  %v271 = vld [vmem:[%s0 + $0x289] sm:$0xff]
  %v272 = vld [vmem:[%s0 + $0x291] sm:$0xff]
  %v273 = vld [vmem:[%s0 + $0x2a1] sm:$0xff]
  %v274 = vld [vmem:[%s0 + $0x2a9] sm:$0xff]
  %v275 = vld [vmem:[%s0 + $0x2b9] sm:$0xff]
  %v276 = vld [vmem:[%s0 + $0x2c1] sm:$0xff]
  %v277 = vld [vmem:[%s0 + $0x2d1] sm:$0xff]
  %v278 = vld [vmem:[%s0 + $0x2d9] sm:$0xff]
  %v279 = vld [vmem:[%s0 + $0x2e9] sm:$0xff]
  %v280 = vld [vmem:[%s0 + $0x2f1] sm:$0xff]
  %v281 = vld [vmem:[%s0 + $0x301] sm:$0xff]
  %v282 = vld [vmem:[%s0 + $0x309] sm:$0xff]
  %v283 = vld [vmem:[%s0 + $0x319] sm:$0xff]
  %v284 = vld [vmem:[%s0 + $0x321] sm:$0xff]
  %v285 = vperm.slane %v26, 1
  %v286 = vmul.f32 %v221, %v285
  %v287 = vmul.f32 %v222, %v285
  %v288 = vmul.f32 %v223, %v285
  %v289 = vmul.f32 %v224, %v285
  %v290 = vmul.f32 %v225, %v285
  %v291 = vmul.f32 %v226, %v285
  %v292 = vmul.f32 %v227, %v285
  %v293 = vmul.f32 %v228, %v285
  %v294 = vmul.f32 %v229, %v285
  %v295 = vmul.f32 %v230, %v285
  %v296 = vmul.f32 %v231, %v285
  %v297 = vmul.f32 %v232, %v285
  %v298 = vmul.f32 %v233, %v285
  %v299 = vmul.f32 %v234, %v285
  %v300 = vmul.f32 %v235, %v285
  %v301 = vmul.f32 %v236, %v285
  %v302 = vmul.f32 %v237, %v285
  %v303 = vmul.f32 %v238, %v285
  %v304 = vmul.f32 %v239, %v285
  %v305 = vmul.f32 %v240, %v285
  %v306 = vmul.f32 %v241, %v285
  %v307 = vmul.f32 %v242, %v285
  %v308 = vmul.f32 %v243, %v285
  %v309 = vmul.f32 %v244, %v285
  %v310 = vmul.f32 %v245, %v285
  %v311 = vmul.f32 %v246, %v285
  %v312 = vmul.f32 %v247, %v285
  %v313 = vmul.f32 %v248, %v285
  %v314 = vmul.f32 %v249, %v285
  %v315 = vmul.f32 %v250, %v285
  %v316 = vmul.f32 %v251, %v285
  %v317 = vmul.f32 %v252, %v285
  %v318 = vmul.f32 %v253, %v285
  %v319 = vmul.f32 %v254, %v285
  %v320 = vmul.f32 %v255, %v285
  %v321 = vmul.f32 %v256, %v285
  %v322 = vmul.f32 %v257, %v285
  %v323 = vmul.f32 %v258, %v285
  %v324 = vmul.f32 %v259, %v285
  %v325 = vmul.f32 %v260, %v285
  %v326 = vmul.f32 %v261, %v285
  %v327 = vmul.f32 %v262, %v285
  %v328 = vmul.f32 %v263, %v285
  %v329 = vmul.f32 %v264, %v285
  %v330 = vmul.f32 %v265, %v285
  %v331 = vmul.f32 %v266, %v285
  %v332 = vmul.f32 %v267, %v285
  %v333 = vmul.f32 %v268, %v285
  %v334 = vmul.f32 %v269, %v285
  %v335 = vmul.f32 %v270, %v285
  %v336 = vmul.f32 %v271, %v285
  %v337 = vmul.f32 %v272, %v285
  %v338 = vmul.f32 %v273, %v285
  %v339 = vmul.f32 %v274, %v285
  %v340 = vmul.f32 %v275, %v285
  %v341 = vmul.f32 %v276, %v285
  %v342 = vmul.f32 %v277, %v285
  %v343 = vmul.f32 %v278, %v285
  %v344 = vmul.f32 %v279, %v285
  %v345 = vmul.f32 %v280, %v285
  %v346 = vmul.f32 %v281, %v285
  %v347 = vmul.f32 %v282, %v285
  %v348 = vmul.f32 %v283, %v285
  %v349 = vmul.f32 %v284, %v285
  %v350 = vadd.f32 %v157, %v286
  %v351 = vadd.f32 %v158, %v287
  %v352 = vadd.f32 %v159, %v288
  %v353 = vadd.f32 %v160, %v289
  %v354 = vadd.f32 %v161, %v290
  %v355 = vadd.f32 %v162, %v291
  %v356 = vadd.f32 %v163, %v292
  %v357 = vadd.f32 %v164, %v293
  %v358 = vadd.f32 %v165, %v294
  %v359 = vadd.f32 %v166, %v295
  %v360 = vadd.f32 %v167, %v296
  %v361 = vadd.f32 %v168, %v297
  %v362 = vadd.f32 %v169, %v298
  %v363 = vadd.f32 %v170, %v299
  %v364 = vadd.f32 %v171, %v300
  %v365 = vadd.f32 %v172, %v301
  %v366 = vadd.f32 %v173, %v302
  %v367 = vadd.f32 %v174, %v303
  %v368 = vadd.f32 %v175, %v304
  %v369 = vadd.f32 %v176, %v305
  %v370 = vadd.f32 %v177, %v306
  %v371 = vadd.f32 %v178, %v307
  %v372 = vadd.f32 %v179, %v308
  %v373 = vadd.f32 %v180, %v309
  %v374 = vadd.f32 %v181, %v310
  %v375 = vadd.f32 %v182, %v311
  %v376 = vadd.f32 %v183, %v312
  %v377 = vadd.f32 %v184, %v313
  %v378 = vadd.f32 %v185, %v314
  %v379 = vadd.f32 %v186, %v315
  %v380 = vadd.f32 %v187, %v316
  %v381 = vadd.f32 %v188, %v317
  %v382 = vadd.f32 %v189, %v318
  %v383 = vadd.f32 %v190, %v319
  %v384 = vadd.f32 %v191, %v320
  %v385 = vadd.f32 %v192, %v321
  %v386 = vadd.f32 %v193, %v322
  %v387 = vadd.f32 %v194, %v323
  %v388 = vadd.f32 %v195, %v324
  %v389 = vadd.f32 %v196, %v325
  %v390 = vadd.f32 %v197, %v326
  %v391 = vadd.f32 %v198, %v327
  %v392 = vadd.f32 %v199, %v328
  %v393 = vadd.f32 %v200, %v329
  %v394 = vadd.f32 %v201, %v330
  %v395 = vadd.f32 %v202, %v331
  %v396 = vadd.f32 %v203, %v332
  %v397 = vadd.f32 %v204, %v333
  %v398 = vadd.f32 %v205, %v334
  %v399 = vadd.f32 %v206, %v335
  %v400 = vadd.f32 %v207, %v336
  %v401 = vadd.f32 %v208, %v337
  %v402 = vadd.f32 %v209, %v338
  %v403 = vadd.f32 %v210, %v339
  %v404 = vadd.f32 %v211, %v340
  %v405 = vadd.f32 %v212, %v341
  %v406 = vadd.f32 %v213, %v342
  %v407 = vadd.f32 %v214, %v343
  %v408 = vadd.f32 %v215, %v344
  %v409 = vadd.f32 %v216, %v345
  %v410 = vadd.f32 %v217, %v346
  %v411 = vadd.f32 %v218, %v347
  %v412 = vadd.f32 %v219, %v348
  %v413 = vadd.f32 %v220, %v349
  %v414 = vld [vmem:[%s0 + $0x2] sm:$0xff]
  %v415 = vld [vmem:[%s0 + $0xa] sm:$0xff]
  %v416 = vld [vmem:[%s0 + $0x1a] sm:$0xff]
  %v417 = vld [vmem:[%s0 + $0x22] sm:$0xff]
  %v418 = vld [vmem:[%s0 + $0x32] sm:$0xff]
  %v419 = vld [vmem:[%s0 + $0x3a] sm:$0xff]
  %v420 = vld [vmem:[%s0 + $0x4a] sm:$0xff]
  %v421 = vld [vmem:[%s0 + $0x52] sm:$0xff]
  %v422 = vld [vmem:[%s0 + $0x62] sm:$0xff]
  %v423 = vld [vmem:[%s0 + $0x6a] sm:$0xff]
  %v424 = vld [vmem:[%s0 + $0x7a] sm:$0xff]
  %v425 = vld [vmem:[%s0 + $0x82] sm:$0xff]
  %v426 = vld [vmem:[%s0 + $0x92] sm:$0xff]
  %v427 = vld [vmem:[%s0 + $0x9a] sm:$0xff]
  %v428 = vld [vmem:[%s0 + $0xaa] sm:$0xff]
  %v429 = vld [vmem:[%s0 + $0xb2] sm:$0xff]
  %v430 = vld [vmem:[%s0 + $0xc2] sm:$0xff]
  %v431 = vld [vmem:[%s0 + $0xca] sm:$0xff]
  %v432 = vld [vmem:[%s0 + $0xda] sm:$0xff]
  %v433 = vld [vmem:[%s0 + $0xe2] sm:$0xff]
  %v434 = vld [vmem:[%s0 + $0xf2] sm:$0xff]
  %v435 = vld [vmem:[%s0 + $0xfa] sm:$0xff]
  %v436 = vld [vmem:[%s0 + $0x10a] sm:$0xff]
  %v437 = vld [vmem:[%s0 + $0x112] sm:$0xff]
  %v438 = vld [vmem:[%s0 + $0x122] sm:$0xff]
  %v439 = vld [vmem:[%s0 + $0x12a] sm:$0xff]
  %v440 = vld [vmem:[%s0 + $0x13a] sm:$0xff]
  %v441 = vld [vmem:[%s0 + $0x142] sm:$0xff]
  %v442 = vld [vmem:[%s0 + $0x152] sm:$0xff]
  %v443 = vld [vmem:[%s0 + $0x15a] sm:$0xff]
  %v444 = vld [vmem:[%s0 + $0x16a] sm:$0xff]
  %v445 = vld [vmem:[%s0 + $0x172] sm:$0xff]
  %v446 = vld [vmem:[%s0 + $0x1b2] sm:$0xff]
  %v447 = vld [vmem:[%s0 + $0x1ba] sm:$0xff]
  %v448 = vld [vmem:[%s0 + $0x1ca] sm:$0xff]
  %v449 = vld [vmem:[%s0 + $0x1d2] sm:$0xff]
  %v450 = vld [vmem:[%s0 + $0x1e2] sm:$0xff]
  %v451 = vld [vmem:[%s0 + $0x1ea] sm:$0xff]
  %v452 = vld [vmem:[%s0 + $0x1fa] sm:$0xff]
  %v453 = vld [vmem:[%s0 + $0x202] sm:$0xff]
  %v454 = vld [vmem:[%s0 + $0x212] sm:$0xff]
  %v455 = vld [vmem:[%s0 + $0x21a] sm:$0xff]
  %v456 = vld [vmem:[%s0 + $0x22a] sm:$0xff]
  %v457 = vld [vmem:[%s0 + $0x232] sm:$0xff]
  %v458 = vld [vmem:[%s0 + $0x242] sm:$0xff]
  %v459 = vld [vmem:[%s0 + $0x24a] sm:$0xff]
  %v460 = vld [vmem:[%s0 + $0x25a] sm:$0xff]
  %v461 = vld [vmem:[%s0 + $0x262] sm:$0xff]
  %v462 = vld [vmem:[%s0 + $0x272] sm:$0xff]
  %v463 = vld [vmem:[%s0 + $0x27a] sm:$0xff]
  %v464 = vld [vmem:[%s0 + $0x28a] sm:$0xff]
  %v465 = vld [vmem:[%s0 + $0x292] sm:$0xff]
  %v466 = vld [vmem:[%s0 + $0x2a2] sm:$0xff]
  %v467 = vld [vmem:[%s0 + $0x2aa] sm:$0xff]
  %v468 = vld [vmem:[%s0 + $0x2ba] sm:$0xff]
  %v469 = vld [vmem:[%s0 + $0x2c2] sm:$0xff]
  %v470 = vld [vmem:[%s0 + $0x2d2] sm:$0xff]
  %v471 = vld [vmem:[%s0 + $0x2da] sm:$0xff]
  %v472 = vld [vmem:[%s0 + $0x2ea] sm:$0xff]
  %v473 = vld [vmem:[%s0 + $0x2f2] sm:$0xff]
  %v474 = vld [vmem:[%s0 + $0x302] sm:$0xff]
  %v475 = vld [vmem:[%s0 + $0x30a] sm:$0xff]
  %v476 = vld [vmem:[%s0 + $0x31a] sm:$0xff]
  %v477 = vld [vmem:[%s0 + $0x322] sm:$0xff]
  %v478 = vperm.slane %v26, 2
  %v479 = vmul.f32 %v414, %v478
  %v480 = vmul.f32 %v415, %v478
  %v481 = vmul.f32 %v416, %v478
  %v482 = vmul.f32 %v417, %v478
  %v483 = vmul.f32 %v418, %v478
  %v484 = vmul.f32 %v419, %v478
  %v485 = vmul.f32 %v420, %v478
  %v486 = vmul.f32 %v421, %v478
  %v487 = vmul.f32 %v422, %v478
  %v488 = vmul.f32 %v423, %v478
  %v489 = vmul.f32 %v424, %v478
  %v490 = vmul.f32 %v425, %v478
  %v491 = vmul.f32 %v426, %v478
  %v492 = vmul.f32 %v427, %v478
  %v493 = vmul.f32 %v428, %v478
  %v494 = vmul.f32 %v429, %v478
  %v495 = vmul.f32 %v430, %v478
  %v496 = vmul.f32 %v431, %v478
  %v497 = vmul.f32 %v432, %v478
  %v498 = vmul.f32 %v433, %v478
  %v499 = vmul.f32 %v434, %v478
  %v500 = vmul.f32 %v435, %v478
  %v501 = vmul.f32 %v436, %v478
  %v502 = vmul.f32 %v437, %v478
  %v503 = vmul.f32 %v438, %v478
  %v504 = vmul.f32 %v439, %v478
  %v505 = vmul.f32 %v440, %v478
  %v506 = vmul.f32 %v441, %v478
  %v507 = vmul.f32 %v442, %v478
  %v508 = vmul.f32 %v443, %v478
  %v509 = vmul.f32 %v444, %v478
  %v510 = vmul.f32 %v445, %v478
  %v511 = vmul.f32 %v446, %v478
  %v512 = vmul.f32 %v447, %v478
  %v513 = vmul.f32 %v448, %v478
  %v514 = vmul.f32 %v449, %v478
  %v515 = vmul.f32 %v450, %v478
  %v516 = vmul.f32 %v451, %v478
  %v517 = vmul.f32 %v452, %v478
  %v518 = vmul.f32 %v453, %v478
  %v519 = vmul.f32 %v454, %v478
  %v520 = vmul.f32 %v455, %v478
  %v521 = vmul.f32 %v456, %v478
  %v522 = vmul.f32 %v457, %v478
  %v523 = vmul.f32 %v458, %v478
  %v524 = vmul.f32 %v459, %v478
  %v525 = vmul.f32 %v460, %v478
  %v526 = vmul.f32 %v461, %v478
  %v527 = vmul.f32 %v462, %v478
  %v528 = vmul.f32 %v463, %v478
  %v529 = vmul.f32 %v464, %v478
  %v530 = vmul.f32 %v465, %v478
  %v531 = vmul.f32 %v466, %v478
  %v532 = vmul.f32 %v467, %v478
  %v533 = vmul.f32 %v468, %v478
  %v534 = vmul.f32 %v469, %v478
  %v535 = vmul.f32 %v470, %v478
  %v536 = vmul.f32 %v471, %v478
  %v537 = vmul.f32 %v472, %v478
  %v538 = vmul.f32 %v473, %v478
  %v539 = vmul.f32 %v474, %v478
  %v540 = vmul.f32 %v475, %v478
  %v541 = vmul.f32 %v476, %v478
  %v542 = vmul.f32 %v477, %v478
  %v543 = vadd.f32 %v350, %v479
  %v544 = vadd.f32 %v351, %v480
  %v545 = vadd.f32 %v352, %v481
  %v546 = vadd.f32 %v353, %v482
  %v547 = vadd.f32 %v354, %v483
  %v548 = vadd.f32 %v355, %v484
  %v549 = vadd.f32 %v356, %v485
  %v550 = vadd.f32 %v357, %v486
  %v551 = vadd.f32 %v358, %v487
  %v552 = vadd.f32 %v359, %v488
  %v553 = vadd.f32 %v360, %v489
  %v554 = vadd.f32 %v361, %v490
  %v555 = vadd.f32 %v362, %v491
  %v556 = vadd.f32 %v363, %v492
  %v557 = vadd.f32 %v364, %v493
  %v558 = vadd.f32 %v365, %v494
  %v559 = vadd.f32 %v366, %v495
  %v560 = vadd.f32 %v367, %v496
  %v561 = vadd.f32 %v368, %v497
  %v562 = vadd.f32 %v369, %v498
  %v563 = vadd.f32 %v370, %v499
  %v564 = vadd.f32 %v371, %v500
  %v565 = vadd.f32 %v372, %v501
  %v566 = vadd.f32 %v373, %v502
  %v567 = vadd.f32 %v374, %v503
  %v568 = vadd.f32 %v375, %v504
  %v569 = vadd.f32 %v376, %v505
  %v570 = vadd.f32 %v377, %v506
  %v571 = vadd.f32 %v378, %v507
  %v572 = vadd.f32 %v379, %v508
  %v573 = vadd.f32 %v380, %v509
  %v574 = vadd.f32 %v381, %v510
  %v575 = vadd.f32 %v382, %v511
  %v576 = vadd.f32 %v383, %v512
  %v577 = vadd.f32 %v384, %v513
  %v578 = vadd.f32 %v385, %v514
  %v579 = vadd.f32 %v386, %v515
  %v580 = vadd.f32 %v387, %v516
  %v581 = vadd.f32 %v388, %v517
  %v582 = vadd.f32 %v389, %v518
  %v583 = vadd.f32 %v390, %v519
  %v584 = vadd.f32 %v391, %v520
  %v585 = vadd.f32 %v392, %v521
  %v586 = vadd.f32 %v393, %v522
  %v587 = vadd.f32 %v394, %v523
  %v588 = vadd.f32 %v395, %v524
  %v589 = vadd.f32 %v396, %v525
  %v590 = vadd.f32 %v397, %v526
  %v591 = vadd.f32 %v398, %v527
  %v592 = vadd.f32 %v399, %v528
  %v593 = vadd.f32 %v400, %v529
  %v594 = vadd.f32 %v401, %v530
  %v595 = vadd.f32 %v402, %v531
  %v596 = vadd.f32 %v403, %v532
  %v597 = vadd.f32 %v404, %v533
  %v598 = vadd.f32 %v405, %v534
  %v599 = vadd.f32 %v406, %v535
  %v600 = vadd.f32 %v407, %v536
  %v601 = vadd.f32 %v408, %v537
  %v602 = vadd.f32 %v409, %v538
  %v603 = vadd.f32 %v410, %v539
  %v604 = vadd.f32 %v411, %v540
  %v605 = vadd.f32 %v412, %v541
  %v606 = vadd.f32 %v413, %v542
  %s607 = scalar_lea.vmem %s0, 24
  %v608 = vld [vmem:[%s607] sm:$0xff]
  %v609 = vld [vmem:[%s607 + $0x8] sm:$0xff]
  %v610 = vld [vmem:[%s607 + $0x18] sm:$0xff]
  %v611 = vld [vmem:[%s607 + $0x20] sm:$0xff]
  %v612 = vld [vmem:[%s607 + $0x30] sm:$0xff]
  %v613 = vld [vmem:[%s607 + $0x38] sm:$0xff]
  %v614 = vld [vmem:[%s607 + $0x48] sm:$0xff]
  %v615 = vld [vmem:[%s607 + $0x50] sm:$0xff]
  %v616 = vld [vmem:[%s607 + $0x60] sm:$0xff]
  %v617 = vld [vmem:[%s607 + $0x68] sm:$0xff]
  %v618 = vld [vmem:[%s607 + $0x78] sm:$0xff]
  %v619 = vld [vmem:[%s607 + $0x80] sm:$0xff]
  %v620 = vld [vmem:[%s607 + $0x90] sm:$0xff]
  %v621 = vld [vmem:[%s607 + $0x98] sm:$0xff]
  %v622 = vld [vmem:[%s607 + $0xa8] sm:$0xff]
  %v623 = vld [vmem:[%s607 + $0xb0] sm:$0xff]
  %v624 = vld [vmem:[%s607 + $0xc0] sm:$0xff]
  %v625 = vld [vmem:[%s607 + $0xc8] sm:$0xff]
  %v626 = vld [vmem:[%s607 + $0xd8] sm:$0xff]
  %v627 = vld [vmem:[%s607 + $0xe0] sm:$0xff]
  %v628 = vld [vmem:[%s607 + $0xf0] sm:$0xff]
  %v629 = vld [vmem:[%s607 + $0xf8] sm:$0xff]
  %v630 = vld [vmem:[%s607 + $0x108] sm:$0xff]
  %v631 = vld [vmem:[%s607 + $0x110] sm:$0xff]
  %v632 = vld [vmem:[%s607 + $0x120] sm:$0xff]
  %v633 = vld [vmem:[%s607 + $0x128] sm:$0xff]
  %v634 = vld [vmem:[%s607 + $0x138] sm:$0xff]
  %v635 = vld [vmem:[%s607 + $0x140] sm:$0xff]
  %v636 = vld [vmem:[%s607 + $0x150] sm:$0xff]
  %v637 = vld [vmem:[%s607 + $0x158] sm:$0xff]
  %v638 = vld [vmem:[%s607 + $0x168] sm:$0xff]
  %v639 = vld [vmem:[%s607 + $0x170] sm:$0xff]
  %v640 = vld [vmem:[%s607 + $0x1b0] sm:$0xff]
  %v641 = vld [vmem:[%s607 + $0x1b8] sm:$0xff]
  %v642 = vld [vmem:[%s607 + $0x1c8] sm:$0xff]
  %v643 = vld [vmem:[%s607 + $0x1d0] sm:$0xff]
  %v644 = vld [vmem:[%s607 + $0x1e0] sm:$0xff]
  %v645 = vld [vmem:[%s607 + $0x1e8] sm:$0xff]
  %v646 = vld [vmem:[%s607 + $0x1f8] sm:$0xff]
  %v647 = vld [vmem:[%s607 + $0x200] sm:$0xff]
  %v648 = vld [vmem:[%s607 + $0x210] sm:$0xff]
  %v649 = vld [vmem:[%s607 + $0x218] sm:$0xff]
  %v650 = vld [vmem:[%s607 + $0x228] sm:$0xff]
  %v651 = vld [vmem:[%s607 + $0x230] sm:$0xff]
  %v652 = vld [vmem:[%s607 + $0x240] sm:$0xff]
  %v653 = vld [vmem:[%s607 + $0x248] sm:$0xff]
  %v654 = vld [vmem:[%s607 + $0x258] sm:$0xff]
  %v655 = vld [vmem:[%s607 + $0x260] sm:$0xff]
  %v656 = vld [vmem:[%s607 + $0x270] sm:$0xff]
  %v657 = vld [vmem:[%s607 + $0x278] sm:$0xff]
  %v658 = vld [vmem:[%s607 + $0x288] sm:$0xff]
  %v659 = vld [vmem:[%s607 + $0x290] sm:$0xff]
  %v660 = vld [vmem:[%s607 + $0x2a0] sm:$0xff]
  %v661 = vld [vmem:[%s607 + $0x2a8] sm:$0xff]
  %v662 = vld [vmem:[%s607 + $0x2b8] sm:$0xff]
  %v663 = vld [vmem:[%s607 + $0x2c0] sm:$0xff]
  %v664 = vld [vmem:[%s607 + $0x2d0] sm:$0xff]
  %v665 = vld [vmem:[%s607 + $0x2d8] sm:$0xff]
  %v666 = vld [vmem:[%s607 + $0x2e8] sm:$0xff]
  %v667 = vld [vmem:[%s607 + $0x2f0] sm:$0xff]
  %v668 = vld [vmem:[%s607 + $0x300] sm:$0xff]
  %v669 = vld [vmem:[%s607 + $0x308] sm:$0xff]
  %v670 = vld [vmem:[%s607 + $0x318] sm:$0xff]
  %v671 = vld [vmem:[%s607 + $0x320] sm:$0xff]
  %v672 = vperm.slane %v26, 3
  %v673 = vmul.f32 %v608, %v672
  %v674 = vmul.f32 %v609, %v672
  %v675 = vmul.f32 %v610, %v672
  %v676 = vmul.f32 %v611, %v672
  %v677 = vmul.f32 %v612, %v672
  %v678 = vmul.f32 %v613, %v672
  %v679 = vmul.f32 %v614, %v672
  %v680 = vmul.f32 %v615, %v672
  %v681 = vmul.f32 %v616, %v672
  %v682 = vmul.f32 %v617, %v672
  %v683 = vmul.f32 %v618, %v672
  %v684 = vmul.f32 %v619, %v672
  %v685 = vmul.f32 %v620, %v672
  %v686 = vmul.f32 %v621, %v672
  %v687 = vmul.f32 %v622, %v672
  %v688 = vmul.f32 %v623, %v672
  %v689 = vmul.f32 %v624, %v672
  %v690 = vmul.f32 %v625, %v672
  %v691 = vmul.f32 %v626, %v672
  %v692 = vmul.f32 %v627, %v672
  %v693 = vmul.f32 %v628, %v672
  %v694 = vmul.f32 %v629, %v672
  %v695 = vmul.f32 %v630, %v672
  %v696 = vmul.f32 %v631, %v672
  %v697 = vmul.f32 %v632, %v672
  %v698 = vmul.f32 %v633, %v672
  %v699 = vmul.f32 %v634, %v672
  %v700 = vmul.f32 %v635, %v672
  %v701 = vmul.f32 %v636, %v672
  %v702 = vmul.f32 %v637, %v672
  %v703 = vmul.f32 %v638, %v672
  %v704 = vmul.f32 %v639, %v672
  %v705 = vmul.f32 %v640, %v672
  %v706 = vmul.f32 %v641, %v672
  %v707 = vmul.f32 %v642, %v672
  %v708 = vmul.f32 %v643, %v672
  %v709 = vmul.f32 %v644, %v672
  %v710 = vmul.f32 %v645, %v672
  %v711 = vmul.f32 %v646, %v672
  %v712 = vmul.f32 %v647, %v672
  %v713 = vmul.f32 %v648, %v672
  %v714 = vmul.f32 %v649, %v672
  %v715 = vmul.f32 %v650, %v672
  %v716 = vmul.f32 %v651, %v672
  %v717 = vmul.f32 %v652, %v672
  %v718 = vmul.f32 %v653, %v672
  %v719 = vmul.f32 %v654, %v672
  %v720 = vmul.f32 %v655, %v672
  %v721 = vmul.f32 %v656, %v672
  %v722 = vmul.f32 %v657, %v672
  %v723 = vmul.f32 %v658, %v672
  %v724 = vmul.f32 %v659, %v672
  %v725 = vmul.f32 %v660, %v672
  %v726 = vmul.f32 %v661, %v672
  %v727 = vmul.f32 %v662, %v672
  %v728 = vmul.f32 %v663, %v672
  %v729 = vmul.f32 %v664, %v672
  %v730 = vmul.f32 %v665, %v672
  %v731 = vmul.f32 %v666, %v672
  %v732 = vmul.f32 %v667, %v672
  %v733 = vmul.f32 %v668, %v672
  %v734 = vmul.f32 %v669, %v672
  %v735 = vmul.f32 %v670, %v672
  %v736 = vmul.f32 %v671, %v672
  %v737 = vadd.f32 %v543, %v673
  %v738 = vadd.f32 %v544, %v674
  %v739 = vadd.f32 %v545, %v675
  %v740 = vadd.f32 %v546, %v676
  %v741 = vadd.f32 %v547, %v677
  %v742 = vadd.f32 %v548, %v678
  %v743 = vadd.f32 %v549, %v679
  %v744 = vadd.f32 %v550, %v680
  %v745 = vadd.f32 %v551, %v681
  %v746 = vadd.f32 %v552, %v682
  %v747 = vadd.f32 %v553, %v683
  %v748 = vadd.f32 %v554, %v684
  %v749 = vadd.f32 %v555, %v685
  %v750 = vadd.f32 %v556, %v686
  %v751 = vadd.f32 %v557, %v687
  %v752 = vadd.f32 %v558, %v688
  %v753 = vadd.f32 %v559, %v689
  %v754 = vadd.f32 %v560, %v690
  %v755 = vadd.f32 %v561, %v691
  %v756 = vadd.f32 %v562, %v692
  %v757 = vadd.f32 %v563, %v693
  %v758 = vadd.f32 %v564, %v694
  %v759 = vadd.f32 %v565, %v695
  %v760 = vadd.f32 %v566, %v696
  %v761 = vadd.f32 %v567, %v697
  %v762 = vadd.f32 %v568, %v698
  %v763 = vadd.f32 %v569, %v699
  %v764 = vadd.f32 %v570, %v700
  %v765 = vadd.f32 %v571, %v701
  %v766 = vadd.f32 %v572, %v702
  %v767 = vadd.f32 %v573, %v703
  %v768 = vadd.f32 %v574, %v704
  %v769 = vadd.f32 %v575, %v705
  %v770 = vadd.f32 %v576, %v706
  %v771 = vadd.f32 %v577, %v707
  %v772 = vadd.f32 %v578, %v708
  %v773 = vadd.f32 %v579, %v709
  %v774 = vadd.f32 %v580, %v710
  %v775 = vadd.f32 %v581, %v711
  %v776 = vadd.f32 %v582, %v712
  %v777 = vadd.f32 %v583, %v713
  %v778 = vadd.f32 %v584, %v714
  %v779 = vadd.f32 %v585, %v715
  %v780 = vadd.f32 %v586, %v716
  %v781 = vadd.f32 %v587, %v717
  %v782 = vadd.f32 %v588, %v718
  %v783 = vadd.f32 %v589, %v719
  %v784 = vadd.f32 %v590, %v720
  %v785 = vadd.f32 %v591, %v721
  %v786 = vadd.f32 %v592, %v722
  %v787 = vadd.f32 %v593, %v723
  %v788 = vadd.f32 %v594, %v724
  %v789 = vadd.f32 %v595, %v725
  %v790 = vadd.f32 %v596, %v726
  %v791 = vadd.f32 %v597, %v727
  %v792 = vadd.f32 %v598, %v728
  %v793 = vadd.f32 %v599, %v729
  %v794 = vadd.f32 %v600, %v730
  %v795 = vadd.f32 %v601, %v731
  %v796 = vadd.f32 %v602, %v732
  %v797 = vadd.f32 %v603, %v733
  %v798 = vadd.f32 %v604, %v734
  %v799 = vadd.f32 %v605, %v735
  %v800 = vadd.f32 %v606, %v736
  %v801 = vld [vmem:[%s607 + $0x1] sm:$0xff]
  %v802 = vld [vmem:[%s607 + $0x9] sm:$0xff]
  %v803 = vld [vmem:[%s607 + $0x19] sm:$0xff]
  %v804 = vld [vmem:[%s607 + $0x21] sm:$0xff]
  %v805 = vld [vmem:[%s607 + $0x31] sm:$0xff]
  %v806 = vld [vmem:[%s607 + $0x39] sm:$0xff]
  %v807 = vld [vmem:[%s607 + $0x49] sm:$0xff]
  %v808 = vld [vmem:[%s607 + $0x51] sm:$0xff]
  %v809 = vld [vmem:[%s607 + $0x61] sm:$0xff]
  %v810 = vld [vmem:[%s607 + $0x69] sm:$0xff]
  %v811 = vld [vmem:[%s607 + $0x79] sm:$0xff]
  %v812 = vld [vmem:[%s607 + $0x81] sm:$0xff]
  %v813 = vld [vmem:[%s607 + $0x91] sm:$0xff]
  %v814 = vld [vmem:[%s607 + $0x99] sm:$0xff]
  %v815 = vld [vmem:[%s607 + $0xa9] sm:$0xff]
  %v816 = vld [vmem:[%s607 + $0xb1] sm:$0xff]
  %v817 = vld [vmem:[%s607 + $0xc1] sm:$0xff]
  %v818 = vld [vmem:[%s607 + $0xc9] sm:$0xff]
  %v819 = vld [vmem:[%s607 + $0xd9] sm:$0xff]
  %v820 = vld [vmem:[%s607 + $0xe1] sm:$0xff]
  %v821 = vld [vmem:[%s607 + $0xf1] sm:$0xff]
  %v822 = vld [vmem:[%s607 + $0xf9] sm:$0xff]
  %v823 = vld [vmem:[%s607 + $0x109] sm:$0xff]
  %v824 = vld [vmem:[%s607 + $0x111] sm:$0xff]
  %v825 = vld [vmem:[%s607 + $0x121] sm:$0xff]
  %v826 = vld [vmem:[%s607 + $0x129] sm:$0xff]
  %v827 = vld [vmem:[%s607 + $0x139] sm:$0xff]
  %v828 = vld [vmem:[%s607 + $0x141] sm:$0xff]
  %v829 = vld [vmem:[%s607 + $0x151] sm:$0xff]
  %v830 = vld [vmem:[%s607 + $0x159] sm:$0xff]
  %v831 = vld [vmem:[%s607 + $0x169] sm:$0xff]
  %v832 = vld [vmem:[%s607 + $0x171] sm:$0xff]
  %v833 = vld [vmem:[%s607 + $0x1b1] sm:$0xff]
  %v834 = vld [vmem:[%s607 + $0x1b9] sm:$0xff]
  %v835 = vld [vmem:[%s607 + $0x1c9] sm:$0xff]
  %v836 = vld [vmem:[%s607 + $0x1d1] sm:$0xff]
  %v837 = vld [vmem:[%s607 + $0x1e1] sm:$0xff]
  %v838 = vld [vmem:[%s607 + $0x1e9] sm:$0xff]
  %v839 = vld [vmem:[%s607 + $0x1f9] sm:$0xff]
  %v840 = vld [vmem:[%s607 + $0x201] sm:$0xff]
  %v841 = vld [vmem:[%s607 + $0x211] sm:$0xff]
  %v842 = vld [vmem:[%s607 + $0x219] sm:$0xff]
  %v843 = vld [vmem:[%s607 + $0x229] sm:$0xff]
  %v844 = vld [vmem:[%s607 + $0x231] sm:$0xff]
  %v845 = vld [vmem:[%s607 + $0x241] sm:$0xff]
  %v846 = vld [vmem:[%s607 + $0x249] sm:$0xff]
  %v847 = vld [vmem:[%s607 + $0x259] sm:$0xff]
  %v848 = vld [vmem:[%s607 + $0x261] sm:$0xff]
  %v849 = vld [vmem:[%s607 + $0x271] sm:$0xff]
  %v850 = vld [vmem:[%s607 + $0x279] sm:$0xff]
  %v851 = vld [vmem:[%s607 + $0x289] sm:$0xff]
  %v852 = vld [vmem:[%s607 + $0x291] sm:$0xff]
  %v853 = vld [vmem:[%s607 + $0x2a1] sm:$0xff]
  %v854 = vld [vmem:[%s607 + $0x2a9] sm:$0xff]
  %v855 = vld [vmem:[%s607 + $0x2b9] sm:$0xff]
  %v856 = vld [vmem:[%s607 + $0x2c1] sm:$0xff]
  %v857 = vld [vmem:[%s607 + $0x2d1] sm:$0xff]
  %v858 = vld [vmem:[%s607 + $0x2d9] sm:$0xff]
  %v859 = vld [vmem:[%s607 + $0x2e9] sm:$0xff]
  %v860 = vld [vmem:[%s607 + $0x2f1] sm:$0xff]
  %v861 = vld [vmem:[%s607 + $0x301] sm:$0xff]
  %v862 = vld [vmem:[%s607 + $0x309] sm:$0xff]
  %v863 = vld [vmem:[%s607 + $0x319] sm:$0xff]
  %v864 = vld [vmem:[%s607 + $0x321] sm:$0xff]
  %v865 = vperm.slane %v26, 4
  %v866 = vmul.f32 %v801, %v865
  %v867 = vmul.f32 %v802, %v865
  %v868 = vmul.f32 %v803, %v865
  %v869 = vmul.f32 %v804, %v865
  %v870 = vmul.f32 %v805, %v865
  %v871 = vmul.f32 %v806, %v865
  %v872 = vmul.f32 %v807, %v865
  %v873 = vmul.f32 %v808, %v865
  %v874 = vmul.f32 %v809, %v865
  %v875 = vmul.f32 %v810, %v865
  %v876 = vmul.f32 %v811, %v865
  %v877 = vmul.f32 %v812, %v865
  %v878 = vmul.f32 %v813, %v865
  %v879 = vmul.f32 %v814, %v865
  %v880 = vmul.f32 %v815, %v865
  %v881 = vmul.f32 %v816, %v865
  %v882 = vmul.f32 %v817, %v865
  %v883 = vmul.f32 %v818, %v865
  %v884 = vmul.f32 %v819, %v865
  %v885 = vmul.f32 %v820, %v865
  %v886 = vmul.f32 %v821, %v865
  %v887 = vmul.f32 %v822, %v865
  %v888 = vmul.f32 %v823, %v865
  %v889 = vmul.f32 %v824, %v865
  %v890 = vmul.f32 %v825, %v865
  %v891 = vmul.f32 %v826, %v865
  %v892 = vmul.f32 %v827, %v865
  %v893 = vmul.f32 %v828, %v865
  %v894 = vmul.f32 %v829, %v865
  %v895 = vmul.f32 %v830, %v865
  %v896 = vmul.f32 %v831, %v865
  %v897 = vmul.f32 %v832, %v865
  %v898 = vmul.f32 %v833, %v865
  %v899 = vmul.f32 %v834, %v865
  %v900 = vmul.f32 %v835, %v865
  %v901 = vmul.f32 %v836, %v865
  %v902 = vmul.f32 %v837, %v865
  %v903 = vmul.f32 %v838, %v865
  %v904 = vmul.f32 %v839, %v865
  %v905 = vmul.f32 %v840, %v865
  %v906 = vmul.f32 %v841, %v865
  %v907 = vmul.f32 %v842, %v865
  %v908 = vmul.f32 %v843, %v865
  %v909 = vmul.f32 %v844, %v865
  %v910 = vmul.f32 %v845, %v865
  %v911 = vmul.f32 %v846, %v865
  %v912 = vmul.f32 %v847, %v865
  %v913 = vmul.f32 %v848, %v865
  %v914 = vmul.f32 %v849, %v865
  %v915 = vmul.f32 %v850, %v865
  %v916 = vmul.f32 %v851, %v865
  %v917 = vmul.f32 %v852, %v865
  %v918 = vmul.f32 %v853, %v865
  %v919 = vmul.f32 %v854, %v865
  %v920 = vmul.f32 %v855, %v865
  %v921 = vmul.f32 %v856, %v865
  %v922 = vmul.f32 %v857, %v865
  %v923 = vmul.f32 %v858, %v865
  %v924 = vmul.f32 %v859, %v865
  %v925 = vmul.f32 %v860, %v865
  %v926 = vmul.f32 %v861, %v865
  %v927 = vmul.f32 %v862, %v865
  %v928 = vmul.f32 %v863, %v865
  %v929 = vmul.f32 %v864, %v865
  %v930 = vadd.f32 %v737, %v866
  %v931 = vadd.f32 %v738, %v867
  %v932 = vadd.f32 %v739, %v868
  %v933 = vadd.f32 %v740, %v869
  %v934 = vadd.f32 %v741, %v870
  %v935 = vadd.f32 %v742, %v871
  %v936 = vadd.f32 %v743, %v872
  %v937 = vadd.f32 %v744, %v873
  %v938 = vadd.f32 %v745, %v874
  %v939 = vadd.f32 %v746, %v875
  %v940 = vadd.f32 %v747, %v876
  %v941 = vadd.f32 %v748, %v877
  %v942 = vadd.f32 %v749, %v878
  %v943 = vadd.f32 %v750, %v879
  %v944 = vadd.f32 %v751, %v880
  %v945 = vadd.f32 %v752, %v881
  %v946 = vadd.f32 %v753, %v882
  %v947 = vadd.f32 %v754, %v883
  %v948 = vadd.f32 %v755, %v884
  %v949 = vadd.f32 %v756, %v885
  %v950 = vadd.f32 %v757, %v886
  %v951 = vadd.f32 %v758, %v887
  %v952 = vadd.f32 %v759, %v888
  %v953 = vadd.f32 %v760, %v889
  %v954 = vadd.f32 %v761, %v890
  %v955 = vadd.f32 %v762, %v891
  %v956 = vadd.f32 %v763, %v892
  %v957 = vadd.f32 %v764, %v893
  %v958 = vadd.f32 %v765, %v894
  %v959 = vadd.f32 %v766, %v895
  %v960 = vadd.f32 %v767, %v896
  %v961 = vadd.f32 %v768, %v897
  %v962 = vadd.f32 %v769, %v898
  %v963 = vadd.f32 %v770, %v899
  %v964 = vadd.f32 %v771, %v900
  %v965 = vadd.f32 %v772, %v901
  %v966 = vadd.f32 %v773, %v902
  %v967 = vadd.f32 %v774, %v903
  %v968 = vadd.f32 %v775, %v904
  %v969 = vadd.f32 %v776, %v905
  %v970 = vadd.f32 %v777, %v906
  %v971 = vadd.f32 %v778, %v907
  %v972 = vadd.f32 %v779, %v908
  %v973 = vadd.f32 %v780, %v909
  %v974 = vadd.f32 %v781, %v910
  %v975 = vadd.f32 %v782, %v911
  %v976 = vadd.f32 %v783, %v912
  %v977 = vadd.f32 %v784, %v913
  %v978 = vadd.f32 %v785, %v914
  %v979 = vadd.f32 %v786, %v915
  %v980 = vadd.f32 %v787, %v916
  %v981 = vadd.f32 %v788, %v917
  %v982 = vadd.f32 %v789, %v918
  %v983 = vadd.f32 %v790, %v919
  %v984 = vadd.f32 %v791, %v920
  %v985 = vadd.f32 %v792, %v921
  %v986 = vadd.f32 %v793, %v922
  %v987 = vadd.f32 %v794, %v923
  %v988 = vadd.f32 %v795, %v924
  %v989 = vadd.f32 %v796, %v925
  %v990 = vadd.f32 %v797, %v926
  %v991 = vadd.f32 %v798, %v927
  %v992 = vadd.f32 %v799, %v928
  %v993 = vadd.f32 %v800, %v929
  %v994 = vld [vmem:[%s607 + $0x2] sm:$0xff]
  %v995 = vld [vmem:[%s607 + $0xa] sm:$0xff]
  %v996 = vld [vmem:[%s607 + $0x1a] sm:$0xff]
  %v997 = vld [vmem:[%s607 + $0x22] sm:$0xff]
  %v998 = vld [vmem:[%s607 + $0x32] sm:$0xff]
  %v999 = vld [vmem:[%s607 + $0x3a] sm:$0xff]
  %v1000 = vld [vmem:[%s607 + $0x4a] sm:$0xff]
  %v1001 = vld [vmem:[%s607 + $0x52] sm:$0xff]
  %v1002 = vld [vmem:[%s607 + $0x62] sm:$0xff]
  %v1003 = vld [vmem:[%s607 + $0x6a] sm:$0xff]
  %v1004 = vld [vmem:[%s607 + $0x7a] sm:$0xff]
  %v1005 = vld [vmem:[%s607 + $0x82] sm:$0xff]
  %v1006 = vld [vmem:[%s607 + $0x92] sm:$0xff]
  %v1007 = vld [vmem:[%s607 + $0x9a] sm:$0xff]
  %v1008 = vld [vmem:[%s607 + $0xaa] sm:$0xff]
  %v1009 = vld [vmem:[%s607 + $0xb2] sm:$0xff]
  %v1010 = vld [vmem:[%s607 + $0xc2] sm:$0xff]
  %v1011 = vld [vmem:[%s607 + $0xca] sm:$0xff]
  %v1012 = vld [vmem:[%s607 + $0xda] sm:$0xff]
  %v1013 = vld [vmem:[%s607 + $0xe2] sm:$0xff]
  %v1014 = vld [vmem:[%s607 + $0xf2] sm:$0xff]
  %v1015 = vld [vmem:[%s607 + $0xfa] sm:$0xff]
  %v1016 = vld [vmem:[%s607 + $0x10a] sm:$0xff]
  %v1017 = vld [vmem:[%s607 + $0x112] sm:$0xff]
  %v1018 = vld [vmem:[%s607 + $0x122] sm:$0xff]
  %v1019 = vld [vmem:[%s607 + $0x12a] sm:$0xff]
  %v1020 = vld [vmem:[%s607 + $0x13a] sm:$0xff]
  %v1021 = vld [vmem:[%s607 + $0x142] sm:$0xff]
  %v1022 = vld [vmem:[%s607 + $0x152] sm:$0xff]
  %v1023 = vld [vmem:[%s607 + $0x15a] sm:$0xff]
  %v1024 = vld [vmem:[%s607 + $0x16a] sm:$0xff]
  %v1025 = vld [vmem:[%s607 + $0x172] sm:$0xff]
  %v1026 = vld [vmem:[%s607 + $0x1b2] sm:$0xff]
  %v1027 = vld [vmem:[%s607 + $0x1ba] sm:$0xff]
  %v1028 = vld [vmem:[%s607 + $0x1ca] sm:$0xff]
  %v1029 = vld [vmem:[%s607 + $0x1d2] sm:$0xff]
  %v1030 = vld [vmem:[%s607 + $0x1e2] sm:$0xff]
  %v1031 = vld [vmem:[%s607 + $0x1ea] sm:$0xff]
  %v1032 = vld [vmem:[%s607 + $0x1fa] sm:$0xff]
  %v1033 = vld [vmem:[%s607 + $0x202] sm:$0xff]
  %v1034 = vld [vmem:[%s607 + $0x212] sm:$0xff]
  %v1035 = vld [vmem:[%s607 + $0x21a] sm:$0xff]
  %v1036 = vld [vmem:[%s607 + $0x22a] sm:$0xff]
  %v1037 = vld [vmem:[%s607 + $0x232] sm:$0xff]
  %v1038 = vld [vmem:[%s607 + $0x242] sm:$0xff]
  %v1039 = vld [vmem:[%s607 + $0x24a] sm:$0xff]
  %v1040 = vld [vmem:[%s607 + $0x25a] sm:$0xff]
  %v1041 = vld [vmem:[%s607 + $0x262] sm:$0xff]
  %v1042 = vld [vmem:[%s607 + $0x272] sm:$0xff]
  %v1043 = vld [vmem:[%s607 + $0x27a] sm:$0xff]
  %v1044 = vld [vmem:[%s607 + $0x28a] sm:$0xff]
  %v1045 = vld [vmem:[%s607 + $0x292] sm:$0xff]
  %v1046 = vld [vmem:[%s607 + $0x2a2] sm:$0xff]
  %v1047 = vld [vmem:[%s607 + $0x2aa] sm:$0xff]
  %v1048 = vld [vmem:[%s607 + $0x2ba] sm:$0xff]
  %v1049 = vld [vmem:[%s607 + $0x2c2] sm:$0xff]
  %v1050 = vld [vmem:[%s607 + $0x2d2] sm:$0xff]
  %v1051 = vld [vmem:[%s607 + $0x2da] sm:$0xff]
  %v1052 = vld [vmem:[%s607 + $0x2ea] sm:$0xff]
  %v1053 = vld [vmem:[%s607 + $0x2f2] sm:$0xff]
  %v1054 = vld [vmem:[%s607 + $0x302] sm:$0xff]
  %v1055 = vld [vmem:[%s607 + $0x30a] sm:$0xff]
  %v1056 = vld [vmem:[%s607 + $0x31a] sm:$0xff]
  %v1057 = vld [vmem:[%s607 + $0x322] sm:$0xff]
  %v1058 = vperm.slane %v26, 5
  %v1059 = vmul.f32 %v994, %v1058
  %v1060 = vmul.f32 %v995, %v1058
  %v1061 = vmul.f32 %v996, %v1058
  %v1062 = vmul.f32 %v997, %v1058
  %v1063 = vmul.f32 %v998, %v1058
  %v1064 = vmul.f32 %v999, %v1058
  %v1065 = vmul.f32 %v1000, %v1058
  %v1066 = vmul.f32 %v1001, %v1058
  %v1067 = vmul.f32 %v1002, %v1058
  %v1068 = vmul.f32 %v1003, %v1058
  %v1069 = vmul.f32 %v1004, %v1058
  %v1070 = vmul.f32 %v1005, %v1058
  %v1071 = vmul.f32 %v1006, %v1058
  %v1072 = vmul.f32 %v1007, %v1058
  %v1073 = vmul.f32 %v1008, %v1058
  %v1074 = vmul.f32 %v1009, %v1058
  %v1075 = vmul.f32 %v1010, %v1058
  %v1076 = vmul.f32 %v1011, %v1058
  %v1077 = vmul.f32 %v1012, %v1058
  %v1078 = vmul.f32 %v1013, %v1058
  %v1079 = vmul.f32 %v1014, %v1058
  %v1080 = vmul.f32 %v1015, %v1058
  %v1081 = vmul.f32 %v1016, %v1058
  %v1082 = vmul.f32 %v1017, %v1058
  %v1083 = vmul.f32 %v1018, %v1058
  %v1084 = vmul.f32 %v1019, %v1058
  %v1085 = vmul.f32 %v1020, %v1058
  %v1086 = vmul.f32 %v1021, %v1058
  %v1087 = vmul.f32 %v1022, %v1058
  %v1088 = vmul.f32 %v1023, %v1058
  %v1089 = vmul.f32 %v1024, %v1058
  %v1090 = vmul.f32 %v1025, %v1058
  %v1091 = vmul.f32 %v1026, %v1058
  %v1092 = vmul.f32 %v1027, %v1058
  %v1093 = vmul.f32 %v1028, %v1058
  %v1094 = vmul.f32 %v1029, %v1058
  %v1095 = vmul.f32 %v1030, %v1058
  %v1096 = vmul.f32 %v1031, %v1058
  %v1097 = vmul.f32 %v1032, %v1058
  %v1098 = vmul.f32 %v1033, %v1058
  %v1099 = vmul.f32 %v1034, %v1058
  %v1100 = vmul.f32 %v1035, %v1058
  %v1101 = vmul.f32 %v1036, %v1058
  %v1102 = vmul.f32 %v1037, %v1058
  %v1103 = vmul.f32 %v1038, %v1058
  %v1104 = vmul.f32 %v1039, %v1058
  %v1105 = vmul.f32 %v1040, %v1058
  %v1106 = vmul.f32 %v1041, %v1058
  %v1107 = vmul.f32 %v1042, %v1058
  %v1108 = vmul.f32 %v1043, %v1058
  %v1109 = vmul.f32 %v1044, %v1058
  %v1110 = vmul.f32 %v1045, %v1058
  %v1111 = vmul.f32 %v1046, %v1058
  %v1112 = vmul.f32 %v1047, %v1058
  %v1113 = vmul.f32 %v1048, %v1058
  %v1114 = vmul.f32 %v1049, %v1058
  %v1115 = vmul.f32 %v1050, %v1058
  %v1116 = vmul.f32 %v1051, %v1058
  %v1117 = vmul.f32 %v1052, %v1058
  %v1118 = vmul.f32 %v1053, %v1058
  %v1119 = vmul.f32 %v1054, %v1058
  %v1120 = vmul.f32 %v1055, %v1058
  %v1121 = vmul.f32 %v1056, %v1058
  %v1122 = vmul.f32 %v1057, %v1058
  %v1123 = vadd.f32 %v930, %v1059
  %v1124 = vadd.f32 %v931, %v1060
  %v1125 = vadd.f32 %v932, %v1061
  %v1126 = vadd.f32 %v933, %v1062
  %v1127 = vadd.f32 %v934, %v1063
  %v1128 = vadd.f32 %v935, %v1064
  %v1129 = vadd.f32 %v936, %v1065
  %v1130 = vadd.f32 %v937, %v1066
  %v1131 = vadd.f32 %v938, %v1067
  %v1132 = vadd.f32 %v939, %v1068
  %v1133 = vadd.f32 %v940, %v1069
  %v1134 = vadd.f32 %v941, %v1070
  %v1135 = vadd.f32 %v942, %v1071
  %v1136 = vadd.f32 %v943, %v1072
  %v1137 = vadd.f32 %v944, %v1073
  %v1138 = vadd.f32 %v945, %v1074
  %v1139 = vadd.f32 %v946, %v1075
  %v1140 = vadd.f32 %v947, %v1076
  %v1141 = vadd.f32 %v948, %v1077
  %v1142 = vadd.f32 %v949, %v1078
  %v1143 = vadd.f32 %v950, %v1079
  %v1144 = vadd.f32 %v951, %v1080
  %v1145 = vadd.f32 %v952, %v1081
  %v1146 = vadd.f32 %v953, %v1082
  %v1147 = vadd.f32 %v954, %v1083
  %v1148 = vadd.f32 %v955, %v1084
  %v1149 = vadd.f32 %v956, %v1085
  %v1150 = vadd.f32 %v957, %v1086
  %v1151 = vadd.f32 %v958, %v1087
  %v1152 = vadd.f32 %v959, %v1088
  %v1153 = vadd.f32 %v960, %v1089
  %v1154 = vadd.f32 %v961, %v1090
  %v1155 = vadd.f32 %v962, %v1091
  %v1156 = vadd.f32 %v963, %v1092
  %v1157 = vadd.f32 %v964, %v1093
  %v1158 = vadd.f32 %v965, %v1094
  %v1159 = vadd.f32 %v966, %v1095
  %v1160 = vadd.f32 %v967, %v1096
  %v1161 = vadd.f32 %v968, %v1097
  %v1162 = vadd.f32 %v969, %v1098
  %v1163 = vadd.f32 %v970, %v1099
  %v1164 = vadd.f32 %v971, %v1100
  %v1165 = vadd.f32 %v972, %v1101
  %v1166 = vadd.f32 %v973, %v1102
  %v1167 = vadd.f32 %v974, %v1103
  %v1168 = vadd.f32 %v975, %v1104
  %v1169 = vadd.f32 %v976, %v1105
  %v1170 = vadd.f32 %v977, %v1106
  %v1171 = vadd.f32 %v978, %v1107
  %v1172 = vadd.f32 %v979, %v1108
  %v1173 = vadd.f32 %v980, %v1109
  %v1174 = vadd.f32 %v981, %v1110
  %v1175 = vadd.f32 %v982, %v1111
  %v1176 = vadd.f32 %v983, %v1112
  %v1177 = vadd.f32 %v984, %v1113
  %v1178 = vadd.f32 %v985, %v1114
  %v1179 = vadd.f32 %v986, %v1115
  %v1180 = vadd.f32 %v987, %v1116
  %v1181 = vadd.f32 %v988, %v1117
  %v1182 = vadd.f32 %v989, %v1118
  %v1183 = vadd.f32 %v990, %v1119
  %v1184 = vadd.f32 %v991, %v1120
  %v1185 = vadd.f32 %v992, %v1121
  %v1186 = vadd.f32 %v993, %v1122
  %s1187 = scalar_lea.vmem %s0, 48
  %v1188 = vld [vmem:[%s1187] sm:$0xff]
  %v1189 = vld [vmem:[%s1187 + $0x8] sm:$0xff]
  %v1190 = vld [vmem:[%s1187 + $0x18] sm:$0xff]
  %v1191 = vld [vmem:[%s1187 + $0x20] sm:$0xff]
  %v1192 = vld [vmem:[%s1187 + $0x30] sm:$0xff]
  %v1193 = vld [vmem:[%s1187 + $0x38] sm:$0xff]
  %v1194 = vld [vmem:[%s1187 + $0x48] sm:$0xff]
  %v1195 = vld [vmem:[%s1187 + $0x50] sm:$0xff]
  %v1196 = vld [vmem:[%s1187 + $0x60] sm:$0xff]
  %v1197 = vld [vmem:[%s1187 + $0x68] sm:$0xff]
  %v1198 = vld [vmem:[%s1187 + $0x78] sm:$0xff]
  %v1199 = vld [vmem:[%s1187 + $0x80] sm:$0xff]
  %v1200 = vld [vmem:[%s1187 + $0x90] sm:$0xff]
  %v1201 = vld [vmem:[%s1187 + $0x98] sm:$0xff]
  %v1202 = vld [vmem:[%s1187 + $0xa8] sm:$0xff]
  %v1203 = vld [vmem:[%s1187 + $0xb0] sm:$0xff]
  %v1204 = vld [vmem:[%s1187 + $0xc0] sm:$0xff]
  %v1205 = vld [vmem:[%s1187 + $0xc8] sm:$0xff]
  %v1206 = vld [vmem:[%s1187 + $0xd8] sm:$0xff]
  %v1207 = vld [vmem:[%s1187 + $0xe0] sm:$0xff]
  %v1208 = vld [vmem:[%s1187 + $0xf0] sm:$0xff]
  %v1209 = vld [vmem:[%s1187 + $0xf8] sm:$0xff]
  %v1210 = vld [vmem:[%s1187 + $0x108] sm:$0xff]
  %v1211 = vld [vmem:[%s1187 + $0x110] sm:$0xff]
  %v1212 = vld [vmem:[%s1187 + $0x120] sm:$0xff]
  %v1213 = vld [vmem:[%s1187 + $0x128] sm:$0xff]
  %v1214 = vld [vmem:[%s1187 + $0x138] sm:$0xff]
  %v1215 = vld [vmem:[%s1187 + $0x140] sm:$0xff]
  %v1216 = vld [vmem:[%s1187 + $0x150] sm:$0xff]
  %v1217 = vld [vmem:[%s1187 + $0x158] sm:$0xff]
  %v1218 = vld [vmem:[%s1187 + $0x168] sm:$0xff]
  %v1219 = vld [vmem:[%s1187 + $0x170] sm:$0xff]
  %v1220 = vld [vmem:[%s1187 + $0x1b0] sm:$0xff]
  %v1221 = vld [vmem:[%s1187 + $0x1b8] sm:$0xff]
  %v1222 = vld [vmem:[%s1187 + $0x1c8] sm:$0xff]
  %v1223 = vld [vmem:[%s1187 + $0x1d0] sm:$0xff]
  %v1224 = vld [vmem:[%s1187 + $0x1e0] sm:$0xff]
  %v1225 = vld [vmem:[%s1187 + $0x1e8] sm:$0xff]
  %v1226 = vld [vmem:[%s1187 + $0x1f8] sm:$0xff]
  %v1227 = vld [vmem:[%s1187 + $0x200] sm:$0xff]
  %v1228 = vld [vmem:[%s1187 + $0x210] sm:$0xff]
  %v1229 = vld [vmem:[%s1187 + $0x218] sm:$0xff]
  %v1230 = vld [vmem:[%s1187 + $0x228] sm:$0xff]
  %v1231 = vld [vmem:[%s1187 + $0x230] sm:$0xff]
  %v1232 = vld [vmem:[%s1187 + $0x240] sm:$0xff]
  %v1233 = vld [vmem:[%s1187 + $0x248] sm:$0xff]
  %v1234 = vld [vmem:[%s1187 + $0x258] sm:$0xff]
  %v1235 = vld [vmem:[%s1187 + $0x260] sm:$0xff]
  %v1236 = vld [vmem:[%s1187 + $0x270] sm:$0xff]
  %v1237 = vld [vmem:[%s1187 + $0x278] sm:$0xff]
  %v1238 = vld [vmem:[%s1187 + $0x288] sm:$0xff]
  %v1239 = vld [vmem:[%s1187 + $0x290] sm:$0xff]
  %v1240 = vld [vmem:[%s1187 + $0x2a0] sm:$0xff]
  %v1241 = vld [vmem:[%s1187 + $0x2a8] sm:$0xff]
  %v1242 = vld [vmem:[%s1187 + $0x2b8] sm:$0xff]
  %v1243 = vld [vmem:[%s1187 + $0x2c0] sm:$0xff]
  %v1244 = vld [vmem:[%s1187 + $0x2d0] sm:$0xff]
  %v1245 = vld [vmem:[%s1187 + $0x2d8] sm:$0xff]
  %v1246 = vld [vmem:[%s1187 + $0x2e8] sm:$0xff]
  %v1247 = vld [vmem:[%s1187 + $0x2f0] sm:$0xff]
  %v1248 = vld [vmem:[%s1187 + $0x300] sm:$0xff]
  %v1249 = vld [vmem:[%s1187 + $0x308] sm:$0xff]
  %v1250 = vld [vmem:[%s1187 + $0x318] sm:$0xff]
  %v1251 = vld [vmem:[%s1187 + $0x320] sm:$0xff]
  %v1252 = vperm.slane %v26, 6
  %v1253 = vmul.f32 %v1188, %v1252
  %v1254 = vmul.f32 %v1189, %v1252
  %v1255 = vmul.f32 %v1190, %v1252
  %v1256 = vmul.f32 %v1191, %v1252
  %v1257 = vmul.f32 %v1192, %v1252
  %v1258 = vmul.f32 %v1193, %v1252
  %v1259 = vmul.f32 %v1194, %v1252
  %v1260 = vmul.f32 %v1195, %v1252
  %v1261 = vmul.f32 %v1196, %v1252
  %v1262 = vmul.f32 %v1197, %v1252
  %v1263 = vmul.f32 %v1198, %v1252
  %v1264 = vmul.f32 %v1199, %v1252
  %v1265 = vmul.f32 %v1200, %v1252
  %v1266 = vmul.f32 %v1201, %v1252
  %v1267 = vmul.f32 %v1202, %v1252
  %v1268 = vmul.f32 %v1203, %v1252
  %v1269 = vmul.f32 %v1204, %v1252
  %v1270 = vmul.f32 %v1205, %v1252
  %v1271 = vmul.f32 %v1206, %v1252
  %v1272 = vmul.f32 %v1207, %v1252
  %v1273 = vmul.f32 %v1208, %v1252
  %v1274 = vmul.f32 %v1209, %v1252
  %v1275 = vmul.f32 %v1210, %v1252
  %v1276 = vmul.f32 %v1211, %v1252
  %v1277 = vmul.f32 %v1212, %v1252
  %v1278 = vmul.f32 %v1213, %v1252
  %v1279 = vmul.f32 %v1214, %v1252
  %v1280 = vmul.f32 %v1215, %v1252
  %v1281 = vmul.f32 %v1216, %v1252
  %v1282 = vmul.f32 %v1217, %v1252
  %v1283 = vmul.f32 %v1218, %v1252
  %v1284 = vmul.f32 %v1219, %v1252
  %v1285 = vmul.f32 %v1220, %v1252
  %v1286 = vmul.f32 %v1221, %v1252
  %v1287 = vmul.f32 %v1222, %v1252
  %v1288 = vmul.f32 %v1223, %v1252
  %v1289 = vmul.f32 %v1224, %v1252
  %v1290 = vmul.f32 %v1225, %v1252
  %v1291 = vmul.f32 %v1226, %v1252
  %v1292 = vmul.f32 %v1227, %v1252
  %v1293 = vmul.f32 %v1228, %v1252
  %v1294 = vmul.f32 %v1229, %v1252
  %v1295 = vmul.f32 %v1230, %v1252
  %v1296 = vmul.f32 %v1231, %v1252
  %v1297 = vmul.f32 %v1232, %v1252
  %v1298 = vmul.f32 %v1233, %v1252
  %v1299 = vmul.f32 %v1234, %v1252
  %v1300 = vmul.f32 %v1235, %v1252
  %v1301 = vmul.f32 %v1236, %v1252
  %v1302 = vmul.f32 %v1237, %v1252
  %v1303 = vmul.f32 %v1238, %v1252
  %v1304 = vmul.f32 %v1239, %v1252
  %v1305 = vmul.f32 %v1240, %v1252
  %v1306 = vmul.f32 %v1241, %v1252
  %v1307 = vmul.f32 %v1242, %v1252
  %v1308 = vmul.f32 %v1243, %v1252
  %v1309 = vmul.f32 %v1244, %v1252
  %v1310 = vmul.f32 %v1245, %v1252
  %v1311 = vmul.f32 %v1246, %v1252
  %v1312 = vmul.f32 %v1247, %v1252
  %v1313 = vmul.f32 %v1248, %v1252
  %v1314 = vmul.f32 %v1249, %v1252
  %v1315 = vmul.f32 %v1250, %v1252
  %v1316 = vmul.f32 %v1251, %v1252
  %v1317 = vadd.f32 %v1123, %v1253
  %v1318 = vadd.f32 %v1124, %v1254
  %v1319 = vadd.f32 %v1125, %v1255
  %v1320 = vadd.f32 %v1126, %v1256
  %v1321 = vadd.f32 %v1127, %v1257
  %v1322 = vadd.f32 %v1128, %v1258
  %v1323 = vadd.f32 %v1129, %v1259
  %v1324 = vadd.f32 %v1130, %v1260
  %v1325 = vadd.f32 %v1131, %v1261
  %v1326 = vadd.f32 %v1132, %v1262
  %v1327 = vadd.f32 %v1133, %v1263
  %v1328 = vadd.f32 %v1134, %v1264
  %v1329 = vadd.f32 %v1135, %v1265
  %v1330 = vadd.f32 %v1136, %v1266
  %v1331 = vadd.f32 %v1137, %v1267
  %v1332 = vadd.f32 %v1138, %v1268
  %v1333 = vadd.f32 %v1139, %v1269
  %v1334 = vadd.f32 %v1140, %v1270
  %v1335 = vadd.f32 %v1141, %v1271
  %v1336 = vadd.f32 %v1142, %v1272
  %v1337 = vadd.f32 %v1143, %v1273
  %v1338 = vadd.f32 %v1144, %v1274
  %v1339 = vadd.f32 %v1145, %v1275
  %v1340 = vadd.f32 %v1146, %v1276
  %v1341 = vadd.f32 %v1147, %v1277
  %v1342 = vadd.f32 %v1148, %v1278
  %v1343 = vadd.f32 %v1149, %v1279
  %v1344 = vadd.f32 %v1150, %v1280
  %v1345 = vadd.f32 %v1151, %v1281
  %v1346 = vadd.f32 %v1152, %v1282
  %v1347 = vadd.f32 %v1153, %v1283
  %v1348 = vadd.f32 %v1154, %v1284
  %v1349 = vadd.f32 %v1155, %v1285
  %v1350 = vadd.f32 %v1156, %v1286
  %v1351 = vadd.f32 %v1157, %v1287
  %v1352 = vadd.f32 %v1158, %v1288
  %v1353 = vadd.f32 %v1159, %v1289
  %v1354 = vadd.f32 %v1160, %v1290
  %v1355 = vadd.f32 %v1161, %v1291
  %v1356 = vadd.f32 %v1162, %v1292
  %v1357 = vadd.f32 %v1163, %v1293
  %v1358 = vadd.f32 %v1164, %v1294
  %v1359 = vadd.f32 %v1165, %v1295
  %v1360 = vadd.f32 %v1166, %v1296
  %v1361 = vadd.f32 %v1167, %v1297
  %v1362 = vadd.f32 %v1168, %v1298
  %v1363 = vadd.f32 %v1169, %v1299
  %v1364 = vadd.f32 %v1170, %v1300
  %v1365 = vadd.f32 %v1171, %v1301
  %v1366 = vadd.f32 %v1172, %v1302
  %v1367 = vadd.f32 %v1173, %v1303
  %v1368 = vadd.f32 %v1174, %v1304
  %v1369 = vadd.f32 %v1175, %v1305
  %v1370 = vadd.f32 %v1176, %v1306
  %v1371 = vadd.f32 %v1177, %v1307
  %v1372 = vadd.f32 %v1178, %v1308
  %v1373 = vadd.f32 %v1179, %v1309
  %v1374 = vadd.f32 %v1180, %v1310
  %v1375 = vadd.f32 %v1181, %v1311
  %v1376 = vadd.f32 %v1182, %v1312
  %v1377 = vadd.f32 %v1183, %v1313
  %v1378 = vadd.f32 %v1184, %v1314
  %v1379 = vadd.f32 %v1185, %v1315
  %v1380 = vadd.f32 %v1186, %v1316
  %v1381 = vld [vmem:[%s1187 + $0x1] sm:$0xff]
  %v1382 = vld [vmem:[%s1187 + $0x9] sm:$0xff]
  %v1383 = vld [vmem:[%s1187 + $0x19] sm:$0xff]
  %v1384 = vld [vmem:[%s1187 + $0x21] sm:$0xff]
  %v1385 = vld [vmem:[%s1187 + $0x31] sm:$0xff]
  %v1386 = vld [vmem:[%s1187 + $0x39] sm:$0xff]
  %v1387 = vld [vmem:[%s1187 + $0x49] sm:$0xff]
  %v1388 = vld [vmem:[%s1187 + $0x51] sm:$0xff]
  %v1389 = vld [vmem:[%s1187 + $0x61] sm:$0xff]
  %v1390 = vld [vmem:[%s1187 + $0x69] sm:$0xff]
  %v1391 = vld [vmem:[%s1187 + $0x79] sm:$0xff]
  %v1392 = vld [vmem:[%s1187 + $0x81] sm:$0xff]
  %v1393 = vld [vmem:[%s1187 + $0x91] sm:$0xff]
  %v1394 = vld [vmem:[%s1187 + $0x99] sm:$0xff]
  %v1395 = vld [vmem:[%s1187 + $0xa9] sm:$0xff]
  %v1396 = vld [vmem:[%s1187 + $0xb1] sm:$0xff]
  %v1397 = vld [vmem:[%s1187 + $0xc1] sm:$0xff]
  %v1398 = vld [vmem:[%s1187 + $0xc9] sm:$0xff]
  %v1399 = vld [vmem:[%s1187 + $0xd9] sm:$0xff]
  %v1400 = vld [vmem:[%s1187 + $0xe1] sm:$0xff]
  %v1401 = vld [vmem:[%s1187 + $0xf1] sm:$0xff]
  %v1402 = vld [vmem:[%s1187 + $0xf9] sm:$0xff]
  %v1403 = vld [vmem:[%s1187 + $0x109] sm:$0xff]
  %v1404 = vld [vmem:[%s1187 + $0x111] sm:$0xff]
  %v1405 = vld [vmem:[%s1187 + $0x121] sm:$0xff]
  %v1406 = vld [vmem:[%s1187 + $0x129] sm:$0xff]
  %v1407 = vld [vmem:[%s1187 + $0x139] sm:$0xff]
  %v1408 = vld [vmem:[%s1187 + $0x141] sm:$0xff]
  %v1409 = vld [vmem:[%s1187 + $0x151] sm:$0xff]
  %v1410 = vld [vmem:[%s1187 + $0x159] sm:$0xff]
  %v1411 = vld [vmem:[%s1187 + $0x169] sm:$0xff]
  %v1412 = vld [vmem:[%s1187 + $0x171] sm:$0xff]
  %v1413 = vld [vmem:[%s1187 + $0x1b1] sm:$0xff]
  %v1414 = vld [vmem:[%s1187 + $0x1b9] sm:$0xff]
  %v1415 = vld [vmem:[%s1187 + $0x1c9] sm:$0xff]
  %v1416 = vld [vmem:[%s1187 + $0x1d1] sm:$0xff]
  %v1417 = vld [vmem:[%s1187 + $0x1e1] sm:$0xff]
  %v1418 = vld [vmem:[%s1187 + $0x1e9] sm:$0xff]
  %v1419 = vld [vmem:[%s1187 + $0x1f9] sm:$0xff]
  %v1420 = vld [vmem:[%s1187 + $0x201] sm:$0xff]
  %v1421 = vld [vmem:[%s1187 + $0x211] sm:$0xff]
  %v1422 = vld [vmem:[%s1187 + $0x219] sm:$0xff]
  %v1423 = vld [vmem:[%s1187 + $0x229] sm:$0xff]
  %v1424 = vld [vmem:[%s1187 + $0x231] sm:$0xff]
  %v1425 = vld [vmem:[%s1187 + $0x241] sm:$0xff]
  %v1426 = vld [vmem:[%s1187 + $0x249] sm:$0xff]
  %v1427 = vld [vmem:[%s1187 + $0x259] sm:$0xff]
  %v1428 = vld [vmem:[%s1187 + $0x261] sm:$0xff]
  %v1429 = vld [vmem:[%s1187 + $0x271] sm:$0xff]
  %v1430 = vld [vmem:[%s1187 + $0x279] sm:$0xff]
  %v1431 = vld [vmem:[%s1187 + $0x289] sm:$0xff]
  %v1432 = vld [vmem:[%s1187 + $0x291] sm:$0xff]
  %v1433 = vld [vmem:[%s1187 + $0x2a1] sm:$0xff]
  %v1434 = vld [vmem:[%s1187 + $0x2a9] sm:$0xff]
  %v1435 = vld [vmem:[%s1187 + $0x2b9] sm:$0xff]
  %v1436 = vld [vmem:[%s1187 + $0x2c1] sm:$0xff]
  %v1437 = vld [vmem:[%s1187 + $0x2d1] sm:$0xff]
  %v1438 = vld [vmem:[%s1187 + $0x2d9] sm:$0xff]
  %v1439 = vld [vmem:[%s1187 + $0x2e9] sm:$0xff]
  %v1440 = vld [vmem:[%s1187 + $0x2f1] sm:$0xff]
  %v1441 = vld [vmem:[%s1187 + $0x301] sm:$0xff]
  %v1442 = vld [vmem:[%s1187 + $0x309] sm:$0xff]
  %v1443 = vld [vmem:[%s1187 + $0x319] sm:$0xff]
  %v1444 = vld [vmem:[%s1187 + $0x321] sm:$0xff]
  %v1445 = vperm.slane %v26, 7
  %v1446 = vmul.f32 %v1381, %v1445
  %v1447 = vmul.f32 %v1382, %v1445
  %v1448 = vmul.f32 %v1383, %v1445
  %v1449 = vmul.f32 %v1384, %v1445
  %v1450 = vmul.f32 %v1385, %v1445
  %v1451 = vmul.f32 %v1386, %v1445
  %v1452 = vmul.f32 %v1387, %v1445
  %v1453 = vmul.f32 %v1388, %v1445
  %v1454 = vmul.f32 %v1389, %v1445
  %v1455 = vmul.f32 %v1390, %v1445
  %v1456 = vmul.f32 %v1391, %v1445
  %v1457 = vmul.f32 %v1392, %v1445
  %v1458 = vmul.f32 %v1393, %v1445
  %v1459 = vmul.f32 %v1394, %v1445
  %v1460 = vmul.f32 %v1395, %v1445
  %v1461 = vmul.f32 %v1396, %v1445
  %v1462 = vmul.f32 %v1397, %v1445
  %v1463 = vmul.f32 %v1398, %v1445
  %v1464 = vmul.f32 %v1399, %v1445
  %v1465 = vmul.f32 %v1400, %v1445
  %v1466 = vmul.f32 %v1401, %v1445
  %v1467 = vmul.f32 %v1402, %v1445
  %v1468 = vmul.f32 %v1403, %v1445
  %v1469 = vmul.f32 %v1404, %v1445
  %v1470 = vmul.f32 %v1405, %v1445
  %v1471 = vmul.f32 %v1406, %v1445
  %v1472 = vmul.f32 %v1407, %v1445
  %v1473 = vmul.f32 %v1408, %v1445
  %v1474 = vmul.f32 %v1409, %v1445
  %v1475 = vmul.f32 %v1410, %v1445
  %v1476 = vmul.f32 %v1411, %v1445
  %v1477 = vmul.f32 %v1412, %v1445
  %v1478 = vmul.f32 %v1413, %v1445
  %v1479 = vmul.f32 %v1414, %v1445
  %v1480 = vmul.f32 %v1415, %v1445
  %v1481 = vmul.f32 %v1416, %v1445
  %v1482 = vmul.f32 %v1417, %v1445
  %v1483 = vmul.f32 %v1418, %v1445
  %v1484 = vmul.f32 %v1419, %v1445
  %v1485 = vmul.f32 %v1420, %v1445
  %v1486 = vmul.f32 %v1421, %v1445
  %v1487 = vmul.f32 %v1422, %v1445
  %v1488 = vmul.f32 %v1423, %v1445
  %v1489 = vmul.f32 %v1424, %v1445
  %v1490 = vmul.f32 %v1425, %v1445
  %v1491 = vmul.f32 %v1426, %v1445
  %v1492 = vmul.f32 %v1427, %v1445
  %v1493 = vmul.f32 %v1428, %v1445
  %v1494 = vmul.f32 %v1429, %v1445
  %v1495 = vmul.f32 %v1430, %v1445
  %v1496 = vmul.f32 %v1431, %v1445
  %v1497 = vmul.f32 %v1432, %v1445
  %v1498 = vmul.f32 %v1433, %v1445
  %v1499 = vmul.f32 %v1434, %v1445
  %v1500 = vmul.f32 %v1435, %v1445
  %v1501 = vmul.f32 %v1436, %v1445
  %v1502 = vmul.f32 %v1437, %v1445
  %v1503 = vmul.f32 %v1438, %v1445
  %v1504 = vmul.f32 %v1439, %v1445
  %v1505 = vmul.f32 %v1440, %v1445
  %v1506 = vmul.f32 %v1441, %v1445
  %v1507 = vmul.f32 %v1442, %v1445
  %v1508 = vmul.f32 %v1443, %v1445
  %v1509 = vmul.f32 %v1444, %v1445
  %v1510 = vadd.f32 %v1317, %v1446
  %v1511 = vadd.f32 %v1318, %v1447
  %v1512 = vadd.f32 %v1319, %v1448
  %v1513 = vadd.f32 %v1320, %v1449
  %v1514 = vadd.f32 %v1321, %v1450
  %v1515 = vadd.f32 %v1322, %v1451
  %v1516 = vadd.f32 %v1323, %v1452
  %v1517 = vadd.f32 %v1324, %v1453
  %v1518 = vadd.f32 %v1325, %v1454
  %v1519 = vadd.f32 %v1326, %v1455
  %v1520 = vadd.f32 %v1327, %v1456
  %v1521 = vadd.f32 %v1328, %v1457
  %v1522 = vadd.f32 %v1329, %v1458
  %v1523 = vadd.f32 %v1330, %v1459
  %v1524 = vadd.f32 %v1331, %v1460
  %v1525 = vadd.f32 %v1332, %v1461
  %v1526 = vadd.f32 %v1333, %v1462
  %v1527 = vadd.f32 %v1334, %v1463
  %v1528 = vadd.f32 %v1335, %v1464
  %v1529 = vadd.f32 %v1336, %v1465
  %v1530 = vadd.f32 %v1337, %v1466
  %v1531 = vadd.f32 %v1338, %v1467
  %v1532 = vadd.f32 %v1339, %v1468
  %v1533 = vadd.f32 %v1340, %v1469
  %v1534 = vadd.f32 %v1341, %v1470
  %v1535 = vadd.f32 %v1342, %v1471
  %v1536 = vadd.f32 %v1343, %v1472
  %v1537 = vadd.f32 %v1344, %v1473
  %v1538 = vadd.f32 %v1345, %v1474
  %v1539 = vadd.f32 %v1346, %v1475
  %v1540 = vadd.f32 %v1347, %v1476
  %v1541 = vadd.f32 %v1348, %v1477
  %v1542 = vadd.f32 %v1349, %v1478
  %v1543 = vadd.f32 %v1350, %v1479
  %v1544 = vadd.f32 %v1351, %v1480
  %v1545 = vadd.f32 %v1352, %v1481
  %v1546 = vadd.f32 %v1353, %v1482
  %v1547 = vadd.f32 %v1354, %v1483
  %v1548 = vadd.f32 %v1355, %v1484
  %v1549 = vadd.f32 %v1356, %v1485
  %v1550 = vadd.f32 %v1357, %v1486
  %v1551 = vadd.f32 %v1358, %v1487
  %v1552 = vadd.f32 %v1359, %v1488
  %v1553 = vadd.f32 %v1360, %v1489
  %v1554 = vadd.f32 %v1361, %v1490
  %v1555 = vadd.f32 %v1362, %v1491
  %v1556 = vadd.f32 %v1363, %v1492
  %v1557 = vadd.f32 %v1364, %v1493
  %v1558 = vadd.f32 %v1365, %v1494
  %v1559 = vadd.f32 %v1366, %v1495
  %v1560 = vadd.f32 %v1367, %v1496
  %v1561 = vadd.f32 %v1368, %v1497
  %v1562 = vadd.f32 %v1369, %v1498
  %v1563 = vadd.f32 %v1370, %v1499
  %v1564 = vadd.f32 %v1371, %v1500
  %v1565 = vadd.f32 %v1372, %v1501
  %v1566 = vadd.f32 %v1373, %v1502
  %v1567 = vadd.f32 %v1374, %v1503
  %v1568 = vadd.f32 %v1375, %v1504
  %v1569 = vadd.f32 %v1376, %v1505
  %v1570 = vadd.f32 %v1377, %v1506
  %v1571 = vadd.f32 %v1378, %v1507
  %v1572 = vadd.f32 %v1379, %v1508
  %v1573 = vadd.f32 %v1380, %v1509
  %v1574 = vld [vmem:[%s1187 + $0x2] sm:$0xff]
  %v1575 = vld [vmem:[%s1187 + $0xa] sm:$0xff]
  %v1576 = vld [vmem:[%s1187 + $0x1a] sm:$0xff]
  %v1577 = vld [vmem:[%s1187 + $0x22] sm:$0xff]
  %v1578 = vld [vmem:[%s1187 + $0x32] sm:$0xff]
  %v1579 = vld [vmem:[%s1187 + $0x3a] sm:$0xff]
  %v1580 = vld [vmem:[%s1187 + $0x4a] sm:$0xff]
  %v1581 = vld [vmem:[%s1187 + $0x52] sm:$0xff]
  %v1582 = vld [vmem:[%s1187 + $0x62] sm:$0xff]
  %v1583 = vld [vmem:[%s1187 + $0x6a] sm:$0xff]
  %v1584 = vld [vmem:[%s1187 + $0x7a] sm:$0xff]
  %v1585 = vld [vmem:[%s1187 + $0x82] sm:$0xff]
  %v1586 = vld [vmem:[%s1187 + $0x92] sm:$0xff]
  %v1587 = vld [vmem:[%s1187 + $0x9a] sm:$0xff]
  %v1588 = vld [vmem:[%s1187 + $0xaa] sm:$0xff]
  %v1589 = vld [vmem:[%s1187 + $0xb2] sm:$0xff]
  %v1590 = vld [vmem:[%s1187 + $0xc2] sm:$0xff]
  %v1591 = vld [vmem:[%s1187 + $0xca] sm:$0xff]
  %v1592 = vld [vmem:[%s1187 + $0xda] sm:$0xff]
  %v1593 = vld [vmem:[%s1187 + $0xe2] sm:$0xff]
  %v1594 = vld [vmem:[%s1187 + $0xf2] sm:$0xff]
  %v1595 = vld [vmem:[%s1187 + $0xfa] sm:$0xff]
  %v1596 = vld [vmem:[%s1187 + $0x10a] sm:$0xff]
  %v1597 = vld [vmem:[%s1187 + $0x112] sm:$0xff]
  %v1598 = vld [vmem:[%s1187 + $0x122] sm:$0xff]
  %v1599 = vld [vmem:[%s1187 + $0x12a] sm:$0xff]
  %v1600 = vld [vmem:[%s1187 + $0x13a] sm:$0xff]
  %v1601 = vld [vmem:[%s1187 + $0x142] sm:$0xff]
  %v1602 = vld [vmem:[%s1187 + $0x152] sm:$0xff]
  %v1603 = vld [vmem:[%s1187 + $0x15a] sm:$0xff]
  %v1604 = vld [vmem:[%s1187 + $0x16a] sm:$0xff]
  %v1605 = vld [vmem:[%s1187 + $0x172] sm:$0xff]
  %v1606 = vld [vmem:[%s1187 + $0x1b2] sm:$0xff]
  %v1607 = vld [vmem:[%s1187 + $0x1ba] sm:$0xff]
  %v1608 = vld [vmem:[%s1187 + $0x1ca] sm:$0xff]
  %v1609 = vld [vmem:[%s1187 + $0x1d2] sm:$0xff]
  %v1610 = vld [vmem:[%s1187 + $0x1e2] sm:$0xff]
  %v1611 = vld [vmem:[%s1187 + $0x1ea] sm:$0xff]
  %v1612 = vld [vmem:[%s1187 + $0x1fa] sm:$0xff]
  %v1613 = vld [vmem:[%s1187 + $0x202] sm:$0xff]
  %v1614 = vld [vmem:[%s1187 + $0x212] sm:$0xff]
  %v1615 = vld [vmem:[%s1187 + $0x21a] sm:$0xff]
  %v1616 = vld [vmem:[%s1187 + $0x22a] sm:$0xff]
  %v1617 = vld [vmem:[%s1187 + $0x232] sm:$0xff]
  %v1618 = vld [vmem:[%s1187 + $0x242] sm:$0xff]
  %v1619 = vld [vmem:[%s1187 + $0x24a] sm:$0xff]
  %v1620 = vld [vmem:[%s1187 + $0x25a] sm:$0xff]
  %v1621 = vld [vmem:[%s1187 + $0x262] sm:$0xff]
  %v1622 = vld [vmem:[%s1187 + $0x272] sm:$0xff]
  %v1623 = vld [vmem:[%s1187 + $0x27a] sm:$0xff]
  %v1624 = vld [vmem:[%s1187 + $0x28a] sm:$0xff]
  %v1625 = vld [vmem:[%s1187 + $0x292] sm:$0xff]
  %v1626 = vld [vmem:[%s1187 + $0x2a2] sm:$0xff]
  %v1627 = vld [vmem:[%s1187 + $0x2aa] sm:$0xff]
  %v1628 = vld [vmem:[%s1187 + $0x2ba] sm:$0xff]
  %v1629 = vld [vmem:[%s1187 + $0x2c2] sm:$0xff]
  %v1630 = vld [vmem:[%s1187 + $0x2d2] sm:$0xff]
  %v1631 = vld [vmem:[%s1187 + $0x2da] sm:$0xff]
  %v1632 = vld [vmem:[%s1187 + $0x2ea] sm:$0xff]
  %v1633 = vld [vmem:[%s1187 + $0x2f2] sm:$0xff]
  %v1634 = vld [vmem:[%s1187 + $0x302] sm:$0xff]
  %v1635 = vld [vmem:[%s1187 + $0x30a] sm:$0xff]
  %v1636 = vld [vmem:[%s1187 + $0x31a] sm:$0xff]
  %v1637 = vld [vmem:[%s1187 + $0x322] sm:$0xff]
  %v1638 = vperm.slane %v27, 0
  %v1639 = vmul.f32 %v1574, %v1638
  %v1640 = vmul.f32 %v1575, %v1638
  %v1641 = vmul.f32 %v1576, %v1638
  %v1642 = vmul.f32 %v1577, %v1638
  %v1643 = vmul.f32 %v1578, %v1638
  %v1644 = vmul.f32 %v1579, %v1638
  %v1645 = vmul.f32 %v1580, %v1638
  %v1646 = vmul.f32 %v1581, %v1638
  %v1647 = vmul.f32 %v1582, %v1638
  %v1648 = vmul.f32 %v1583, %v1638
  %v1649 = vmul.f32 %v1584, %v1638
  %v1650 = vmul.f32 %v1585, %v1638
  %v1651 = vmul.f32 %v1586, %v1638
  %v1652 = vmul.f32 %v1587, %v1638
  %v1653 = vmul.f32 %v1588, %v1638
  %v1654 = vmul.f32 %v1589, %v1638
  %v1655 = vmul.f32 %v1590, %v1638
  %v1656 = vmul.f32 %v1591, %v1638
  %v1657 = vmul.f32 %v1592, %v1638
  %v1658 = vmul.f32 %v1593, %v1638
  %v1659 = vmul.f32 %v1594, %v1638
  %v1660 = vmul.f32 %v1595, %v1638
  %v1661 = vmul.f32 %v1596, %v1638
  %v1662 = vmul.f32 %v1597, %v1638
  %v1663 = vmul.f32 %v1598, %v1638
  %v1664 = vmul.f32 %v1599, %v1638
  %v1665 = vmul.f32 %v1600, %v1638
  %v1666 = vmul.f32 %v1601, %v1638
  %v1667 = vmul.f32 %v1602, %v1638
  %v1668 = vmul.f32 %v1603, %v1638
  %v1669 = vmul.f32 %v1604, %v1638
  %v1670 = vmul.f32 %v1605, %v1638
  %v1671 = vmul.f32 %v1606, %v1638
  %v1672 = vmul.f32 %v1607, %v1638
  %v1673 = vmul.f32 %v1608, %v1638
  %v1674 = vmul.f32 %v1609, %v1638
  %v1675 = vmul.f32 %v1610, %v1638
  %v1676 = vmul.f32 %v1611, %v1638
  %v1677 = vmul.f32 %v1612, %v1638
  %v1678 = vmul.f32 %v1613, %v1638
  %v1679 = vmul.f32 %v1614, %v1638
  %v1680 = vmul.f32 %v1615, %v1638
  %v1681 = vmul.f32 %v1616, %v1638
  %v1682 = vmul.f32 %v1617, %v1638
  %v1683 = vmul.f32 %v1618, %v1638
  %v1684 = vmul.f32 %v1619, %v1638
  %v1685 = vmul.f32 %v1620, %v1638
  %v1686 = vmul.f32 %v1621, %v1638
  %v1687 = vmul.f32 %v1622, %v1638
  %v1688 = vmul.f32 %v1623, %v1638
  %v1689 = vmul.f32 %v1624, %v1638
  %v1690 = vmul.f32 %v1625, %v1638
  %v1691 = vmul.f32 %v1626, %v1638
  %v1692 = vmul.f32 %v1627, %v1638
  %v1693 = vmul.f32 %v1628, %v1638
  %v1694 = vmul.f32 %v1629, %v1638
  %v1695 = vmul.f32 %v1630, %v1638
  %v1696 = vmul.f32 %v1631, %v1638
  %v1697 = vmul.f32 %v1632, %v1638
  %v1698 = vmul.f32 %v1633, %v1638
  %v1699 = vmul.f32 %v1634, %v1638
  %v1700 = vmul.f32 %v1635, %v1638
  %v1701 = vmul.f32 %v1636, %v1638
  %v1702 = vmul.f32 %v1637, %v1638
  %v1703 = vadd.f32 %v1510, %v1639
  %v1704 = vadd.f32 %v1511, %v1640
  %v1705 = vadd.f32 %v1512, %v1641
  %v1706 = vadd.f32 %v1513, %v1642
  %v1707 = vadd.f32 %v1514, %v1643
  %v1708 = vadd.f32 %v1515, %v1644
  %v1709 = vadd.f32 %v1516, %v1645
  %v1710 = vadd.f32 %v1517, %v1646
  %v1711 = vadd.f32 %v1518, %v1647
  %v1712 = vadd.f32 %v1519, %v1648
  %v1713 = vadd.f32 %v1520, %v1649
  %v1714 = vadd.f32 %v1521, %v1650
  %v1715 = vadd.f32 %v1522, %v1651
  %v1716 = vadd.f32 %v1523, %v1652
  %v1717 = vadd.f32 %v1524, %v1653
  %v1718 = vadd.f32 %v1525, %v1654
  %v1719 = vadd.f32 %v1526, %v1655
  %v1720 = vadd.f32 %v1527, %v1656
  %v1721 = vadd.f32 %v1528, %v1657
  %v1722 = vadd.f32 %v1529, %v1658
  %v1723 = vadd.f32 %v1530, %v1659
  %v1724 = vadd.f32 %v1531, %v1660
  %v1725 = vadd.f32 %v1532, %v1661
  %v1726 = vadd.f32 %v1533, %v1662
  %v1727 = vadd.f32 %v1534, %v1663
  %v1728 = vadd.f32 %v1535, %v1664
  %v1729 = vadd.f32 %v1536, %v1665
  %v1730 = vadd.f32 %v1537, %v1666
  %v1731 = vadd.f32 %v1538, %v1667
  %v1732 = vadd.f32 %v1539, %v1668
  %v1733 = vadd.f32 %v1540, %v1669
  %v1734 = vadd.f32 %v1541, %v1670
  %v1735 = vadd.f32 %v1542, %v1671
  %v1736 = vadd.f32 %v1543, %v1672
  %v1737 = vadd.f32 %v1544, %v1673
  %v1738 = vadd.f32 %v1545, %v1674
  %v1739 = vadd.f32 %v1546, %v1675
  %v1740 = vadd.f32 %v1547, %v1676
  %v1741 = vadd.f32 %v1548, %v1677
  %v1742 = vadd.f32 %v1549, %v1678
  %v1743 = vadd.f32 %v1550, %v1679
  %v1744 = vadd.f32 %v1551, %v1680
  %v1745 = vadd.f32 %v1552, %v1681
  %v1746 = vadd.f32 %v1553, %v1682
  %v1747 = vadd.f32 %v1554, %v1683
  %v1748 = vadd.f32 %v1555, %v1684
  %v1749 = vadd.f32 %v1556, %v1685
  %v1750 = vadd.f32 %v1557, %v1686
  %v1751 = vadd.f32 %v1558, %v1687
  %v1752 = vadd.f32 %v1559, %v1688
  %v1753 = vadd.f32 %v1560, %v1689
  %v1754 = vadd.f32 %v1561, %v1690
  %v1755 = vadd.f32 %v1562, %v1691
  %v1756 = vadd.f32 %v1563, %v1692
  %v1757 = vadd.f32 %v1564, %v1693
  %v1758 = vadd.f32 %v1565, %v1694
  %v1759 = vadd.f32 %v1566, %v1695
  %v1760 = vadd.f32 %v1567, %v1696
  %v1761 = vadd.f32 %v1568, %v1697
  %v1762 = vadd.f32 %v1569, %v1698
  %v1763 = vadd.f32 %v1570, %v1699
  %v1764 = vadd.f32 %v1571, %v1700
  %v1765 = vadd.f32 %v1572, %v1701
  %v1766 = vadd.f32 %v1573, %v1702
  %v1767 = vld [vmem:[%s2] sm:$0xf]
  %v1768 = vld [vmem:[%s3] sm:$0x1]
  %v1770 = vperm.slane %v1768, 0
  %vm1772 = vcmask 31744
  %v1774 = vsel %vm1772, %v1703, 0
  %v1777 = vsel %vm1772, %v1704, 0
  %v1780 = vsel %vm1772, %v1705, 0
  %v1783 = vsel %vm1772, %v1706, 0
  %v1786 = vsel %vm1772, %v1707, 0
  %v1789 = vsel %vm1772, %v1708, 0
  %v1792 = vsel %vm1772, %v1709, 0
  %v1795 = vsel %vm1772, %v1710, 0
  %v1798 = vsel %vm1772, %v1711, 0
  %v1801 = vsel %vm1772, %v1712, 0
  %v1804 = vsel %vm1772, %v1713, 0
  %v1807 = vsel %vm1772, %v1714, 0
  %v1810 = vsel %vm1772, %v1715, 0
  %v1813 = vsel %vm1772, %v1716, 0
  %v1816 = vsel %vm1772, %v1717, 0
  %v1819 = vsel %vm1772, %v1718, 0
  %v1822 = vsel %vm1772, %v1719, 0
  %v1825 = vsel %vm1772, %v1720, 0
  %v1828 = vsel %vm1772, %v1721, 0
  %v1831 = vsel %vm1772, %v1722, 0
  %v1834 = vsel %vm1772, %v1723, 0
  %v1837 = vsel %vm1772, %v1724, 0
  %v1840 = vsel %vm1772, %v1725, 0
  %v1843 = vsel %vm1772, %v1726, 0
  %v1846 = vsel %vm1772, %v1727, 0
  %v1849 = vsel %vm1772, %v1728, 0
  %v1852 = vsel %vm1772, %v1729, 0
  %v1855 = vsel %vm1772, %v1730, 0
  %v1858 = vsel %vm1772, %v1731, 0
  %v1861 = vsel %vm1772, %v1732, 0
  %v1864 = vsel %vm1772, %v1733, 0
  %v1867 = vsel %vm1772, %v1734, 0
  %v1870 = vsel %vm1772, %v1735, 0
  %v1873 = vsel %vm1772, %v1736, 0
  %v1876 = vsel %vm1772, %v1737, 0
  %v1879 = vsel %vm1772, %v1738, 0
  %v1882 = vsel %vm1772, %v1739, 0
  %v1885 = vsel %vm1772, %v1740, 0
  %v1888 = vsel %vm1772, %v1741, 0
  %v1891 = vsel %vm1772, %v1742, 0
  %v1894 = vsel %vm1772, %v1743, 0
  %v1897 = vsel %vm1772, %v1744, 0
  %v1900 = vsel %vm1772, %v1745, 0
  %v1903 = vsel %vm1772, %v1746, 0
  %v1906 = vsel %vm1772, %v1747, 0
  %v1909 = vsel %vm1772, %v1748, 0
  %v1912 = vsel %vm1772, %v1749, 0
  %v1915 = vsel %vm1772, %v1750, 0
  %v1918 = vsel %vm1772, %v1751, 0
  %v1921 = vsel %vm1772, %v1752, 0
  %v1924 = vsel %vm1772, %v1753, 0
  %v1927 = vsel %vm1772, %v1754, 0
  %v1930 = vsel %vm1772, %v1755, 0
  %v1933 = vsel %vm1772, %v1756, 0
  %v1936 = vsel %vm1772, %v1757, 0
  %v1939 = vsel %vm1772, %v1758, 0
  %v1942 = vsel %vm1772, %v1759, 0
  %v1945 = vsel %vm1772, %v1760, 0
  %v1948 = vsel %vm1772, %v1761, 0
  %v1951 = vsel %vm1772, %v1762, 0
  %v1954 = vsel %vm1772, %v1763, 0
  %v1957 = vsel %vm1772, %v1764, 0
  %v1960 = vsel %vm1772, %v1765, 0
  %v1963 = vsel %vm1772, %v1766, 0
  %vm1965 = vcmask 1043456
  %v1967 = vsel %vm1965, %v1767, 0
  %1969 = vmatpush.msra.mxu0 0.0
  %1970 = vmatpush.msra.mxu0 0.0
  %1971 = vmatpush.msra.mxu0 0.0
  %1972 = vmatpush.msra.mxu0 0.0
  %1973 = vmatpush.msra.mxu0 0.0
  %1974 = vmatpush.msra.mxu0 0.0
  %1975 = vmatpush.msra.mxu0 0.0
  %1976 = vmatpush.msra.mxu0 0.0
  %1977 = vmatpush.msra.mxu0 0.0
  %1978 = vmatpush.msra.mxu0 0.0
  %1979 = vmatpush.msra.mxu0 0.0
  %1980 = vmatpush.msra.mxu0 0.0
  %1981 = vmatpush.msra.mxu0 0.0
  %1982 = vmatpush.msra.mxu0 0.0
  %1983 = vmatpush.msra.mxu0 0.0
  %1984 = vmatpush.msra.mxu0 %v1967
  %1985 = vmatmul.f32.gmra.mxu0 %v1774
  %v1986 = vpop.f32.mrf.mxu0
  %v1987 = vadd.f32 %v1770, %v1986
  %1988 = vmatmul.f32.gmra.mxu0 %v1777
  %v1989 = vpop.f32.mrf.mxu0
  %v1990 = vadd.f32 %v1770, %v1989
  %1991 = vmatmul.f32.gmra.mxu0 %v1780
  %v1992 = vpop.f32.mrf.mxu0
  %v1993 = vadd.f32 %v1770, %v1992
  %1994 = vmatmul.f32.gmra.mxu0 %v1783
  %v1995 = vpop.f32.mrf.mxu0
  %v1996 = vadd.f32 %v1770, %v1995
  %1997 = vmatmul.f32.gmra.mxu0 %v1786
  %v1998 = vpop.f32.mrf.mxu0
  %v1999 = vadd.f32 %v1770, %v1998
  %2000 = vmatmul.f32.gmra.mxu0 %v1789
  %v2001 = vpop.f32.mrf.mxu0
  %v2002 = vadd.f32 %v1770, %v2001
  %2003 = vmatmul.f32.gmra.mxu0 %v1792
  %v2004 = vpop.f32.mrf.mxu0
  %v2005 = vadd.f32 %v1770, %v2004
  %2006 = vmatmul.f32.gmra.mxu0 %v1795
  %v2007 = vpop.f32.mrf.mxu0
  %v2008 = vadd.f32 %v1770, %v2007
  %2009 = vmatmul.f32.gmra.mxu0 %v1798
  %v2010 = vpop.f32.mrf.mxu0
  %v2011 = vadd.f32 %v1770, %v2010
  %2012 = vmatmul.f32.gmra.mxu0 %v1801
  %v2013 = vpop.f32.mrf.mxu0
  %v2014 = vadd.f32 %v1770, %v2013
  %2015 = vmatmul.f32.gmra.mxu0 %v1804
  %v2016 = vpop.f32.mrf.mxu0
  %v2017 = vadd.f32 %v1770, %v2016
  %2018 = vmatmul.f32.gmra.mxu0 %v1807
  %v2019 = vpop.f32.mrf.mxu0
  %v2020 = vadd.f32 %v1770, %v2019
  %2021 = vmatmul.f32.gmra.mxu0 %v1810
  %v2022 = vpop.f32.mrf.mxu0
  %v2023 = vadd.f32 %v1770, %v2022
  %2024 = vmatmul.f32.gmra.mxu0 %v1813
  %v2025 = vpop.f32.mrf.mxu0
  %v2026 = vadd.f32 %v1770, %v2025
  %2027 = vmatmul.f32.gmra.mxu0 %v1816
  %v2028 = vpop.f32.mrf.mxu0
  %v2029 = vadd.f32 %v1770, %v2028
  %2030 = vmatmul.f32.gmra.mxu0 %v1819
  %v2031 = vpop.f32.mrf.mxu0
  %v2032 = vadd.f32 %v1770, %v2031
  %2033 = vmatmul.f32.gmra.mxu0 %v1822
  %v2034 = vpop.f32.mrf.mxu0
  %v2035 = vadd.f32 %v1770, %v2034
  %2036 = vmatmul.f32.gmra.mxu0 %v1825
  %v2037 = vpop.f32.mrf.mxu0
  %v2038 = vadd.f32 %v1770, %v2037
  %2039 = vmatmul.f32.gmra.mxu0 %v1828
  %v2040 = vpop.f32.mrf.mxu0
  %v2041 = vadd.f32 %v1770, %v2040
  %2042 = vmatmul.f32.gmra.mxu0 %v1831
  %v2043 = vpop.f32.mrf.mxu0
  %v2044 = vadd.f32 %v1770, %v2043
  %2045 = vmatmul.f32.gmra.mxu0 %v1834
  %v2046 = vpop.f32.mrf.mxu0
  %v2047 = vadd.f32 %v1770, %v2046
  %2048 = vmatmul.f32.gmra.mxu0 %v1837
  %v2049 = vpop.f32.mrf.mxu0
  %v2050 = vadd.f32 %v1770, %v2049
  %2051 = vmatmul.f32.gmra.mxu0 %v1840
  %v2052 = vpop.f32.mrf.mxu0
  %v2053 = vadd.f32 %v1770, %v2052
  %2054 = vmatmul.f32.gmra.mxu0 %v1843
  %v2055 = vpop.f32.mrf.mxu0
  %v2056 = vadd.f32 %v1770, %v2055
  %2057 = vmatmul.f32.gmra.mxu0 %v1846
  %v2058 = vpop.f32.mrf.mxu0
  %v2059 = vadd.f32 %v1770, %v2058
  %2060 = vmatmul.f32.gmra.mxu0 %v1849
  %v2061 = vpop.f32.mrf.mxu0
  %v2062 = vadd.f32 %v1770, %v2061
  %2063 = vmatmul.f32.gmra.mxu0 %v1852
  %v2064 = vpop.f32.mrf.mxu0
  %v2065 = vadd.f32 %v1770, %v2064
  %2066 = vmatmul.f32.gmra.mxu0 %v1855
  %v2067 = vpop.f32.mrf.mxu0
  %v2068 = vadd.f32 %v1770, %v2067
  %2069 = vmatmul.f32.gmra.mxu0 %v1858
  %v2070 = vpop.f32.mrf.mxu0
  %v2071 = vadd.f32 %v1770, %v2070
  %2072 = vmatmul.f32.gmra.mxu0 %v1861
  %v2073 = vpop.f32.mrf.mxu0
  %v2074 = vadd.f32 %v1770, %v2073
  %2075 = vmatmul.f32.gmra.mxu0 %v1864
  %v2076 = vpop.f32.mrf.mxu0
  %v2077 = vadd.f32 %v1770, %v2076
  %2078 = vmatmul.f32.gmra.mxu0 %v1867
  %v2079 = vpop.f32.mrf.mxu0
  %v2080 = vadd.f32 %v1770, %v2079
  %2081 = vmatmul.f32.gmra.mxu0 %v1870
  %v2082 = vpop.f32.mrf.mxu0
  %v2083 = vadd.f32 %v1770, %v2082
  %2084 = vmatmul.f32.gmra.mxu0 %v1873
  %v2085 = vpop.f32.mrf.mxu0
  %v2086 = vadd.f32 %v1770, %v2085
  %2087 = vmatmul.f32.gmra.mxu0 %v1876
  %v2088 = vpop.f32.mrf.mxu0
  %v2089 = vadd.f32 %v1770, %v2088
  %2090 = vmatmul.f32.gmra.mxu0 %v1879
  %v2091 = vpop.f32.mrf.mxu0
  %v2092 = vadd.f32 %v1770, %v2091
  %2093 = vmatmul.f32.gmra.mxu0 %v1882
  %v2094 = vpop.f32.mrf.mxu0
  %v2095 = vadd.f32 %v1770, %v2094
  %2096 = vmatmul.f32.gmra.mxu0 %v1885
  %v2097 = vpop.f32.mrf.mxu0
  %v2098 = vadd.f32 %v1770, %v2097
  %2099 = vmatmul.f32.gmra.mxu0 %v1888
  %v2100 = vpop.f32.mrf.mxu0
  %v2101 = vadd.f32 %v1770, %v2100
  %2102 = vmatmul.f32.gmra.mxu0 %v1891
  %v2103 = vpop.f32.mrf.mxu0
  %v2104 = vadd.f32 %v1770, %v2103
  %2105 = vmatmul.f32.gmra.mxu0 %v1894
  %v2106 = vpop.f32.mrf.mxu0
  %v2107 = vadd.f32 %v1770, %v2106
  %2108 = vmatmul.f32.gmra.mxu0 %v1897
  %v2109 = vpop.f32.mrf.mxu0
  %v2110 = vadd.f32 %v1770, %v2109
  %2111 = vmatmul.f32.gmra.mxu0 %v1900
  %v2112 = vpop.f32.mrf.mxu0
  %v2113 = vadd.f32 %v1770, %v2112
  %2114 = vmatmul.f32.gmra.mxu0 %v1903
  %v2115 = vpop.f32.mrf.mxu0
  %v2116 = vadd.f32 %v1770, %v2115
  %2117 = vmatmul.f32.gmra.mxu0 %v1906
  %v2118 = vpop.f32.mrf.mxu0
  %v2119 = vadd.f32 %v1770, %v2118
  %2120 = vmatmul.f32.gmra.mxu0 %v1909
  %v2121 = vpop.f32.mrf.mxu0
  %v2122 = vadd.f32 %v1770, %v2121
  %2123 = vmatmul.f32.gmra.mxu0 %v1912
  %v2124 = vpop.f32.mrf.mxu0
  %v2125 = vadd.f32 %v1770, %v2124
  %2126 = vmatmul.f32.gmra.mxu0 %v1915
  %v2127 = vpop.f32.mrf.mxu0
  %v2128 = vadd.f32 %v1770, %v2127
  %2129 = vmatmul.f32.gmra.mxu0 %v1918
  %v2130 = vpop.f32.mrf.mxu0
  %v2131 = vadd.f32 %v1770, %v2130
  %2132 = vmatmul.f32.gmra.mxu0 %v1921
  %v2133 = vpop.f32.mrf.mxu0
  %v2134 = vadd.f32 %v1770, %v2133
  %2135 = vmatmul.f32.gmra.mxu0 %v1924
  %v2136 = vpop.f32.mrf.mxu0
  %v2137 = vadd.f32 %v1770, %v2136
  %2138 = vmatmul.f32.gmra.mxu0 %v1927
  %v2139 = vpop.f32.mrf.mxu0
  %v2140 = vadd.f32 %v1770, %v2139
  %2141 = vmatmul.f32.gmra.mxu0 %v1930
  %v2142 = vpop.f32.mrf.mxu0
  %v2143 = vadd.f32 %v1770, %v2142
  %2144 = vmatmul.f32.gmra.mxu0 %v1933
  %v2145 = vpop.f32.mrf.mxu0
  %v2146 = vadd.f32 %v1770, %v2145
  %2147 = vmatmul.f32.gmra.mxu0 %v1936
  %v2148 = vpop.f32.mrf.mxu0
  %v2149 = vadd.f32 %v1770, %v2148
  %2150 = vmatmul.f32.gmra.mxu0 %v1939
  %v2151 = vpop.f32.mrf.mxu0
  %v2152 = vadd.f32 %v1770, %v2151
  %2153 = vmatmul.f32.gmra.mxu0 %v1942
  %v2154 = vpop.f32.mrf.mxu0
  %v2155 = vadd.f32 %v1770, %v2154
  %2156 = vmatmul.f32.gmra.mxu0 %v1945
  %v2157 = vpop.f32.mrf.mxu0
  %v2158 = vadd.f32 %v1770, %v2157
  %2159 = vmatmul.f32.gmra.mxu0 %v1948
  %v2160 = vpop.f32.mrf.mxu0
  %v2161 = vadd.f32 %v1770, %v2160
  %2162 = vmatmul.f32.gmra.mxu0 %v1951
  %v2163 = vpop.f32.mrf.mxu0
  %v2164 = vadd.f32 %v1770, %v2163
  %2165 = vmatmul.f32.gmra.mxu0 %v1954
  %v2166 = vpop.f32.mrf.mxu0
  %v2167 = vadd.f32 %v1770, %v2166
  %2168 = vmatmul.f32.gmra.mxu0 %v1957
  %v2169 = vpop.f32.mrf.mxu0
  %v2170 = vadd.f32 %v1770, %v2169
  %2171 = vmatmul.f32.gmra.mxu0 %v1960
  %v2172 = vpop.f32.mrf.mxu0
  %v2173 = vadd.f32 %v1770, %v2172
  %2174 = vmatmul.f32.gmra.mxu0 %v1963
  %v2175 = vpop.f32.mrf.mxu0
  %v2176 = vadd.f32 %v1770, %v2175
  %2177 = vdwg.mxu0
  %v2178 = vmax.f32 %v1987, 0.0
  %v2179 = vmax.f32 %v1990, 0.0
  %v2180 = vmax.f32 %v1993, 0.0
  %v2181 = vmax.f32 %v1996, 0.0
  %v2182 = vmax.f32 %v1999, 0.0
  %v2183 = vmax.f32 %v2002, 0.0
  %v2184 = vmax.f32 %v2005, 0.0
  %v2185 = vmax.f32 %v2008, 0.0
  %v2186 = vmax.f32 %v2011, 0.0
  %v2187 = vmax.f32 %v2014, 0.0
  %v2188 = vmax.f32 %v2017, 0.0
  %v2189 = vmax.f32 %v2020, 0.0
  %v2190 = vmax.f32 %v2023, 0.0
  %v2191 = vmax.f32 %v2026, 0.0
  %v2192 = vmax.f32 %v2029, 0.0
  %v2193 = vmax.f32 %v2032, 0.0
  %v2194 = vmax.f32 %v2035, 0.0
  %v2195 = vmax.f32 %v2038, 0.0
  %v2196 = vmax.f32 %v2041, 0.0
  %v2197 = vmax.f32 %v2044, 0.0
  %v2198 = vmax.f32 %v2047, 0.0
  %v2199 = vmax.f32 %v2050, 0.0
  %v2200 = vmax.f32 %v2053, 0.0
  %v2201 = vmax.f32 %v2056, 0.0
  %v2202 = vmax.f32 %v2059, 0.0
  %v2203 = vmax.f32 %v2062, 0.0
  %v2204 = vmax.f32 %v2065, 0.0
  %v2205 = vmax.f32 %v2068, 0.0
  %v2206 = vmax.f32 %v2071, 0.0
  %v2207 = vmax.f32 %v2074, 0.0
  %v2208 = vmax.f32 %v2077, 0.0
  %v2209 = vmax.f32 %v2080, 0.0
  %v2210 = vmax.f32 %v2083, 0.0
  %v2211 = vmax.f32 %v2086, 0.0
  %v2212 = vmax.f32 %v2089, 0.0
  %v2213 = vmax.f32 %v2092, 0.0
  %v2214 = vmax.f32 %v2095, 0.0
  %v2215 = vmax.f32 %v2098, 0.0
  %v2216 = vmax.f32 %v2101, 0.0
  %v2217 = vmax.f32 %v2104, 0.0
  %v2218 = vmax.f32 %v2107, 0.0
  %v2219 = vmax.f32 %v2110, 0.0
  %v2220 = vmax.f32 %v2113, 0.0
  %v2221 = vmax.f32 %v2116, 0.0
  %v2222 = vmax.f32 %v2119, 0.0
  %v2223 = vmax.f32 %v2122, 0.0
  %v2224 = vmax.f32 %v2125, 0.0
  %v2225 = vmax.f32 %v2128, 0.0
  %v2226 = vmax.f32 %v2131, 0.0
  %v2227 = vmax.f32 %v2134, 0.0
  %v2228 = vmax.f32 %v2137, 0.0
  %v2229 = vmax.f32 %v2140, 0.0
  %v2230 = vmax.f32 %v2143, 0.0
  %v2231 = vmax.f32 %v2146, 0.0
  %v2232 = vmax.f32 %v2149, 0.0
  %v2233 = vmax.f32 %v2152, 0.0
  %v2234 = vmax.f32 %v2155, 0.0
  %v2235 = vmax.f32 %v2158, 0.0
  %v2236 = vmax.f32 %v2161, 0.0
  %v2237 = vmax.f32 %v2164, 0.0
  %v2238 = vmax.f32 %v2167, 0.0
  %v2239 = vmax.f32 %v2170, 0.0
  %v2240 = vmax.f32 %v2173, 0.0
  %v2241 = vmax.f32 %v2176, 0.0
  %vm2242 = vcmask 64512
  %2243 = vst.msk [vmem:[#allocation2] sm:$0xff] %vm2242, 0.0
  %2244 = vst.msk [vmem:[#allocation2 + $0x8] sm:$0xff] %vm2242, 0.0
  %2245 = vst.msk [vmem:[#allocation2 + $0x10] sm:$0xff] %vm2242, 0.0
  %vm2246 = vcmask 57344
  %2247 = vst.msk [vmem:[#allocation2 + $0x18] sm:$0x1] %vm2246, 0.0
  %2248 = vst.msk [vmem:[#allocation2 + $0x20] sm:$0xff] %vm2242, 0.0
  %2249 = vst.msk [vmem:[#allocation2 + $0x28] sm:$0xff] %vm2242, 0.0
  %2250 = vst.msk [vmem:[#allocation2 + $0x30] sm:$0xff] %vm2242, 0.0
  %2251 = vst.msk [vmem:[#allocation2 + $0x38] sm:$0x1] %vm2246, 0.0
  %2252 = vst.msk [vmem:[#allocation2 + $0x40] sm:$0xff] %vm2242, 0.0
  %2253 = vst.msk [vmem:[#allocation2 + $0x48] sm:$0xff] %vm2242, 0.0
  %2254 = vst.msk [vmem:[#allocation2 + $0x50] sm:$0xff] %vm2242, 0.0
  %2255 = vst.msk [vmem:[#allocation2 + $0x58] sm:$0x1] %vm2246, 0.0
  %2256 = vst.msk [vmem:[#allocation2 + $0x60] sm:$0xff] %vm2242, 0.0
  %2257 = vst.msk [vmem:[#allocation2 + $0x68] sm:$0xff] %vm2242, 0.0
  %2258 = vst.msk [vmem:[#allocation2 + $0x70] sm:$0xff] %vm2242, 0.0
  %2259 = vst.msk [vmem:[#allocation2 + $0x78] sm:$0x1] %vm2246, 0.0
  %2260 = vst.msk [vmem:[#allocation2 + $0x80] sm:$0xff] %vm2242, 0.0
  %2261 = vst.msk [vmem:[#allocation2 + $0x88] sm:$0xff] %vm2242, 0.0
  %2262 = vst.msk [vmem:[#allocation2 + $0x90] sm:$0xff] %vm2242, 0.0
  %2263 = vst.msk [vmem:[#allocation2 + $0x98] sm:$0x1] %vm2246, 0.0
  %2264 = vst.msk [vmem:[#allocation2 + $0xa0] sm:$0xff] %vm2242, 0.0
  %2265 = vst.msk [vmem:[#allocation2 + $0xa8] sm:$0xff] %vm2242, 0.0
  %2266 = vst.msk [vmem:[#allocation2 + $0xb0] sm:$0xff] %vm2242, 0.0
  %2267 = vst.msk [vmem:[#allocation2 + $0xb8] sm:$0x1] %vm2246, 0.0
  %2268 = vst.msk [vmem:[#allocation2 + $0xc0] sm:$0xff] %vm2242, 0.0
  %2269 = vst.msk [vmem:[#allocation2 + $0xc8] sm:$0xff] %vm2242, 0.0
  %2270 = vst.msk [vmem:[#allocation2 + $0xd0] sm:$0xff] %vm2242, 0.0
  %2271 = vst.msk [vmem:[#allocation2 + $0xd8] sm:$0x1] %vm2246, 0.0
  %2272 = vst.msk [vmem:[#allocation2 + $0xe0] sm:$0xff] %vm2242, 0.0
  %2273 = vst.msk [vmem:[#allocation2 + $0xe8] sm:$0xff] %vm2242, 0.0
  %2274 = vst.msk [vmem:[#allocation2 + $0xf0] sm:$0xff] %vm2242, 0.0
  %2275 = vst.msk [vmem:[#allocation2 + $0xf8] sm:$0x1] %vm2246, 0.0
  %2276 = vst.msk [vmem:[#allocation2 + $0x100] sm:$0xff] %vm2242, 0.0
  %2277 = vst.msk [vmem:[#allocation2 + $0x108] sm:$0xff] %vm2242, 0.0
  %2278 = vst.msk [vmem:[#allocation2 + $0x110] sm:$0xff] %vm2242, 0.0
  %2279 = vst.msk [vmem:[#allocation2 + $0x118] sm:$0x1] %vm2246, 0.0
  %2280 = vst.msk [vmem:[#allocation2 + $0x120] sm:$0xff] %vm2242, 0.0
  %2281 = vst.msk [vmem:[#allocation2 + $0x128] sm:$0xff] %vm2242, 0.0
  %2282 = vst.msk [vmem:[#allocation2 + $0x130] sm:$0xff] %vm2242, 0.0
  %2283 = vst.msk [vmem:[#allocation2 + $0x138] sm:$0x1] %vm2246, 0.0
  %2284 = vst.msk [vmem:[#allocation2 + $0x140] sm:$0xff] %vm2242, 0.0
  %2285 = vst.msk [vmem:[#allocation2 + $0x148] sm:$0xff] %vm2242, 0.0
  %2286 = vst.msk [vmem:[#allocation2 + $0x150] sm:$0xff] %vm2242, 0.0
  %2287 = vst.msk [vmem:[#allocation2 + $0x158] sm:$0x1] %vm2246, 0.0
  %2288 = vst.msk [vmem:[#allocation2 + $0x160] sm:$0xff] %vm2242, 0.0
  %2289 = vst.msk [vmem:[#allocation2 + $0x168] sm:$0xff] %vm2242, 0.0
  %2290 = vst.msk [vmem:[#allocation2 + $0x170] sm:$0xff] %vm2242, 0.0
  %2291 = vst.msk [vmem:[#allocation2 + $0x178] sm:$0x1] %vm2246, 0.0
  %2292 = vst.msk [vmem:[#allocation2 + $0x180] sm:$0xff] %vm2242, 0.0
  %2293 = vst.msk [vmem:[#allocation2 + $0x188] sm:$0xff] %vm2242, 0.0
  %2294 = vst.msk [vmem:[#allocation2 + $0x190] sm:$0xff] %vm2242, 0.0
  %2295 = vst.msk [vmem:[#allocation2 + $0x198] sm:$0x1] %vm2246, 0.0
  %2296 = vst.msk [vmem:[#allocation2 + $0x1a0] sm:$0xff] %vm2242, 0.0
  %2297 = vst.msk [vmem:[#allocation2 + $0x1a8] sm:$0xff] %vm2242, 0.0
  %2298 = vst.msk [vmem:[#allocation2 + $0x1b0] sm:$0xff] %vm2242, 0.0
  %2299 = vst.msk [vmem:[#allocation2 + $0x1b8] sm:$0x1] %vm2246, 0.0
  %2300 = vst.msk [vmem:[#allocation2 + $0x1c0] sm:$0xff] %vm2242, 0.0
  %2301 = vst.msk [vmem:[#allocation2 + $0x1c8] sm:$0xff] %vm2242, 0.0
  %2302 = vst.msk [vmem:[#allocation2 + $0x1d0] sm:$0xff] %vm2242, 0.0
  %2303 = vst.msk [vmem:[#allocation2 + $0x1d8] sm:$0x1] %vm2246, 0.0
  %2304 = vst.msk [vmem:[#allocation2 + $0x1e0] sm:$0xff] %vm2242, 0.0
  %2305 = vst.msk [vmem:[#allocation2 + $0x1e8] sm:$0xff] %vm2242, 0.0
  %2306 = vst.msk [vmem:[#allocation2 + $0x1f0] sm:$0xff] %vm2242, 0.0
  %2307 = vst.msk [vmem:[#allocation2 + $0x1f8] sm:$0x1] %vm2246, 0.0
  %2308 = vst.msk [vmem:[#allocation2 + $0x200] sm:$0xff] %vm2242, 0.0
  %2309 = vst.msk [vmem:[#allocation2 + $0x208] sm:$0xff] %vm2242, 0.0
  %2310 = vst.msk [vmem:[#allocation2 + $0x210] sm:$0xff] %vm2242, 0.0
  %2311 = vst.msk [vmem:[#allocation2 + $0x218] sm:$0x1] %vm2246, 0.0
  %2312 = vst.msk [vmem:[#allocation2 + $0x220] sm:$0xff] %vm2242, 0.0
  %2313 = vst.msk [vmem:[#allocation2 + $0x228] sm:$0xff] %vm2242, 0.0
  %2314 = vst.msk [vmem:[#allocation2 + $0x230] sm:$0xff] %vm2242, 0.0
  %2315 = vst.msk [vmem:[#allocation2 + $0x238] sm:$0x1] %vm2246, 0.0
  %2316 = vst.msk [vmem:[#allocation2 + $0x240] sm:$0xff] %vm2242, 0.0
  %2317 = vst.msk [vmem:[#allocation2 + $0x248] sm:$0xff] %vm2242, 0.0
  %2318 = vst.msk [vmem:[#allocation2 + $0x250] sm:$0xff] %vm2242, 0.0
  %2319 = vst.msk [vmem:[#allocation2 + $0x258] sm:$0x1] %vm2246, 0.0
  %2320 = vst.msk [vmem:[#allocation2 + $0x260] sm:$0xff] %vm2242, 0.0
  %2321 = vst.msk [vmem:[#allocation2 + $0x268] sm:$0xff] %vm2242, 0.0
  %2322 = vst.msk [vmem:[#allocation2 + $0x270] sm:$0xff] %vm2242, 0.0
  %2323 = vst.msk [vmem:[#allocation2 + $0x278] sm:$0x1] %vm2246, 0.0
  %2324 = vst.msk [vmem:[#allocation2 + $0x280] sm:$0xff] %vm2242, 0.0
  %2325 = vst.msk [vmem:[#allocation2 + $0x288] sm:$0xff] %vm2242, 0.0
  %2326 = vst.msk [vmem:[#allocation2 + $0x290] sm:$0xff] %vm2242, 0.0
  %2327 = vst.msk [vmem:[#allocation2 + $0x298] sm:$0x1] %vm2246, 0.0
  %2328 = vst.msk [vmem:[#allocation2 + $0x2a0] sm:$0xff] %vm2242, 0.0
  %2329 = vst.msk [vmem:[#allocation2 + $0x2a8] sm:$0xff] %vm2242, 0.0
  %2330 = vst.msk [vmem:[#allocation2 + $0x2b0] sm:$0xff] %vm2242, 0.0
  %2331 = vst.msk [vmem:[#allocation2 + $0x2b8] sm:$0x1] %vm2246, 0.0
  %2332 = vst.msk [vmem:[#allocation2 + $0x2c0] sm:$0xff] %vm2242, 0.0
  %2333 = vst.msk [vmem:[#allocation2 + $0x2c8] sm:$0xff] %vm2242, 0.0
  %2334 = vst.msk [vmem:[#allocation2 + $0x2d0] sm:$0xff] %vm2242, 0.0
  %2335 = vst.msk [vmem:[#allocation2 + $0x2d8] sm:$0x1] %vm2246, 0.0
  %2336 = vst.msk [vmem:[#allocation2 + $0x2e0] sm:$0xff] %vm2242, 0.0
  %2337 = vst.msk [vmem:[#allocation2 + $0x2e8] sm:$0xff] %vm2242, 0.0
  %2338 = vst.msk [vmem:[#allocation2 + $0x2f0] sm:$0xff] %vm2242, 0.0
  %2339 = vst.msk [vmem:[#allocation2 + $0x2f8] sm:$0x1] %vm2246, 0.0
  %2340 = vst.msk [vmem:[#allocation2 + $0x300] sm:$0xff] %vm2242, 0.0
  %2341 = vst.msk [vmem:[#allocation2 + $0x308] sm:$0xff] %vm2242, 0.0
  %2342 = vst.msk [vmem:[#allocation2 + $0x310] sm:$0xff] %vm2242, 0.0
  %2343 = vst.msk [vmem:[#allocation2 + $0x318] sm:$0x1] %vm2246, 0.0
  %2344 = vst.msk [vmem:[#allocation2 + $0x320] sm:$0xff] %vm2242, 0.0
  %2345 = vst.msk [vmem:[#allocation2 + $0x328] sm:$0xff] %vm2242, 0.0
  %2346 = vst.msk [vmem:[#allocation2 + $0x330] sm:$0xff] %vm2242, 0.0
  %2347 = vst.msk [vmem:[#allocation2 + $0x338] sm:$0x1] %vm2246, 0.0
  %2348 = vst.msk [vmem:[#allocation2 + $0x340] sm:$0xff] %vm2242, 0.0
  %2349 = vst.msk [vmem:[#allocation2 + $0x348] sm:$0xff] %vm2242, 0.0
  %2350 = vst.msk [vmem:[#allocation2 + $0x350] sm:$0xff] %vm2242, 0.0
  %2351 = vst.msk [vmem:[#allocation2 + $0x358] sm:$0x1] %vm2246, 0.0
  %2352 = vst.msk [vmem:[#allocation2 + $0x360] sm:$0xff] %vm2242, 0.0
  %2353 = vst.msk [vmem:[#allocation2 + $0x368] sm:$0xff] %vm2242, 0.0
  %2354 = vst.msk [vmem:[#allocation2 + $0x370] sm:$0xff] %vm2242, 0.0
  %2355 = vst.msk [vmem:[#allocation2 + $0x378] sm:$0x1] %vm2246, 0.0
  %2356 = vst.msk [vmem:[#allocation2 + $0x380] sm:$0xff] %vm2242, 0.0
  %2357 = vst.msk [vmem:[#allocation2 + $0x388] sm:$0xff] %vm2242, 0.0
  %2358 = vst.msk [vmem:[#allocation2 + $0x390] sm:$0xff] %vm2242, 0.0
  %2359 = vst.msk [vmem:[#allocation2 + $0x398] sm:$0x1] %vm2246, 0.0
  %2360 = vst.msk [vmem:[#allocation2 + $0x3a0] sm:$0xff] %vm2242, 0.0
  %2361 = vst.msk [vmem:[#allocation2 + $0x3a8] sm:$0xff] %vm2242, 0.0
  %2362 = vst.msk [vmem:[#allocation2 + $0x3b0] sm:$0xff] %vm2242, 0.0
  %2363 = vst.msk [vmem:[#allocation2 + $0x3b8] sm:$0x1] %vm2246, 0.0
  %2364 = vst.msk [vmem:[#allocation2 + $0x3c0] sm:$0xff] %vm2242, 0.0
  %2365 = vst.msk [vmem:[#allocation2 + $0x3c8] sm:$0xff] %vm2242, 0.0
  %2366 = vst.msk [vmem:[#allocation2 + $0x3d0] sm:$0xff] %vm2242, 0.0
  %2367 = vst.msk [vmem:[#allocation2 + $0x3d8] sm:$0x1] %vm2246, 0.0
  %2368 = vst.msk [vmem:[#allocation2 + $0x3e0] sm:$0xff] %vm2242, 0.0
  %2369 = vst.msk [vmem:[#allocation2 + $0x3e8] sm:$0xff] %vm2242, 0.0
  %2370 = vst.msk [vmem:[#allocation2 + $0x3f0] sm:$0xff] %vm2242, 0.0
  %2371 = vst.msk [vmem:[#allocation2 + $0x3f8] sm:$0x1] %vm2246, 0.0
  %2372 = vst.msk [vmem:[#allocation2 + $0x400] sm:$0xff] %vm2242, 0.0
  %2373 = vst.msk [vmem:[#allocation2 + $0x408] sm:$0xff] %vm2242, 0.0
  %2374 = vst.msk [vmem:[#allocation2 + $0x410] sm:$0xff] %vm2242, 0.0
  %2375 = vst.msk [vmem:[#allocation2 + $0x418] sm:$0x1] %vm2246, 0.0
  %2376 = vst.msk [vmem:[#allocation2 + $0x420] sm:$0xff] %vm2242, 0.0
  %2377 = vst.msk [vmem:[#allocation2 + $0x428] sm:$0xff] %vm2242, 0.0
  %2378 = vst.msk [vmem:[#allocation2 + $0x430] sm:$0xff] %vm2242, 0.0
  %2379 = vst.msk [vmem:[#allocation2 + $0x438] sm:$0x1] %vm2246, 0.0
  %2380 = vst.msk [vmem:[#allocation2 + $0x440] sm:$0xff] %vm2242, 0.0
  %2381 = vst.msk [vmem:[#allocation2 + $0x448] sm:$0xff] %vm2242, 0.0
  %2382 = vst.msk [vmem:[#allocation2 + $0x450] sm:$0xff] %vm2242, 0.0
  %2383 = vst.msk [vmem:[#allocation2 + $0x458] sm:$0x1] %vm2246, 0.0
  %2384 = vst.msk [vmem:[#allocation2 + $0x460] sm:$0xff] %vm2242, 0.0
  %2385 = vst.msk [vmem:[#allocation2 + $0x468] sm:$0xff] %vm2242, 0.0
  %2386 = vst.msk [vmem:[#allocation2 + $0x470] sm:$0xff] %vm2242, 0.0
  %2387 = vst.msk [vmem:[#allocation2 + $0x478] sm:$0x1] %vm2246, 0.0
  %s2388 = scalar_lea.vmem [#allocation2], 32
  %2389 = vst.msk [vmem:[%s2388 + $0x8] sm:$0xff] %vm2242, %v2178
  %2390 = vst.msk [vmem:[%s2388 + $0x10] sm:$0xff] %vm2242, %v2179
  %2391 = vst.msk [vmem:[%s2388 + $0x28] sm:$0xff] %vm2242, %v2180
  %2392 = vst.msk [vmem:[%s2388 + $0x30] sm:$0xff] %vm2242, %v2181
  %2393 = vst.msk [vmem:[%s2388 + $0x48] sm:$0xff] %vm2242, %v2182
  %2394 = vst.msk [vmem:[%s2388 + $0x50] sm:$0xff] %vm2242, %v2183
  %2395 = vst.msk [vmem:[%s2388 + $0x68] sm:$0xff] %vm2242, %v2184
  %2396 = vst.msk [vmem:[%s2388 + $0x70] sm:$0xff] %vm2242, %v2185
  %2397 = vst.msk [vmem:[%s2388 + $0x88] sm:$0xff] %vm2242, %v2186
  %2398 = vst.msk [vmem:[%s2388 + $0x90] sm:$0xff] %vm2242, %v2187
  %2399 = vst.msk [vmem:[%s2388 + $0xa8] sm:$0xff] %vm2242, %v2188
  %2400 = vst.msk [vmem:[%s2388 + $0xb0] sm:$0xff] %vm2242, %v2189
  %2401 = vst.msk [vmem:[%s2388 + $0xc8] sm:$0xff] %vm2242, %v2190
  %2402 = vst.msk [vmem:[%s2388 + $0xd0] sm:$0xff] %vm2242, %v2191
  %2403 = vst.msk [vmem:[%s2388 + $0xe8] sm:$0xff] %vm2242, %v2192
  %2404 = vst.msk [vmem:[%s2388 + $0xf0] sm:$0xff] %vm2242, %v2193
  %2405 = vst.msk [vmem:[%s2388 + $0x108] sm:$0xff] %vm2242, %v2194
  %2406 = vst.msk [vmem:[%s2388 + $0x110] sm:$0xff] %vm2242, %v2195
  %2407 = vst.msk [vmem:[%s2388 + $0x128] sm:$0xff] %vm2242, %v2196
  %2408 = vst.msk [vmem:[%s2388 + $0x130] sm:$0xff] %vm2242, %v2197
  %2409 = vst.msk [vmem:[%s2388 + $0x148] sm:$0xff] %vm2242, %v2198
  %2410 = vst.msk [vmem:[%s2388 + $0x150] sm:$0xff] %vm2242, %v2199
  %2411 = vst.msk [vmem:[%s2388 + $0x168] sm:$0xff] %vm2242, %v2200
  %2412 = vst.msk [vmem:[%s2388 + $0x170] sm:$0xff] %vm2242, %v2201
  %2413 = vst.msk [vmem:[%s2388 + $0x188] sm:$0xff] %vm2242, %v2202
  %2414 = vst.msk [vmem:[%s2388 + $0x190] sm:$0xff] %vm2242, %v2203
  %2415 = vst.msk [vmem:[%s2388 + $0x1a8] sm:$0xff] %vm2242, %v2204
  %2416 = vst.msk [vmem:[%s2388 + $0x1b0] sm:$0xff] %vm2242, %v2205
  %2417 = vst.msk [vmem:[%s2388 + $0x1c8] sm:$0xff] %vm2242, %v2206
  %2418 = vst.msk [vmem:[%s2388 + $0x1d0] sm:$0xff] %vm2242, %v2207
  %2419 = vst.msk [vmem:[%s2388 + $0x1e8] sm:$0xff] %vm2242, %v2208
  %2420 = vst.msk [vmem:[%s2388 + $0x1f0] sm:$0xff] %vm2242, %v2209
  %2421 = vst.msk [vmem:[%s2388 + $0x248] sm:$0xff] %vm2242, %v2210
  %2422 = vst.msk [vmem:[%s2388 + $0x250] sm:$0xff] %vm2242, %v2211
  %2423 = vst.msk [vmem:[%s2388 + $0x268] sm:$0xff] %vm2242, %v2212
  %2424 = vst.msk [vmem:[%s2388 + $0x270] sm:$0xff] %vm2242, %v2213
  %2425 = vst.msk [vmem:[%s2388 + $0x288] sm:$0xff] %vm2242, %v2214
  %2426 = vst.msk [vmem:[%s2388 + $0x290] sm:$0xff] %vm2242, %v2215
  %2427 = vst.msk [vmem:[%s2388 + $0x2a8] sm:$0xff] %vm2242, %v2216
  %2428 = vst.msk [vmem:[%s2388 + $0x2b0] sm:$0xff] %vm2242, %v2217
  %2429 = vst.msk [vmem:[%s2388 + $0x2c8] sm:$0xff] %vm2242, %v2218
  %2430 = vst.msk [vmem:[%s2388 + $0x2d0] sm:$0xff] %vm2242, %v2219
  %2431 = vst.msk [vmem:[%s2388 + $0x2e8] sm:$0xff] %vm2242, %v2220
  %2432 = vst.msk [vmem:[%s2388 + $0x2f0] sm:$0xff] %vm2242, %v2221
  %2433 = vst.msk [vmem:[%s2388 + $0x308] sm:$0xff] %vm2242, %v2222
  %2434 = vst.msk [vmem:[%s2388 + $0x310] sm:$0xff] %vm2242, %v2223
  %2435 = vst.msk [vmem:[%s2388 + $0x328] sm:$0xff] %vm2242, %v2224
  %2436 = vst.msk [vmem:[%s2388 + $0x330] sm:$0xff] %vm2242, %v2225
  %2437 = vst.msk [vmem:[%s2388 + $0x348] sm:$0xff] %vm2242, %v2226
  %2438 = vst.msk [vmem:[%s2388 + $0x350] sm:$0xff] %vm2242, %v2227
  %2439 = vst.msk [vmem:[%s2388 + $0x368] sm:$0xff] %vm2242, %v2228
  %2440 = vst.msk [vmem:[%s2388 + $0x370] sm:$0xff] %vm2242, %v2229
  %2441 = vst.msk [vmem:[%s2388 + $0x388] sm:$0xff] %vm2242, %v2230
  %2442 = vst.msk [vmem:[%s2388 + $0x390] sm:$0xff] %vm2242, %v2231
  %2443 = vst.msk [vmem:[%s2388 + $0x3a8] sm:$0xff] %vm2242, %v2232
  %2444 = vst.msk [vmem:[%s2388 + $0x3b0] sm:$0xff] %vm2242, %v2233
  %2445 = vst.msk [vmem:[%s2388 + $0x3c8] sm:$0xff] %vm2242, %v2234
  %2446 = vst.msk [vmem:[%s2388 + $0x3d0] sm:$0xff] %vm2242, %v2235
  %2447 = vst.msk [vmem:[%s2388 + $0x3e8] sm:$0xff] %vm2242, %v2236
  %2448 = vst.msk [vmem:[%s2388 + $0x3f0] sm:$0xff] %vm2242, %v2237
  %2449 = vst.msk [vmem:[%s2388 + $0x408] sm:$0xff] %vm2242, %v2238
  %2450 = vst.msk [vmem:[%s2388 + $0x410] sm:$0xff] %vm2242, %v2239
  %2451 = vst.msk [vmem:[%s2388 + $0x428] sm:$0xff] %vm2242, %v2240
  %2452 = vst.msk [vmem:[%s2388 + $0x430] sm:$0xff] %vm2242, %v2241
  %v2453 = vld [vmem:[%s4] sm:$0xff]
  %v2454 = vld [vmem:[%s4 + $0x8] sm:$0x1]
  %v2455 = vld [vmem:[#allocation2 + $0x7] sm:$0xff]
  %v2456 = vld [vmem:[#allocation2 + $0xf] sm:$0xff]
  %v2457 = vld [vmem:[#allocation2 + $0x27] sm:$0xff]
  %v2458 = vld [vmem:[#allocation2 + $0x2f] sm:$0xff]
  %v2459 = vld [vmem:[#allocation2 + $0x47] sm:$0xff]
  %v2460 = vld [vmem:[#allocation2 + $0x4f] sm:$0xff]
  %v2461 = vld [vmem:[#allocation2 + $0x67] sm:$0xff]
  %v2462 = vld [vmem:[#allocation2 + $0x6f] sm:$0xff]
  %v2463 = vld [vmem:[#allocation2 + $0x87] sm:$0xff]
  %v2464 = vld [vmem:[#allocation2 + $0x8f] sm:$0xff]
  %v2465 = vld [vmem:[#allocation2 + $0xa7] sm:$0xff]
  %v2466 = vld [vmem:[#allocation2 + $0xaf] sm:$0xff]
  %v2467 = vld [vmem:[#allocation2 + $0xc7] sm:$0xff]
  %v2468 = vld [vmem:[#allocation2 + $0xcf] sm:$0xff]
  %v2469 = vld [vmem:[#allocation2 + $0xe7] sm:$0xff]
  %v2470 = vld [vmem:[#allocation2 + $0xef] sm:$0xff]
  %v2471 = vld [vmem:[#allocation2 + $0x107] sm:$0xff]
  %v2472 = vld [vmem:[#allocation2 + $0x10f] sm:$0xff]
  %v2473 = vld [vmem:[#allocation2 + $0x127] sm:$0xff]
  %v2474 = vld [vmem:[#allocation2 + $0x12f] sm:$0xff]
  %v2475 = vld [vmem:[#allocation2 + $0x147] sm:$0xff]
  %v2476 = vld [vmem:[#allocation2 + $0x14f] sm:$0xff]
  %v2477 = vld [vmem:[#allocation2 + $0x167] sm:$0xff]
  %v2478 = vld [vmem:[#allocation2 + $0x16f] sm:$0xff]
  %v2479 = vld [vmem:[#allocation2 + $0x187] sm:$0xff]
  %v2480 = vld [vmem:[#allocation2 + $0x18f] sm:$0xff]
  %v2481 = vld [vmem:[#allocation2 + $0x1a7] sm:$0xff]
  %v2482 = vld [vmem:[#allocation2 + $0x1af] sm:$0xff]
  %v2483 = vld [vmem:[#allocation2 + $0x1c7] sm:$0xff]
  %v2484 = vld [vmem:[#allocation2 + $0x1cf] sm:$0xff]
  %v2485 = vld [vmem:[#allocation2 + $0x1e7] sm:$0xff]
  %v2486 = vld [vmem:[#allocation2 + $0x1ef] sm:$0xff]
  %v2487 = vld [vmem:[#allocation2 + $0x247] sm:$0xff]
  %v2488 = vld [vmem:[#allocation2 + $0x24f] sm:$0xff]
  %v2489 = vld [vmem:[#allocation2 + $0x267] sm:$0xff]
  %v2490 = vld [vmem:[#allocation2 + $0x26f] sm:$0xff]
  %v2491 = vld [vmem:[#allocation2 + $0x287] sm:$0xff]
  %v2492 = vld [vmem:[#allocation2 + $0x28f] sm:$0xff]
  %v2493 = vld [vmem:[#allocation2 + $0x2a7] sm:$0xff]
  %v2494 = vld [vmem:[#allocation2 + $0x2af] sm:$0xff]
  %v2495 = vld [vmem:[#allocation2 + $0x2c7] sm:$0xff]
  %v2496 = vld [vmem:[#allocation2 + $0x2cf] sm:$0xff]
  %v2497 = vld [vmem:[#allocation2 + $0x2e7] sm:$0xff]
  %v2498 = vld [vmem:[#allocation2 + $0x2ef] sm:$0xff]
  %v2499 = vld [vmem:[#allocation2 + $0x307] sm:$0xff]
  %v2500 = vld [vmem:[#allocation2 + $0x30f] sm:$0xff]
  %v2501 = vld [vmem:[#allocation2 + $0x327] sm:$0xff]
  %v2502 = vld [vmem:[#allocation2 + $0x32f] sm:$0xff]
  %v2503 = vld [vmem:[#allocation2 + $0x347] sm:$0xff]
  %v2504 = vld [vmem:[#allocation2 + $0x34f] sm:$0xff]
  %v2505 = vld [vmem:[#allocation2 + $0x367] sm:$0xff]
  %v2506 = vld [vmem:[#allocation2 + $0x36f] sm:$0xff]
  %v2507 = vld [vmem:[#allocation2 + $0x387] sm:$0xff]
  %v2508 = vld [vmem:[#allocation2 + $0x38f] sm:$0xff]
  %v2509 = vld [vmem:[#allocation2 + $0x3a7] sm:$0xff]
  %v2510 = vld [vmem:[#allocation2 + $0x3af] sm:$0xff]
  %v2511 = vld [vmem:[#allocation2 + $0x3c7] sm:$0xff]
  %v2512 = vld [vmem:[#allocation2 + $0x3cf] sm:$0xff]
  %v2513 = vld [vmem:[#allocation2 + $0x3e7] sm:$0xff]
  %v2514 = vld [vmem:[#allocation2 + $0x3ef] sm:$0xff]
  %v2515 = vld [vmem:[#allocation2 + $0x407] sm:$0xff]
  %v2516 = vld [vmem:[#allocation2 + $0x40f] sm:$0xff]
  %v2517 = vld [vmem:[#allocation2 + $0x427] sm:$0xff]
  %v2518 = vld [vmem:[#allocation2 + $0x42f] sm:$0xff]
  %v2519 = vperm.slane %v2453, 0
  %v2520 = vmul.f32 %v2455, %v2519
  %v2521 = vmul.f32 %v2456, %v2519
  %v2522 = vmul.f32 %v2457, %v2519
  %v2523 = vmul.f32 %v2458, %v2519
  %v2524 = vmul.f32 %v2459, %v2519
  %v2525 = vmul.f32 %v2460, %v2519
  %v2526 = vmul.f32 %v2461, %v2519
  %v2527 = vmul.f32 %v2462, %v2519
  %v2528 = vmul.f32 %v2463, %v2519
  %v2529 = vmul.f32 %v2464, %v2519
  %v2530 = vmul.f32 %v2465, %v2519
  %v2531 = vmul.f32 %v2466, %v2519
  %v2532 = vmul.f32 %v2467, %v2519
  %v2533 = vmul.f32 %v2468, %v2519
  %v2534 = vmul.f32 %v2469, %v2519
  %v2535 = vmul.f32 %v2470, %v2519
  %v2536 = vmul.f32 %v2471, %v2519
  %v2537 = vmul.f32 %v2472, %v2519
  %v2538 = vmul.f32 %v2473, %v2519
  %v2539 = vmul.f32 %v2474, %v2519
  %v2540 = vmul.f32 %v2475, %v2519
  %v2541 = vmul.f32 %v2476, %v2519
  %v2542 = vmul.f32 %v2477, %v2519
  %v2543 = vmul.f32 %v2478, %v2519
  %v2544 = vmul.f32 %v2479, %v2519
  %v2545 = vmul.f32 %v2480, %v2519
  %v2546 = vmul.f32 %v2481, %v2519
  %v2547 = vmul.f32 %v2482, %v2519
  %v2548 = vmul.f32 %v2483, %v2519
  %v2549 = vmul.f32 %v2484, %v2519
  %v2550 = vmul.f32 %v2485, %v2519
  %v2551 = vmul.f32 %v2486, %v2519
  %v2552 = vmul.f32 %v2487, %v2519
  %v2553 = vmul.f32 %v2488, %v2519
  %v2554 = vmul.f32 %v2489, %v2519
  %v2555 = vmul.f32 %v2490, %v2519
  %v2556 = vmul.f32 %v2491, %v2519
  %v2557 = vmul.f32 %v2492, %v2519
  %v2558 = vmul.f32 %v2493, %v2519
  %v2559 = vmul.f32 %v2494, %v2519
  %v2560 = vmul.f32 %v2495, %v2519
  %v2561 = vmul.f32 %v2496, %v2519
  %v2562 = vmul.f32 %v2497, %v2519
  %v2563 = vmul.f32 %v2498, %v2519
  %v2564 = vmul.f32 %v2499, %v2519
  %v2565 = vmul.f32 %v2500, %v2519
  %v2566 = vmul.f32 %v2501, %v2519
  %v2567 = vmul.f32 %v2502, %v2519
  %v2568 = vmul.f32 %v2503, %v2519
  %v2569 = vmul.f32 %v2504, %v2519
  %v2570 = vmul.f32 %v2505, %v2519
  %v2571 = vmul.f32 %v2506, %v2519
  %v2572 = vmul.f32 %v2507, %v2519
  %v2573 = vmul.f32 %v2508, %v2519
  %v2574 = vmul.f32 %v2509, %v2519
  %v2575 = vmul.f32 %v2510, %v2519
  %v2576 = vmul.f32 %v2511, %v2519
  %v2577 = vmul.f32 %v2512, %v2519
  %v2578 = vmul.f32 %v2513, %v2519
  %v2579 = vmul.f32 %v2514, %v2519
  %v2580 = vmul.f32 %v2515, %v2519
  %v2581 = vmul.f32 %v2516, %v2519
  %v2582 = vmul.f32 %v2517, %v2519
  %v2583 = vmul.f32 %v2518, %v2519
  %v2584 = vadd.f32 %v2520, 0.0
  %v2585 = vadd.f32 %v2521, 0.0
  %v2586 = vadd.f32 %v2522, 0.0
  %v2587 = vadd.f32 %v2523, 0.0
  %v2588 = vadd.f32 %v2524, 0.0
  %v2589 = vadd.f32 %v2525, 0.0
  %v2590 = vadd.f32 %v2526, 0.0
  %v2591 = vadd.f32 %v2527, 0.0
  %v2592 = vadd.f32 %v2528, 0.0
  %v2593 = vadd.f32 %v2529, 0.0
  %v2594 = vadd.f32 %v2530, 0.0
  %v2595 = vadd.f32 %v2531, 0.0
  %v2596 = vadd.f32 %v2532, 0.0
  %v2597 = vadd.f32 %v2533, 0.0
  %v2598 = vadd.f32 %v2534, 0.0
  %v2599 = vadd.f32 %v2535, 0.0
  %v2600 = vadd.f32 %v2536, 0.0
  %v2601 = vadd.f32 %v2537, 0.0
  %v2602 = vadd.f32 %v2538, 0.0
  %v2603 = vadd.f32 %v2539, 0.0
  %v2604 = vadd.f32 %v2540, 0.0
  %v2605 = vadd.f32 %v2541, 0.0
  %v2606 = vadd.f32 %v2542, 0.0
  %v2607 = vadd.f32 %v2543, 0.0
  %v2608 = vadd.f32 %v2544, 0.0
  %v2609 = vadd.f32 %v2545, 0.0
  %v2610 = vadd.f32 %v2546, 0.0
  %v2611 = vadd.f32 %v2547, 0.0
  %v2612 = vadd.f32 %v2548, 0.0
  %v2613 = vadd.f32 %v2549, 0.0
  %v2614 = vadd.f32 %v2550, 0.0
  %v2615 = vadd.f32 %v2551, 0.0
  %v2616 = vadd.f32 %v2552, 0.0
  %v2617 = vadd.f32 %v2553, 0.0
  %v2618 = vadd.f32 %v2554, 0.0
  %v2619 = vadd.f32 %v2555, 0.0
  %v2620 = vadd.f32 %v2556, 0.0
  %v2621 = vadd.f32 %v2557, 0.0
  %v2622 = vadd.f32 %v2558, 0.0
  %v2623 = vadd.f32 %v2559, 0.0
  %v2624 = vadd.f32 %v2560, 0.0
  %v2625 = vadd.f32 %v2561, 0.0
  %v2626 = vadd.f32 %v2562, 0.0
  %v2627 = vadd.f32 %v2563, 0.0
  %v2628 = vadd.f32 %v2564, 0.0
  %v2629 = vadd.f32 %v2565, 0.0
  %v2630 = vadd.f32 %v2566, 0.0
  %v2631 = vadd.f32 %v2567, 0.0
  %v2632 = vadd.f32 %v2568, 0.0
  %v2633 = vadd.f32 %v2569, 0.0
  %v2634 = vadd.f32 %v2570, 0.0
  %v2635 = vadd.f32 %v2571, 0.0
  %v2636 = vadd.f32 %v2572, 0.0
  %v2637 = vadd.f32 %v2573, 0.0
  %v2638 = vadd.f32 %v2574, 0.0
  %v2639 = vadd.f32 %v2575, 0.0
  %v2640 = vadd.f32 %v2576, 0.0
  %v2641 = vadd.f32 %v2577, 0.0
  %v2642 = vadd.f32 %v2578, 0.0
  %v2643 = vadd.f32 %v2579, 0.0
  %v2644 = vadd.f32 %v2580, 0.0
  %v2645 = vadd.f32 %v2581, 0.0
  %v2646 = vadd.f32 %v2582, 0.0
  %v2647 = vadd.f32 %v2583, 0.0
  %v2648 = vld [vmem:[#allocation2 + $0x8] sm:$0xff]
  %v2649 = vld [vmem:[#allocation2 + $0x10] sm:$0xff]
  %v2650 = vld [vmem:[#allocation2 + $0x28] sm:$0xff]
  %v2651 = vld [vmem:[#allocation2 + $0x30] sm:$0xff]
  %v2652 = vld [vmem:[#allocation2 + $0x48] sm:$0xff]
  %v2653 = vld [vmem:[#allocation2 + $0x50] sm:$0xff]
  %v2654 = vld [vmem:[#allocation2 + $0x68] sm:$0xff]
  %v2655 = vld [vmem:[#allocation2 + $0x70] sm:$0xff]
  %v2656 = vld [vmem:[#allocation2 + $0x88] sm:$0xff]
  %v2657 = vld [vmem:[#allocation2 + $0x90] sm:$0xff]
  %v2658 = vld [vmem:[#allocation2 + $0xa8] sm:$0xff]
  %v2659 = vld [vmem:[#allocation2 + $0xb0] sm:$0xff]
  %v2660 = vld [vmem:[#allocation2 + $0xc8] sm:$0xff]
  %v2661 = vld [vmem:[#allocation2 + $0xd0] sm:$0xff]
  %v2662 = vld [vmem:[#allocation2 + $0xe8] sm:$0xff]
  %v2663 = vld [vmem:[#allocation2 + $0xf0] sm:$0xff]
  %v2664 = vld [vmem:[#allocation2 + $0x108] sm:$0xff]
  %v2665 = vld [vmem:[#allocation2 + $0x110] sm:$0xff]
  %v2666 = vld [vmem:[#allocation2 + $0x128] sm:$0xff]
  %v2667 = vld [vmem:[#allocation2 + $0x130] sm:$0xff]
  %v2668 = vld [vmem:[#allocation2 + $0x148] sm:$0xff]
  %v2669 = vld [vmem:[#allocation2 + $0x150] sm:$0xff]
  %v2670 = vld [vmem:[#allocation2 + $0x168] sm:$0xff]
  %v2671 = vld [vmem:[#allocation2 + $0x170] sm:$0xff]
  %v2672 = vld [vmem:[#allocation2 + $0x188] sm:$0xff]
  %v2673 = vld [vmem:[#allocation2 + $0x190] sm:$0xff]
  %v2674 = vld [vmem:[#allocation2 + $0x1a8] sm:$0xff]
  %v2675 = vld [vmem:[#allocation2 + $0x1b0] sm:$0xff]
  %v2676 = vld [vmem:[#allocation2 + $0x1c8] sm:$0xff]
  %v2677 = vld [vmem:[#allocation2 + $0x1d0] sm:$0xff]
  %v2678 = vld [vmem:[#allocation2 + $0x1e8] sm:$0xff]
  %v2679 = vld [vmem:[#allocation2 + $0x1f0] sm:$0xff]
  %v2680 = vld [vmem:[#allocation2 + $0x248] sm:$0xff]
  %v2681 = vld [vmem:[#allocation2 + $0x250] sm:$0xff]
  %v2682 = vld [vmem:[#allocation2 + $0x268] sm:$0xff]
  %v2683 = vld [vmem:[#allocation2 + $0x270] sm:$0xff]
  %v2684 = vld [vmem:[#allocation2 + $0x288] sm:$0xff]
  %v2685 = vld [vmem:[#allocation2 + $0x290] sm:$0xff]
  %v2686 = vld [vmem:[#allocation2 + $0x2a8] sm:$0xff]
  %v2687 = vld [vmem:[#allocation2 + $0x2b0] sm:$0xff]
  %v2688 = vld [vmem:[#allocation2 + $0x2c8] sm:$0xff]
  %v2689 = vld [vmem:[#allocation2 + $0x2d0] sm:$0xff]
  %v2690 = vld [vmem:[#allocation2 + $0x2e8] sm:$0xff]
  %v2691 = vld [vmem:[#allocation2 + $0x2f0] sm:$0xff]
  %v2692 = vld [vmem:[#allocation2 + $0x308] sm:$0xff]
  %v2693 = vld [vmem:[#allocation2 + $0x310] sm:$0xff]
  %v2694 = vld [vmem:[#allocation2 + $0x328] sm:$0xff]
  %v2695 = vld [vmem:[#allocation2 + $0x330] sm:$0xff]
  %v2696 = vld [vmem:[#allocation2 + $0x348] sm:$0xff]
  %v2697 = vld [vmem:[#allocation2 + $0x350] sm:$0xff]
  %v2698 = vld [vmem:[#allocation2 + $0x368] sm:$0xff]
  %v2699 = vld [vmem:[#allocation2 + $0x370] sm:$0xff]
  %v2700 = vld [vmem:[#allocation2 + $0x388] sm:$0xff]
  %v2701 = vld [vmem:[#allocation2 + $0x390] sm:$0xff]
  %v2702 = vld [vmem:[#allocation2 + $0x3a8] sm:$0xff]
  %v2703 = vld [vmem:[#allocation2 + $0x3b0] sm:$0xff]
  %v2704 = vld [vmem:[#allocation2 + $0x3c8] sm:$0xff]
  %v2705 = vld [vmem:[#allocation2 + $0x3d0] sm:$0xff]
  %v2706 = vld [vmem:[#allocation2 + $0x3e8] sm:$0xff]
  %v2707 = vld [vmem:[#allocation2 + $0x3f0] sm:$0xff]
  %v2708 = vld [vmem:[#allocation2 + $0x408] sm:$0xff]
  %v2709 = vld [vmem:[#allocation2 + $0x410] sm:$0xff]
  %v2710 = vld [vmem:[#allocation2 + $0x428] sm:$0xff]
  %v2711 = vld [vmem:[#allocation2 + $0x430] sm:$0xff]
  %v2712 = vperm.slane %v2453, 1
  %v2713 = vmul.f32 %v2648, %v2712
  %v2714 = vmul.f32 %v2649, %v2712
  %v2715 = vmul.f32 %v2650, %v2712
  %v2716 = vmul.f32 %v2651, %v2712
  %v2717 = vmul.f32 %v2652, %v2712
  %v2718 = vmul.f32 %v2653, %v2712
  %v2719 = vmul.f32 %v2654, %v2712
  %v2720 = vmul.f32 %v2655, %v2712
  %v2721 = vmul.f32 %v2656, %v2712
  %v2722 = vmul.f32 %v2657, %v2712
  %v2723 = vmul.f32 %v2658, %v2712
  %v2724 = vmul.f32 %v2659, %v2712
  %v2725 = vmul.f32 %v2660, %v2712
  %v2726 = vmul.f32 %v2661, %v2712
  %v2727 = vmul.f32 %v2662, %v2712
  %v2728 = vmul.f32 %v2663, %v2712
  %v2729 = vmul.f32 %v2664, %v2712
  %v2730 = vmul.f32 %v2665, %v2712
  %v2731 = vmul.f32 %v2666, %v2712
  %v2732 = vmul.f32 %v2667, %v2712
  %v2733 = vmul.f32 %v2668, %v2712
  %v2734 = vmul.f32 %v2669, %v2712
  %v2735 = vmul.f32 %v2670, %v2712
  %v2736 = vmul.f32 %v2671, %v2712
  %v2737 = vmul.f32 %v2672, %v2712
  %v2738 = vmul.f32 %v2673, %v2712
  %v2739 = vmul.f32 %v2674, %v2712
  %v2740 = vmul.f32 %v2675, %v2712
  %v2741 = vmul.f32 %v2676, %v2712
  %v2742 = vmul.f32 %v2677, %v2712
  %v2743 = vmul.f32 %v2678, %v2712
  %v2744 = vmul.f32 %v2679, %v2712
  %v2745 = vmul.f32 %v2680, %v2712
  %v2746 = vmul.f32 %v2681, %v2712
  %v2747 = vmul.f32 %v2682, %v2712
  %v2748 = vmul.f32 %v2683, %v2712
  %v2749 = vmul.f32 %v2684, %v2712
  %v2750 = vmul.f32 %v2685, %v2712
  %v2751 = vmul.f32 %v2686, %v2712
  %v2752 = vmul.f32 %v2687, %v2712
  %v2753 = vmul.f32 %v2688, %v2712
  %v2754 = vmul.f32 %v2689, %v2712
  %v2755 = vmul.f32 %v2690, %v2712
  %v2756 = vmul.f32 %v2691, %v2712
  %v2757 = vmul.f32 %v2692, %v2712
  %v2758 = vmul.f32 %v2693, %v2712
  %v2759 = vmul.f32 %v2694, %v2712
  %v2760 = vmul.f32 %v2695, %v2712
  %v2761 = vmul.f32 %v2696, %v2712
  %v2762 = vmul.f32 %v2697, %v2712
  %v2763 = vmul.f32 %v2698, %v2712
  %v2764 = vmul.f32 %v2699, %v2712
  %v2765 = vmul.f32 %v2700, %v2712
  %v2766 = vmul.f32 %v2701, %v2712
  %v2767 = vmul.f32 %v2702, %v2712
  %v2768 = vmul.f32 %v2703, %v2712
  %v2769 = vmul.f32 %v2704, %v2712
  %v2770 = vmul.f32 %v2705, %v2712
  %v2771 = vmul.f32 %v2706, %v2712
  %v2772 = vmul.f32 %v2707, %v2712
  %v2773 = vmul.f32 %v2708, %v2712
  %v2774 = vmul.f32 %v2709, %v2712
  %v2775 = vmul.f32 %v2710, %v2712
  %v2776 = vmul.f32 %v2711, %v2712
  %v2777 = vadd.f32 %v2584, %v2713
  %v2778 = vadd.f32 %v2585, %v2714
  %v2779 = vadd.f32 %v2586, %v2715
  %v2780 = vadd.f32 %v2587, %v2716
  %v2781 = vadd.f32 %v2588, %v2717
  %v2782 = vadd.f32 %v2589, %v2718
  %v2783 = vadd.f32 %v2590, %v2719
  %v2784 = vadd.f32 %v2591, %v2720
  %v2785 = vadd.f32 %v2592, %v2721
  %v2786 = vadd.f32 %v2593, %v2722
  %v2787 = vadd.f32 %v2594, %v2723
  %v2788 = vadd.f32 %v2595, %v2724
  %v2789 = vadd.f32 %v2596, %v2725
  %v2790 = vadd.f32 %v2597, %v2726
  %v2791 = vadd.f32 %v2598, %v2727
  %v2792 = vadd.f32 %v2599, %v2728
  %v2793 = vadd.f32 %v2600, %v2729
  %v2794 = vadd.f32 %v2601, %v2730
  %v2795 = vadd.f32 %v2602, %v2731
  %v2796 = vadd.f32 %v2603, %v2732
  %v2797 = vadd.f32 %v2604, %v2733
  %v2798 = vadd.f32 %v2605, %v2734
  %v2799 = vadd.f32 %v2606, %v2735
  %v2800 = vadd.f32 %v2607, %v2736
  %v2801 = vadd.f32 %v2608, %v2737
  %v2802 = vadd.f32 %v2609, %v2738
  %v2803 = vadd.f32 %v2610, %v2739
  %v2804 = vadd.f32 %v2611, %v2740
  %v2805 = vadd.f32 %v2612, %v2741
  %v2806 = vadd.f32 %v2613, %v2742
  %v2807 = vadd.f32 %v2614, %v2743
  %v2808 = vadd.f32 %v2615, %v2744
  %v2809 = vadd.f32 %v2616, %v2745
  %v2810 = vadd.f32 %v2617, %v2746
  %v2811 = vadd.f32 %v2618, %v2747
  %v2812 = vadd.f32 %v2619, %v2748
  %v2813 = vadd.f32 %v2620, %v2749
  %v2814 = vadd.f32 %v2621, %v2750
  %v2815 = vadd.f32 %v2622, %v2751
  %v2816 = vadd.f32 %v2623, %v2752
  %v2817 = vadd.f32 %v2624, %v2753
  %v2818 = vadd.f32 %v2625, %v2754
  %v2819 = vadd.f32 %v2626, %v2755
  %v2820 = vadd.f32 %v2627, %v2756
  %v2821 = vadd.f32 %v2628, %v2757
  %v2822 = vadd.f32 %v2629, %v2758
  %v2823 = vadd.f32 %v2630, %v2759
  %v2824 = vadd.f32 %v2631, %v2760
  %v2825 = vadd.f32 %v2632, %v2761
  %v2826 = vadd.f32 %v2633, %v2762
  %v2827 = vadd.f32 %v2634, %v2763
  %v2828 = vadd.f32 %v2635, %v2764
  %v2829 = vadd.f32 %v2636, %v2765
  %v2830 = vadd.f32 %v2637, %v2766
  %v2831 = vadd.f32 %v2638, %v2767
  %v2832 = vadd.f32 %v2639, %v2768
  %v2833 = vadd.f32 %v2640, %v2769
  %v2834 = vadd.f32 %v2641, %v2770
  %v2835 = vadd.f32 %v2642, %v2771
  %v2836 = vadd.f32 %v2643, %v2772
  %v2837 = vadd.f32 %v2644, %v2773
  %v2838 = vadd.f32 %v2645, %v2774
  %v2839 = vadd.f32 %v2646, %v2775
  %v2840 = vadd.f32 %v2647, %v2776
  %v2841 = vld [vmem:[#allocation2 + $0x9] sm:$0xff]
  %v2842 = vld [vmem:[#allocation2 + $0x11] sm:$0xff]
  %v2843 = vld [vmem:[#allocation2 + $0x29] sm:$0xff]
  %v2844 = vld [vmem:[#allocation2 + $0x31] sm:$0xff]
  %v2845 = vld [vmem:[#allocation2 + $0x49] sm:$0xff]
  %v2846 = vld [vmem:[#allocation2 + $0x51] sm:$0xff]
  %v2847 = vld [vmem:[#allocation2 + $0x69] sm:$0xff]
  %v2848 = vld [vmem:[#allocation2 + $0x71] sm:$0xff]
  %v2849 = vld [vmem:[#allocation2 + $0x89] sm:$0xff]
  %v2850 = vld [vmem:[#allocation2 + $0x91] sm:$0xff]
  %v2851 = vld [vmem:[#allocation2 + $0xa9] sm:$0xff]
  %v2852 = vld [vmem:[#allocation2 + $0xb1] sm:$0xff]
  %v2853 = vld [vmem:[#allocation2 + $0xc9] sm:$0xff]
  %v2854 = vld [vmem:[#allocation2 + $0xd1] sm:$0xff]
  %v2855 = vld [vmem:[#allocation2 + $0xe9] sm:$0xff]
  %v2856 = vld [vmem:[#allocation2 + $0xf1] sm:$0xff]
  %v2857 = vld [vmem:[#allocation2 + $0x109] sm:$0xff]
  %v2858 = vld [vmem:[#allocation2 + $0x111] sm:$0xff]
  %v2859 = vld [vmem:[#allocation2 + $0x129] sm:$0xff]
  %v2860 = vld [vmem:[#allocation2 + $0x131] sm:$0xff]
  %v2861 = vld [vmem:[#allocation2 + $0x149] sm:$0xff]
  %v2862 = vld [vmem:[#allocation2 + $0x151] sm:$0xff]
  %v2863 = vld [vmem:[#allocation2 + $0x169] sm:$0xff]
  %v2864 = vld [vmem:[#allocation2 + $0x171] sm:$0xff]
  %v2865 = vld [vmem:[#allocation2 + $0x189] sm:$0xff]
  %v2866 = vld [vmem:[#allocation2 + $0x191] sm:$0xff]
  %v2867 = vld [vmem:[#allocation2 + $0x1a9] sm:$0xff]
  %v2868 = vld [vmem:[#allocation2 + $0x1b1] sm:$0xff]
  %v2869 = vld [vmem:[#allocation2 + $0x1c9] sm:$0xff]
  %v2870 = vld [vmem:[#allocation2 + $0x1d1] sm:$0xff]
  %v2871 = vld [vmem:[#allocation2 + $0x1e9] sm:$0xff]
  %v2872 = vld [vmem:[#allocation2 + $0x1f1] sm:$0xff]
  %v2873 = vld [vmem:[#allocation2 + $0x249] sm:$0xff]
  %v2874 = vld [vmem:[#allocation2 + $0x251] sm:$0xff]
  %v2875 = vld [vmem:[#allocation2 + $0x269] sm:$0xff]
  %v2876 = vld [vmem:[#allocation2 + $0x271] sm:$0xff]
  %v2877 = vld [vmem:[#allocation2 + $0x289] sm:$0xff]
  %v2878 = vld [vmem:[#allocation2 + $0x291] sm:$0xff]
  %v2879 = vld [vmem:[#allocation2 + $0x2a9] sm:$0xff]
  %v2880 = vld [vmem:[#allocation2 + $0x2b1] sm:$0xff]
  %v2881 = vld [vmem:[#allocation2 + $0x2c9] sm:$0xff]
  %v2882 = vld [vmem:[#allocation2 + $0x2d1] sm:$0xff]
  %v2883 = vld [vmem:[#allocation2 + $0x2e9] sm:$0xff]
  %v2884 = vld [vmem:[#allocation2 + $0x2f1] sm:$0xff]
  %v2885 = vld [vmem:[#allocation2 + $0x309] sm:$0xff]
  %v2886 = vld [vmem:[#allocation2 + $0x311] sm:$0xff]
  %v2887 = vld [vmem:[#allocation2 + $0x329] sm:$0xff]
  %v2888 = vld [vmem:[#allocation2 + $0x331] sm:$0xff]
  %v2889 = vld [vmem:[#allocation2 + $0x349] sm:$0xff]
  %v2890 = vld [vmem:[#allocation2 + $0x351] sm:$0xff]
  %v2891 = vld [vmem:[#allocation2 + $0x369] sm:$0xff]
  %v2892 = vld [vmem:[#allocation2 + $0x371] sm:$0xff]
  %v2893 = vld [vmem:[#allocation2 + $0x389] sm:$0xff]
  %v2894 = vld [vmem:[#allocation2 + $0x391] sm:$0xff]
  %v2895 = vld [vmem:[#allocation2 + $0x3a9] sm:$0xff]
  %v2896 = vld [vmem:[#allocation2 + $0x3b1] sm:$0xff]
  %v2897 = vld [vmem:[#allocation2 + $0x3c9] sm:$0xff]
  %v2898 = vld [vmem:[#allocation2 + $0x3d1] sm:$0xff]
  %v2899 = vld [vmem:[#allocation2 + $0x3e9] sm:$0xff]
  %v2900 = vld [vmem:[#allocation2 + $0x3f1] sm:$0xff]
  %v2901 = vld [vmem:[#allocation2 + $0x409] sm:$0xff]
  %v2902 = vld [vmem:[#allocation2 + $0x411] sm:$0xff]
  %v2903 = vld [vmem:[#allocation2 + $0x429] sm:$0xff]
  %v2904 = vld [vmem:[#allocation2 + $0x431] sm:$0xff]
  %v2905 = vperm.slane %v2453, 2
  %v2906 = vmul.f32 %v2841, %v2905
  %v2907 = vmul.f32 %v2842, %v2905
  %v2908 = vmul.f32 %v2843, %v2905
  %v2909 = vmul.f32 %v2844, %v2905
  %v2910 = vmul.f32 %v2845, %v2905
  %v2911 = vmul.f32 %v2846, %v2905
  %v2912 = vmul.f32 %v2847, %v2905
  %v2913 = vmul.f32 %v2848, %v2905
  %v2914 = vmul.f32 %v2849, %v2905
  %v2915 = vmul.f32 %v2850, %v2905
  %v2916 = vmul.f32 %v2851, %v2905
  %v2917 = vmul.f32 %v2852, %v2905
  %v2918 = vmul.f32 %v2853, %v2905
  %v2919 = vmul.f32 %v2854, %v2905
  %v2920 = vmul.f32 %v2855, %v2905
  %v2921 = vmul.f32 %v2856, %v2905
  %v2922 = vmul.f32 %v2857, %v2905
  %v2923 = vmul.f32 %v2858, %v2905
  %v2924 = vmul.f32 %v2859, %v2905
  %v2925 = vmul.f32 %v2860, %v2905
  %v2926 = vmul.f32 %v2861, %v2905
  %v2927 = vmul.f32 %v2862, %v2905
  %v2928 = vmul.f32 %v2863, %v2905
  %v2929 = vmul.f32 %v2864, %v2905
  %v2930 = vmul.f32 %v2865, %v2905
  %v2931 = vmul.f32 %v2866, %v2905
  %v2932 = vmul.f32 %v2867, %v2905
  %v2933 = vmul.f32 %v2868, %v2905
  %v2934 = vmul.f32 %v2869, %v2905
  %v2935 = vmul.f32 %v2870, %v2905
  %v2936 = vmul.f32 %v2871, %v2905
  %v2937 = vmul.f32 %v2872, %v2905
  %v2938 = vmul.f32 %v2873, %v2905
  %v2939 = vmul.f32 %v2874, %v2905
  %v2940 = vmul.f32 %v2875, %v2905
  %v2941 = vmul.f32 %v2876, %v2905
  %v2942 = vmul.f32 %v2877, %v2905
  %v2943 = vmul.f32 %v2878, %v2905
  %v2944 = vmul.f32 %v2879, %v2905
  %v2945 = vmul.f32 %v2880, %v2905
  %v2946 = vmul.f32 %v2881, %v2905
  %v2947 = vmul.f32 %v2882, %v2905
  %v2948 = vmul.f32 %v2883, %v2905
  %v2949 = vmul.f32 %v2884, %v2905
  %v2950 = vmul.f32 %v2885, %v2905
  %v2951 = vmul.f32 %v2886, %v2905
  %v2952 = vmul.f32 %v2887, %v2905
  %v2953 = vmul.f32 %v2888, %v2905
  %v2954 = vmul.f32 %v2889, %v2905
  %v2955 = vmul.f32 %v2890, %v2905
  %v2956 = vmul.f32 %v2891, %v2905
  %v2957 = vmul.f32 %v2892, %v2905
  %v2958 = vmul.f32 %v2893, %v2905
  %v2959 = vmul.f32 %v2894, %v2905
  %v2960 = vmul.f32 %v2895, %v2905
  %v2961 = vmul.f32 %v2896, %v2905
  %v2962 = vmul.f32 %v2897, %v2905
  %v2963 = vmul.f32 %v2898, %v2905
  %v2964 = vmul.f32 %v2899, %v2905
  %v2965 = vmul.f32 %v2900, %v2905
  %v2966 = vmul.f32 %v2901, %v2905
  %v2967 = vmul.f32 %v2902, %v2905
  %v2968 = vmul.f32 %v2903, %v2905
  %v2969 = vmul.f32 %v2904, %v2905
  %v2970 = vadd.f32 %v2777, %v2906
  %v2971 = vadd.f32 %v2778, %v2907
  %v2972 = vadd.f32 %v2779, %v2908
  %v2973 = vadd.f32 %v2780, %v2909
  %v2974 = vadd.f32 %v2781, %v2910
  %v2975 = vadd.f32 %v2782, %v2911
  %v2976 = vadd.f32 %v2783, %v2912
  %v2977 = vadd.f32 %v2784, %v2913
  %v2978 = vadd.f32 %v2785, %v2914
  %v2979 = vadd.f32 %v2786, %v2915
  %v2980 = vadd.f32 %v2787, %v2916
  %v2981 = vadd.f32 %v2788, %v2917
  %v2982 = vadd.f32 %v2789, %v2918
  %v2983 = vadd.f32 %v2790, %v2919
  %v2984 = vadd.f32 %v2791, %v2920
  %v2985 = vadd.f32 %v2792, %v2921
  %v2986 = vadd.f32 %v2793, %v2922
  %v2987 = vadd.f32 %v2794, %v2923
  %v2988 = vadd.f32 %v2795, %v2924
  %v2989 = vadd.f32 %v2796, %v2925
  %v2990 = vadd.f32 %v2797, %v2926
  %v2991 = vadd.f32 %v2798, %v2927
  %v2992 = vadd.f32 %v2799, %v2928
  %v2993 = vadd.f32 %v2800, %v2929
  %v2994 = vadd.f32 %v2801, %v2930
  %v2995 = vadd.f32 %v2802, %v2931
  %v2996 = vadd.f32 %v2803, %v2932
  %v2997 = vadd.f32 %v2804, %v2933
  %v2998 = vadd.f32 %v2805, %v2934
  %v2999 = vadd.f32 %v2806, %v2935
  %v3000 = vadd.f32 %v2807, %v2936
  %v3001 = vadd.f32 %v2808, %v2937
  %v3002 = vadd.f32 %v2809, %v2938
  %v3003 = vadd.f32 %v2810, %v2939
  %v3004 = vadd.f32 %v2811, %v2940
  %v3005 = vadd.f32 %v2812, %v2941
  %v3006 = vadd.f32 %v2813, %v2942
  %v3007 = vadd.f32 %v2814, %v2943
  %v3008 = vadd.f32 %v2815, %v2944
  %v3009 = vadd.f32 %v2816, %v2945
  %v3010 = vadd.f32 %v2817, %v2946
  %v3011 = vadd.f32 %v2818, %v2947
  %v3012 = vadd.f32 %v2819, %v2948
  %v3013 = vadd.f32 %v2820, %v2949
  %v3014 = vadd.f32 %v2821, %v2950
  %v3015 = vadd.f32 %v2822, %v2951
  %v3016 = vadd.f32 %v2823, %v2952
  %v3017 = vadd.f32 %v2824, %v2953
  %v3018 = vadd.f32 %v2825, %v2954
  %v3019 = vadd.f32 %v2826, %v2955
  %v3020 = vadd.f32 %v2827, %v2956
  %v3021 = vadd.f32 %v2828, %v2957
  %v3022 = vadd.f32 %v2829, %v2958
  %v3023 = vadd.f32 %v2830, %v2959
  %v3024 = vadd.f32 %v2831, %v2960
  %v3025 = vadd.f32 %v2832, %v2961
  %v3026 = vadd.f32 %v2833, %v2962
  %v3027 = vadd.f32 %v2834, %v2963
  %v3028 = vadd.f32 %v2835, %v2964
  %v3029 = vadd.f32 %v2836, %v2965
  %v3030 = vadd.f32 %v2837, %v2966
  %v3031 = vadd.f32 %v2838, %v2967
  %v3032 = vadd.f32 %v2839, %v2968
  %v3033 = vadd.f32 %v2840, %v2969
  %v3034 = vld [vmem:[%s2388 + $0x7] sm:$0xff]
  %v3035 = vld [vmem:[%s2388 + $0xf] sm:$0xff]
  %v3036 = vld [vmem:[%s2388 + $0x27] sm:$0xff]
  %v3037 = vld [vmem:[%s2388 + $0x2f] sm:$0xff]
  %v3038 = vld [vmem:[%s2388 + $0x47] sm:$0xff]
  %v3039 = vld [vmem:[%s2388 + $0x4f] sm:$0xff]
  %v3040 = vld [vmem:[%s2388 + $0x67] sm:$0xff]
  %v3041 = vld [vmem:[%s2388 + $0x6f] sm:$0xff]
  %v3042 = vld [vmem:[%s2388 + $0x87] sm:$0xff]
  %v3043 = vld [vmem:[%s2388 + $0x8f] sm:$0xff]
  %v3044 = vld [vmem:[%s2388 + $0xa7] sm:$0xff]
  %v3045 = vld [vmem:[%s2388 + $0xaf] sm:$0xff]
  %v3046 = vld [vmem:[%s2388 + $0xc7] sm:$0xff]
  %v3047 = vld [vmem:[%s2388 + $0xcf] sm:$0xff]
  %v3048 = vld [vmem:[%s2388 + $0xe7] sm:$0xff]
  %v3049 = vld [vmem:[%s2388 + $0xef] sm:$0xff]
  %v3050 = vld [vmem:[%s2388 + $0x107] sm:$0xff]
  %v3051 = vld [vmem:[%s2388 + $0x10f] sm:$0xff]
  %v3052 = vld [vmem:[%s2388 + $0x127] sm:$0xff]
  %v3053 = vld [vmem:[%s2388 + $0x12f] sm:$0xff]
  %v3054 = vld [vmem:[%s2388 + $0x147] sm:$0xff]
  %v3055 = vld [vmem:[%s2388 + $0x14f] sm:$0xff]
  %v3056 = vld [vmem:[%s2388 + $0x167] sm:$0xff]
  %v3057 = vld [vmem:[%s2388 + $0x16f] sm:$0xff]
  %v3058 = vld [vmem:[%s2388 + $0x187] sm:$0xff]
  %v3059 = vld [vmem:[%s2388 + $0x18f] sm:$0xff]
  %v3060 = vld [vmem:[%s2388 + $0x1a7] sm:$0xff]
  %v3061 = vld [vmem:[%s2388 + $0x1af] sm:$0xff]
  %v3062 = vld [vmem:[%s2388 + $0x1c7] sm:$0xff]
  %v3063 = vld [vmem:[%s2388 + $0x1cf] sm:$0xff]
  %v3064 = vld [vmem:[%s2388 + $0x1e7] sm:$0xff]
  %v3065 = vld [vmem:[%s2388 + $0x1ef] sm:$0xff]
  %v3066 = vld [vmem:[%s2388 + $0x247] sm:$0xff]
  %v3067 = vld [vmem:[%s2388 + $0x24f] sm:$0xff]
  %v3068 = vld [vmem:[%s2388 + $0x267] sm:$0xff]
  %v3069 = vld [vmem:[%s2388 + $0x26f] sm:$0xff]
  %v3070 = vld [vmem:[%s2388 + $0x287] sm:$0xff]
  %v3071 = vld [vmem:[%s2388 + $0x28f] sm:$0xff]
  %v3072 = vld [vmem:[%s2388 + $0x2a7] sm:$0xff]
  %v3073 = vld [vmem:[%s2388 + $0x2af] sm:$0xff]
  %v3074 = vld [vmem:[%s2388 + $0x2c7] sm:$0xff]
  %v3075 = vld [vmem:[%s2388 + $0x2cf] sm:$0xff]
  %v3076 = vld [vmem:[%s2388 + $0x2e7] sm:$0xff]
  %v3077 = vld [vmem:[%s2388 + $0x2ef] sm:$0xff]
  %v3078 = vld [vmem:[%s2388 + $0x307] sm:$0xff]
  %v3079 = vld [vmem:[%s2388 + $0x30f] sm:$0xff]
  %v3080 = vld [vmem:[%s2388 + $0x327] sm:$0xff]
  %v3081 = vld [vmem:[%s2388 + $0x32f] sm:$0xff]
  %v3082 = vld [vmem:[%s2388 + $0x347] sm:$0xff]
  %v3083 = vld [vmem:[%s2388 + $0x34f] sm:$0xff]
  %v3084 = vld [vmem:[%s2388 + $0x367] sm:$0xff]
  %v3085 = vld [vmem:[%s2388 + $0x36f] sm:$0xff]
  %v3086 = vld [vmem:[%s2388 + $0x387] sm:$0xff]
  %v3087 = vld [vmem:[%s2388 + $0x38f] sm:$0xff]
  %v3088 = vld [vmem:[%s2388 + $0x3a7] sm:$0xff]
  %v3089 = vld [vmem:[%s2388 + $0x3af] sm:$0xff]
  %v3090 = vld [vmem:[%s2388 + $0x3c7] sm:$0xff]
  %v3091 = vld [vmem:[%s2388 + $0x3cf] sm:$0xff]
  %v3092 = vld [vmem:[%s2388 + $0x3e7] sm:$0xff]
  %v3093 = vld [vmem:[%s2388 + $0x3ef] sm:$0xff]
  %v3094 = vld [vmem:[%s2388 + $0x407] sm:$0xff]
  %v3095 = vld [vmem:[%s2388 + $0x40f] sm:$0xff]
  %v3096 = vld [vmem:[%s2388 + $0x427] sm:$0xff]
  %v3097 = vld [vmem:[%s2388 + $0x42f] sm:$0xff]
  %v3098 = vperm.slane %v2453, 3
  %v3099 = vmul.f32 %v3034, %v3098
  %v3100 = vmul.f32 %v3035, %v3098
  %v3101 = vmul.f32 %v3036, %v3098
  %v3102 = vmul.f32 %v3037, %v3098
  %v3103 = vmul.f32 %v3038, %v3098
  %v3104 = vmul.f32 %v3039, %v3098
  %v3105 = vmul.f32 %v3040, %v3098
  %v3106 = vmul.f32 %v3041, %v3098
  %v3107 = vmul.f32 %v3042, %v3098
  %v3108 = vmul.f32 %v3043, %v3098
  %v3109 = vmul.f32 %v3044, %v3098
  %v3110 = vmul.f32 %v3045, %v3098
  %v3111 = vmul.f32 %v3046, %v3098
  %v3112 = vmul.f32 %v3047, %v3098
  %v3113 = vmul.f32 %v3048, %v3098
  %v3114 = vmul.f32 %v3049, %v3098
  %v3115 = vmul.f32 %v3050, %v3098
  %v3116 = vmul.f32 %v3051, %v3098
  %v3117 = vmul.f32 %v3052, %v3098
  %v3118 = vmul.f32 %v3053, %v3098
  %v3119 = vmul.f32 %v3054, %v3098
  %v3120 = vmul.f32 %v3055, %v3098
  %v3121 = vmul.f32 %v3056, %v3098
  %v3122 = vmul.f32 %v3057, %v3098
  %v3123 = vmul.f32 %v3058, %v3098
  %v3124 = vmul.f32 %v3059, %v3098
  %v3125 = vmul.f32 %v3060, %v3098
  %v3126 = vmul.f32 %v3061, %v3098
  %v3127 = vmul.f32 %v3062, %v3098
  %v3128 = vmul.f32 %v3063, %v3098
  %v3129 = vmul.f32 %v3064, %v3098
  %v3130 = vmul.f32 %v3065, %v3098
  %v3131 = vmul.f32 %v3066, %v3098
  %v3132 = vmul.f32 %v3067, %v3098
  %v3133 = vmul.f32 %v3068, %v3098
  %v3134 = vmul.f32 %v3069, %v3098
  %v3135 = vmul.f32 %v3070, %v3098
  %v3136 = vmul.f32 %v3071, %v3098
  %v3137 = vmul.f32 %v3072, %v3098
  %v3138 = vmul.f32 %v3073, %v3098
  %v3139 = vmul.f32 %v3074, %v3098
  %v3140 = vmul.f32 %v3075, %v3098
  %v3141 = vmul.f32 %v3076, %v3098
  %v3142 = vmul.f32 %v3077, %v3098
  %v3143 = vmul.f32 %v3078, %v3098
  %v3144 = vmul.f32 %v3079, %v3098
  %v3145 = vmul.f32 %v3080, %v3098
  %v3146 = vmul.f32 %v3081, %v3098
  %v3147 = vmul.f32 %v3082, %v3098
  %v3148 = vmul.f32 %v3083, %v3098
  %v3149 = vmul.f32 %v3084, %v3098
  %v3150 = vmul.f32 %v3085, %v3098
  %v3151 = vmul.f32 %v3086, %v3098
  %v3152 = vmul.f32 %v3087, %v3098
  %v3153 = vmul.f32 %v3088, %v3098
  %v3154 = vmul.f32 %v3089, %v3098
  %v3155 = vmul.f32 %v3090, %v3098
  %v3156 = vmul.f32 %v3091, %v3098
  %v3157 = vmul.f32 %v3092, %v3098
  %v3158 = vmul.f32 %v3093, %v3098
  %v3159 = vmul.f32 %v3094, %v3098
  %v3160 = vmul.f32 %v3095, %v3098
  %v3161 = vmul.f32 %v3096, %v3098
  %v3162 = vmul.f32 %v3097, %v3098
  %v3163 = vadd.f32 %v2970, %v3099
  %v3164 = vadd.f32 %v2971, %v3100
  %v3165 = vadd.f32 %v2972, %v3101
  %v3166 = vadd.f32 %v2973, %v3102
  %v3167 = vadd.f32 %v2974, %v3103
  %v3168 = vadd.f32 %v2975, %v3104
  %v3169 = vadd.f32 %v2976, %v3105
  %v3170 = vadd.f32 %v2977, %v3106
  %v3171 = vadd.f32 %v2978, %v3107
  %v3172 = vadd.f32 %v2979, %v3108
  %v3173 = vadd.f32 %v2980, %v3109
  %v3174 = vadd.f32 %v2981, %v3110
  %v3175 = vadd.f32 %v2982, %v3111
  %v3176 = vadd.f32 %v2983, %v3112
  %v3177 = vadd.f32 %v2984, %v3113
  %v3178 = vadd.f32 %v2985, %v3114
  %v3179 = vadd.f32 %v2986, %v3115
  %v3180 = vadd.f32 %v2987, %v3116
  %v3181 = vadd.f32 %v2988, %v3117
  %v3182 = vadd.f32 %v2989, %v3118
  %v3183 = vadd.f32 %v2990, %v3119
  %v3184 = vadd.f32 %v2991, %v3120
  %v3185 = vadd.f32 %v2992, %v3121
  %v3186 = vadd.f32 %v2993, %v3122
  %v3187 = vadd.f32 %v2994, %v3123
  %v3188 = vadd.f32 %v2995, %v3124
  %v3189 = vadd.f32 %v2996, %v3125
  %v3190 = vadd.f32 %v2997, %v3126
  %v3191 = vadd.f32 %v2998, %v3127
  %v3192 = vadd.f32 %v2999, %v3128
  %v3193 = vadd.f32 %v3000, %v3129
  %v3194 = vadd.f32 %v3001, %v3130
  %v3195 = vadd.f32 %v3002, %v3131
  %v3196 = vadd.f32 %v3003, %v3132
  %v3197 = vadd.f32 %v3004, %v3133
  %v3198 = vadd.f32 %v3005, %v3134
  %v3199 = vadd.f32 %v3006, %v3135
  %v3200 = vadd.f32 %v3007, %v3136
  %v3201 = vadd.f32 %v3008, %v3137
  %v3202 = vadd.f32 %v3009, %v3138
  %v3203 = vadd.f32 %v3010, %v3139
  %v3204 = vadd.f32 %v3011, %v3140
  %v3205 = vadd.f32 %v3012, %v3141
  %v3206 = vadd.f32 %v3013, %v3142
  %v3207 = vadd.f32 %v3014, %v3143
  %v3208 = vadd.f32 %v3015, %v3144
  %v3209 = vadd.f32 %v3016, %v3145
  %v3210 = vadd.f32 %v3017, %v3146
  %v3211 = vadd.f32 %v3018, %v3147
  %v3212 = vadd.f32 %v3019, %v3148
  %v3213 = vadd.f32 %v3020, %v3149
  %v3214 = vadd.f32 %v3021, %v3150
  %v3215 = vadd.f32 %v3022, %v3151
  %v3216 = vadd.f32 %v3023, %v3152
  %v3217 = vadd.f32 %v3024, %v3153
  %v3218 = vadd.f32 %v3025, %v3154
  %v3219 = vadd.f32 %v3026, %v3155
  %v3220 = vadd.f32 %v3027, %v3156
  %v3221 = vadd.f32 %v3028, %v3157
  %v3222 = vadd.f32 %v3029, %v3158
  %v3223 = vadd.f32 %v3030, %v3159
  %v3224 = vadd.f32 %v3031, %v3160
  %v3225 = vadd.f32 %v3032, %v3161
  %v3226 = vadd.f32 %v3033, %v3162
  %v3227 = vld [vmem:[%s2388 + $0x8] sm:$0xff]
  %v3228 = vld [vmem:[%s2388 + $0x10] sm:$0xff]
  %v3229 = vld [vmem:[%s2388 + $0x28] sm:$0xff]
  %v3230 = vld [vmem:[%s2388 + $0x30] sm:$0xff]
  %v3231 = vld [vmem:[%s2388 + $0x48] sm:$0xff]
  %v3232 = vld [vmem:[%s2388 + $0x50] sm:$0xff]
  %v3233 = vld [vmem:[%s2388 + $0x68] sm:$0xff]
  %v3234 = vld [vmem:[%s2388 + $0x70] sm:$0xff]
  %v3235 = vld [vmem:[%s2388 + $0x88] sm:$0xff]
  %v3236 = vld [vmem:[%s2388 + $0x90] sm:$0xff]
  %v3237 = vld [vmem:[%s2388 + $0xa8] sm:$0xff]
  %v3238 = vld [vmem:[%s2388 + $0xb0] sm:$0xff]
  %v3239 = vld [vmem:[%s2388 + $0xc8] sm:$0xff]
  %v3240 = vld [vmem:[%s2388 + $0xd0] sm:$0xff]
  %v3241 = vld [vmem:[%s2388 + $0xe8] sm:$0xff]
  %v3242 = vld [vmem:[%s2388 + $0xf0] sm:$0xff]
  %v3243 = vld [vmem:[%s2388 + $0x108] sm:$0xff]
  %v3244 = vld [vmem:[%s2388 + $0x110] sm:$0xff]
  %v3245 = vld [vmem:[%s2388 + $0x128] sm:$0xff]
  %v3246 = vld [vmem:[%s2388 + $0x130] sm:$0xff]
  %v3247 = vld [vmem:[%s2388 + $0x148] sm:$0xff]
  %v3248 = vld [vmem:[%s2388 + $0x150] sm:$0xff]
  %v3249 = vld [vmem:[%s2388 + $0x168] sm:$0xff]
  %v3250 = vld [vmem:[%s2388 + $0x170] sm:$0xff]
  %v3251 = vld [vmem:[%s2388 + $0x188] sm:$0xff]
  %v3252 = vld [vmem:[%s2388 + $0x190] sm:$0xff]
  %v3253 = vld [vmem:[%s2388 + $0x1a8] sm:$0xff]
  %v3254 = vld [vmem:[%s2388 + $0x1b0] sm:$0xff]
  %v3255 = vld [vmem:[%s2388 + $0x1c8] sm:$0xff]
  %v3256 = vld [vmem:[%s2388 + $0x1d0] sm:$0xff]
  %v3257 = vld [vmem:[%s2388 + $0x1e8] sm:$0xff]
  %v3258 = vld [vmem:[%s2388 + $0x1f0] sm:$0xff]
  %v3259 = vld [vmem:[%s2388 + $0x248] sm:$0xff]
  %v3260 = vld [vmem:[%s2388 + $0x250] sm:$0xff]
  %v3261 = vld [vmem:[%s2388 + $0x268] sm:$0xff]
  %v3262 = vld [vmem:[%s2388 + $0x270] sm:$0xff]
  %v3263 = vld [vmem:[%s2388 + $0x288] sm:$0xff]
  %v3264 = vld [vmem:[%s2388 + $0x290] sm:$0xff]
  %v3265 = vld [vmem:[%s2388 + $0x2a8] sm:$0xff]
  %v3266 = vld [vmem:[%s2388 + $0x2b0] sm:$0xff]
  %v3267 = vld [vmem:[%s2388 + $0x2c8] sm:$0xff]
  %v3268 = vld [vmem:[%s2388 + $0x2d0] sm:$0xff]
  %v3269 = vld [vmem:[%s2388 + $0x2e8] sm:$0xff]
  %v3270 = vld [vmem:[%s2388 + $0x2f0] sm:$0xff]
  %v3271 = vld [vmem:[%s2388 + $0x308] sm:$0xff]
  %v3272 = vld [vmem:[%s2388 + $0x310] sm:$0xff]
  %v3273 = vld [vmem:[%s2388 + $0x328] sm:$0xff]
  %v3274 = vld [vmem:[%s2388 + $0x330] sm:$0xff]
  %v3275 = vld [vmem:[%s2388 + $0x348] sm:$0xff]
  %v3276 = vld [vmem:[%s2388 + $0x350] sm:$0xff]
  %v3277 = vld [vmem:[%s2388 + $0x368] sm:$0xff]
  %v3278 = vld [vmem:[%s2388 + $0x370] sm:$0xff]
  %v3279 = vld [vmem:[%s2388 + $0x388] sm:$0xff]
  %v3280 = vld [vmem:[%s2388 + $0x390] sm:$0xff]
  %v3281 = vld [vmem:[%s2388 + $0x3a8] sm:$0xff]
  %v3282 = vld [vmem:[%s2388 + $0x3b0] sm:$0xff]
  %v3283 = vld [vmem:[%s2388 + $0x3c8] sm:$0xff]
  %v3284 = vld [vmem:[%s2388 + $0x3d0] sm:$0xff]
  %v3285 = vld [vmem:[%s2388 + $0x3e8] sm:$0xff]
  %v3286 = vld [vmem:[%s2388 + $0x3f0] sm:$0xff]
  %v3287 = vld [vmem:[%s2388 + $0x408] sm:$0xff]
  %v3288 = vld [vmem:[%s2388 + $0x410] sm:$0xff]
  %v3289 = vld [vmem:[%s2388 + $0x428] sm:$0xff]
  %v3290 = vld [vmem:[%s2388 + $0x430] sm:$0xff]
  %v3291 = vperm.slane %v2453, 4
  %v3292 = vmul.f32 %v3227, %v3291
  %v3293 = vmul.f32 %v3228, %v3291
  %v3294 = vmul.f32 %v3229, %v3291
  %v3295 = vmul.f32 %v3230, %v3291
  %v3296 = vmul.f32 %v3231, %v3291
  %v3297 = vmul.f32 %v3232, %v3291
  %v3298 = vmul.f32 %v3233, %v3291
  %v3299 = vmul.f32 %v3234, %v3291
  %v3300 = vmul.f32 %v3235, %v3291
  %v3301 = vmul.f32 %v3236, %v3291
  %v3302 = vmul.f32 %v3237, %v3291
  %v3303 = vmul.f32 %v3238, %v3291
  %v3304 = vmul.f32 %v3239, %v3291
  %v3305 = vmul.f32 %v3240, %v3291
  %v3306 = vmul.f32 %v3241, %v3291
  %v3307 = vmul.f32 %v3242, %v3291
  %v3308 = vmul.f32 %v3243, %v3291
  %v3309 = vmul.f32 %v3244, %v3291
  %v3310 = vmul.f32 %v3245, %v3291
  %v3311 = vmul.f32 %v3246, %v3291
  %v3312 = vmul.f32 %v3247, %v3291
  %v3313 = vmul.f32 %v3248, %v3291
  %v3314 = vmul.f32 %v3249, %v3291
  %v3315 = vmul.f32 %v3250, %v3291
  %v3316 = vmul.f32 %v3251, %v3291
  %v3317 = vmul.f32 %v3252, %v3291
  %v3318 = vmul.f32 %v3253, %v3291
  %v3319 = vmul.f32 %v3254, %v3291
  %v3320 = vmul.f32 %v3255, %v3291
  %v3321 = vmul.f32 %v3256, %v3291
  %v3322 = vmul.f32 %v3257, %v3291
  %v3323 = vmul.f32 %v3258, %v3291
  %v3324 = vmul.f32 %v3259, %v3291
  %v3325 = vmul.f32 %v3260, %v3291
  %v3326 = vmul.f32 %v3261, %v3291
  %v3327 = vmul.f32 %v3262, %v3291
  %v3328 = vmul.f32 %v3263, %v3291
  %v3329 = vmul.f32 %v3264, %v3291
  %v3330 = vmul.f32 %v3265, %v3291
  %v3331 = vmul.f32 %v3266, %v3291
  %v3332 = vmul.f32 %v3267, %v3291
  %v3333 = vmul.f32 %v3268, %v3291
  %v3334 = vmul.f32 %v3269, %v3291
  %v3335 = vmul.f32 %v3270, %v3291
  %v3336 = vmul.f32 %v3271, %v3291
  %v3337 = vmul.f32 %v3272, %v3291
  %v3338 = vmul.f32 %v3273, %v3291
  %v3339 = vmul.f32 %v3274, %v3291
  %v3340 = vmul.f32 %v3275, %v3291
  %v3341 = vmul.f32 %v3276, %v3291
  %v3342 = vmul.f32 %v3277, %v3291
  %v3343 = vmul.f32 %v3278, %v3291
  %v3344 = vmul.f32 %v3279, %v3291
  %v3345 = vmul.f32 %v3280, %v3291
  %v3346 = vmul.f32 %v3281, %v3291
  %v3347 = vmul.f32 %v3282, %v3291
  %v3348 = vmul.f32 %v3283, %v3291
  %v3349 = vmul.f32 %v3284, %v3291
  %v3350 = vmul.f32 %v3285, %v3291
  %v3351 = vmul.f32 %v3286, %v3291
  %v3352 = vmul.f32 %v3287, %v3291
  %v3353 = vmul.f32 %v3288, %v3291
  %v3354 = vmul.f32 %v3289, %v3291
  %v3355 = vmul.f32 %v3290, %v3291
  %v3356 = vadd.f32 %v3163, %v3292
  %v3357 = vadd.f32 %v3164, %v3293
  %v3358 = vadd.f32 %v3165, %v3294
  %v3359 = vadd.f32 %v3166, %v3295
  %v3360 = vadd.f32 %v3167, %v3296
  %v3361 = vadd.f32 %v3168, %v3297
  %v3362 = vadd.f32 %v3169, %v3298
  %v3363 = vadd.f32 %v3170, %v3299
  %v3364 = vadd.f32 %v3171, %v3300
  %v3365 = vadd.f32 %v3172, %v3301
  %v3366 = vadd.f32 %v3173, %v3302
  %v3367 = vadd.f32 %v3174, %v3303
  %v3368 = vadd.f32 %v3175, %v3304
  %v3369 = vadd.f32 %v3176, %v3305
  %v3370 = vadd.f32 %v3177, %v3306
  %v3371 = vadd.f32 %v3178, %v3307
  %v3372 = vadd.f32 %v3179, %v3308
  %v3373 = vadd.f32 %v3180, %v3309
  %v3374 = vadd.f32 %v3181, %v3310
  %v3375 = vadd.f32 %v3182, %v3311
  %v3376 = vadd.f32 %v3183, %v3312
  %v3377 = vadd.f32 %v3184, %v3313
  %v3378 = vadd.f32 %v3185, %v3314
  %v3379 = vadd.f32 %v3186, %v3315
  %v3380 = vadd.f32 %v3187, %v3316
  %v3381 = vadd.f32 %v3188, %v3317
  %v3382 = vadd.f32 %v3189, %v3318
  %v3383 = vadd.f32 %v3190, %v3319
  %v3384 = vadd.f32 %v3191, %v3320
  %v3385 = vadd.f32 %v3192, %v3321
  %v3386 = vadd.f32 %v3193, %v3322
  %v3387 = vadd.f32 %v3194, %v3323
  %v3388 = vadd.f32 %v3195, %v3324
  %v3389 = vadd.f32 %v3196, %v3325
  %v3390 = vadd.f32 %v3197, %v3326
  %v3391 = vadd.f32 %v3198, %v3327
  %v3392 = vadd.f32 %v3199, %v3328
  %v3393 = vadd.f32 %v3200, %v3329
  %v3394 = vadd.f32 %v3201, %v3330
  %v3395 = vadd.f32 %v3202, %v3331
  %v3396 = vadd.f32 %v3203, %v3332
  %v3397 = vadd.f32 %v3204, %v3333
  %v3398 = vadd.f32 %v3205, %v3334
  %v3399 = vadd.f32 %v3206, %v3335
  %v3400 = vadd.f32 %v3207, %v3336
  %v3401 = vadd.f32 %v3208, %v3337
  %v3402 = vadd.f32 %v3209, %v3338
  %v3403 = vadd.f32 %v3210, %v3339
  %v3404 = vadd.f32 %v3211, %v3340
  %v3405 = vadd.f32 %v3212, %v3341
  %v3406 = vadd.f32 %v3213, %v3342
  %v3407 = vadd.f32 %v3214, %v3343
  %v3408 = vadd.f32 %v3215, %v3344
  %v3409 = vadd.f32 %v3216, %v3345
  %v3410 = vadd.f32 %v3217, %v3346
  %v3411 = vadd.f32 %v3218, %v3347
  %v3412 = vadd.f32 %v3219, %v3348
  %v3413 = vadd.f32 %v3220, %v3349
  %v3414 = vadd.f32 %v3221, %v3350
  %v3415 = vadd.f32 %v3222, %v3351
  %v3416 = vadd.f32 %v3223, %v3352
  %v3417 = vadd.f32 %v3224, %v3353
  %v3418 = vadd.f32 %v3225, %v3354
  %v3419 = vadd.f32 %v3226, %v3355
  %v3420 = vld [vmem:[%s2388 + $0x9] sm:$0xff]
  %v3421 = vld [vmem:[%s2388 + $0x11] sm:$0xff]
  %v3422 = vld [vmem:[%s2388 + $0x29] sm:$0xff]
  %v3423 = vld [vmem:[%s2388 + $0x31] sm:$0xff]
  %v3424 = vld [vmem:[%s2388 + $0x49] sm:$0xff]
  %v3425 = vld [vmem:[%s2388 + $0x51] sm:$0xff]
  %v3426 = vld [vmem:[%s2388 + $0x69] sm:$0xff]
  %v3427 = vld [vmem:[%s2388 + $0x71] sm:$0xff]
  %v3428 = vld [vmem:[%s2388 + $0x89] sm:$0xff]
  %v3429 = vld [vmem:[%s2388 + $0x91] sm:$0xff]
  %v3430 = vld [vmem:[%s2388 + $0xa9] sm:$0xff]
  %v3431 = vld [vmem:[%s2388 + $0xb1] sm:$0xff]
  %v3432 = vld [vmem:[%s2388 + $0xc9] sm:$0xff]
  %v3433 = vld [vmem:[%s2388 + $0xd1] sm:$0xff]
  %v3434 = vld [vmem:[%s2388 + $0xe9] sm:$0xff]
  %v3435 = vld [vmem:[%s2388 + $0xf1] sm:$0xff]
  %v3436 = vld [vmem:[%s2388 + $0x109] sm:$0xff]
  %v3437 = vld [vmem:[%s2388 + $0x111] sm:$0xff]
  %v3438 = vld [vmem:[%s2388 + $0x129] sm:$0xff]
  %v3439 = vld [vmem:[%s2388 + $0x131] sm:$0xff]
  %v3440 = vld [vmem:[%s2388 + $0x149] sm:$0xff]
  %v3441 = vld [vmem:[%s2388 + $0x151] sm:$0xff]
  %v3442 = vld [vmem:[%s2388 + $0x169] sm:$0xff]
  %v3443 = vld [vmem:[%s2388 + $0x171] sm:$0xff]
  %v3444 = vld [vmem:[%s2388 + $0x189] sm:$0xff]
  %v3445 = vld [vmem:[%s2388 + $0x191] sm:$0xff]
  %v3446 = vld [vmem:[%s2388 + $0x1a9] sm:$0xff]
  %v3447 = vld [vmem:[%s2388 + $0x1b1] sm:$0xff]
  %v3448 = vld [vmem:[%s2388 + $0x1c9] sm:$0xff]
  %v3449 = vld [vmem:[%s2388 + $0x1d1] sm:$0xff]
  %v3450 = vld [vmem:[%s2388 + $0x1e9] sm:$0xff]
  %v3451 = vld [vmem:[%s2388 + $0x1f1] sm:$0xff]
  %v3452 = vld [vmem:[%s2388 + $0x249] sm:$0xff]
  %v3453 = vld [vmem:[%s2388 + $0x251] sm:$0xff]
  %v3454 = vld [vmem:[%s2388 + $0x269] sm:$0xff]
  %v3455 = vld [vmem:[%s2388 + $0x271] sm:$0xff]
  %v3456 = vld [vmem:[%s2388 + $0x289] sm:$0xff]
  %v3457 = vld [vmem:[%s2388 + $0x291] sm:$0xff]
  %v3458 = vld [vmem:[%s2388 + $0x2a9] sm:$0xff]
  %v3459 = vld [vmem:[%s2388 + $0x2b1] sm:$0xff]
  %v3460 = vld [vmem:[%s2388 + $0x2c9] sm:$0xff]
  %v3461 = vld [vmem:[%s2388 + $0x2d1] sm:$0xff]
  %v3462 = vld [vmem:[%s2388 + $0x2e9] sm:$0xff]
  %v3463 = vld [vmem:[%s2388 + $0x2f1] sm:$0xff]
  %v3464 = vld [vmem:[%s2388 + $0x309] sm:$0xff]
  %v3465 = vld [vmem:[%s2388 + $0x311] sm:$0xff]
  %v3466 = vld [vmem:[%s2388 + $0x329] sm:$0xff]
  %v3467 = vld [vmem:[%s2388 + $0x331] sm:$0xff]
  %v3468 = vld [vmem:[%s2388 + $0x349] sm:$0xff]
  %v3469 = vld [vmem:[%s2388 + $0x351] sm:$0xff]
  %v3470 = vld [vmem:[%s2388 + $0x369] sm:$0xff]
  %v3471 = vld [vmem:[%s2388 + $0x371] sm:$0xff]
  %v3472 = vld [vmem:[%s2388 + $0x389] sm:$0xff]
  %v3473 = vld [vmem:[%s2388 + $0x391] sm:$0xff]
  %v3474 = vld [vmem:[%s2388 + $0x3a9] sm:$0xff]
  %v3475 = vld [vmem:[%s2388 + $0x3b1] sm:$0xff]
  %v3476 = vld [vmem:[%s2388 + $0x3c9] sm:$0xff]
  %v3477 = vld [vmem:[%s2388 + $0x3d1] sm:$0xff]
  %v3478 = vld [vmem:[%s2388 + $0x3e9] sm:$0xff]
  %v3479 = vld [vmem:[%s2388 + $0x3f1] sm:$0xff]
  %v3480 = vld [vmem:[%s2388 + $0x409] sm:$0xff]
  %v3481 = vld [vmem:[%s2388 + $0x411] sm:$0xff]
  %v3482 = vld [vmem:[%s2388 + $0x429] sm:$0xff]
  %v3483 = vld [vmem:[%s2388 + $0x431] sm:$0xff]
  %v3484 = vperm.slane %v2453, 5
  %v3485 = vmul.f32 %v3420, %v3484
  %v3486 = vmul.f32 %v3421, %v3484
  %v3487 = vmul.f32 %v3422, %v3484
  %v3488 = vmul.f32 %v3423, %v3484
  %v3489 = vmul.f32 %v3424, %v3484
  %v3490 = vmul.f32 %v3425, %v3484
  %v3491 = vmul.f32 %v3426, %v3484
  %v3492 = vmul.f32 %v3427, %v3484
  %v3493 = vmul.f32 %v3428, %v3484
  %v3494 = vmul.f32 %v3429, %v3484
  %v3495 = vmul.f32 %v3430, %v3484
  %v3496 = vmul.f32 %v3431, %v3484
  %v3497 = vmul.f32 %v3432, %v3484
  %v3498 = vmul.f32 %v3433, %v3484
  %v3499 = vmul.f32 %v3434, %v3484
  %v3500 = vmul.f32 %v3435, %v3484
  %v3501 = vmul.f32 %v3436, %v3484
  %v3502 = vmul.f32 %v3437, %v3484
  %v3503 = vmul.f32 %v3438, %v3484
  %v3504 = vmul.f32 %v3439, %v3484
  %v3505 = vmul.f32 %v3440, %v3484
  %v3506 = vmul.f32 %v3441, %v3484
  %v3507 = vmul.f32 %v3442, %v3484
  %v3508 = vmul.f32 %v3443, %v3484
  %v3509 = vmul.f32 %v3444, %v3484
  %v3510 = vmul.f32 %v3445, %v3484
  %v3511 = vmul.f32 %v3446, %v3484
  %v3512 = vmul.f32 %v3447, %v3484
  %v3513 = vmul.f32 %v3448, %v3484
  %v3514 = vmul.f32 %v3449, %v3484
  %v3515 = vmul.f32 %v3450, %v3484
  %v3516 = vmul.f32 %v3451, %v3484
  %v3517 = vmul.f32 %v3452, %v3484
  %v3518 = vmul.f32 %v3453, %v3484
  %v3519 = vmul.f32 %v3454, %v3484
  %v3520 = vmul.f32 %v3455, %v3484
  %v3521 = vmul.f32 %v3456, %v3484
  %v3522 = vmul.f32 %v3457, %v3484
  %v3523 = vmul.f32 %v3458, %v3484
  %v3524 = vmul.f32 %v3459, %v3484
  %v3525 = vmul.f32 %v3460, %v3484
  %v3526 = vmul.f32 %v3461, %v3484
  %v3527 = vmul.f32 %v3462, %v3484
  %v3528 = vmul.f32 %v3463, %v3484
  %v3529 = vmul.f32 %v3464, %v3484
  %v3530 = vmul.f32 %v3465, %v3484
  %v3531 = vmul.f32 %v3466, %v3484
  %v3532 = vmul.f32 %v3467, %v3484
  %v3533 = vmul.f32 %v3468, %v3484
  %v3534 = vmul.f32 %v3469, %v3484
  %v3535 = vmul.f32 %v3470, %v3484
  %v3536 = vmul.f32 %v3471, %v3484
  %v3537 = vmul.f32 %v3472, %v3484
  %v3538 = vmul.f32 %v3473, %v3484
  %v3539 = vmul.f32 %v3474, %v3484
  %v3540 = vmul.f32 %v3475, %v3484
  %v3541 = vmul.f32 %v3476, %v3484
  %v3542 = vmul.f32 %v3477, %v3484
  %v3543 = vmul.f32 %v3478, %v3484
  %v3544 = vmul.f32 %v3479, %v3484
  %v3545 = vmul.f32 %v3480, %v3484
  %v3546 = vmul.f32 %v3481, %v3484
  %v3547 = vmul.f32 %v3482, %v3484
  %v3548 = vmul.f32 %v3483, %v3484
  %v3549 = vadd.f32 %v3356, %v3485
  %v3550 = vadd.f32 %v3357, %v3486
  %v3551 = vadd.f32 %v3358, %v3487
  %v3552 = vadd.f32 %v3359, %v3488
  %v3553 = vadd.f32 %v3360, %v3489
  %v3554 = vadd.f32 %v3361, %v3490
  %v3555 = vadd.f32 %v3362, %v3491
  %v3556 = vadd.f32 %v3363, %v3492
  %v3557 = vadd.f32 %v3364, %v3493
  %v3558 = vadd.f32 %v3365, %v3494
  %v3559 = vadd.f32 %v3366, %v3495
  %v3560 = vadd.f32 %v3367, %v3496
  %v3561 = vadd.f32 %v3368, %v3497
  %v3562 = vadd.f32 %v3369, %v3498
  %v3563 = vadd.f32 %v3370, %v3499
  %v3564 = vadd.f32 %v3371, %v3500
  %v3565 = vadd.f32 %v3372, %v3501
  %v3566 = vadd.f32 %v3373, %v3502
  %v3567 = vadd.f32 %v3374, %v3503
  %v3568 = vadd.f32 %v3375, %v3504
  %v3569 = vadd.f32 %v3376, %v3505
  %v3570 = vadd.f32 %v3377, %v3506
  %v3571 = vadd.f32 %v3378, %v3507
  %v3572 = vadd.f32 %v3379, %v3508
  %v3573 = vadd.f32 %v3380, %v3509
  %v3574 = vadd.f32 %v3381, %v3510
  %v3575 = vadd.f32 %v3382, %v3511
  %v3576 = vadd.f32 %v3383, %v3512
  %v3577 = vadd.f32 %v3384, %v3513
  %v3578 = vadd.f32 %v3385, %v3514
  %v3579 = vadd.f32 %v3386, %v3515
  %v3580 = vadd.f32 %v3387, %v3516
  %v3581 = vadd.f32 %v3388, %v3517
  %v3582 = vadd.f32 %v3389, %v3518
  %v3583 = vadd.f32 %v3390, %v3519
  %v3584 = vadd.f32 %v3391, %v3520
  %v3585 = vadd.f32 %v3392, %v3521
  %v3586 = vadd.f32 %v3393, %v3522
  %v3587 = vadd.f32 %v3394, %v3523
  %v3588 = vadd.f32 %v3395, %v3524
  %v3589 = vadd.f32 %v3396, %v3525
  %v3590 = vadd.f32 %v3397, %v3526
  %v3591 = vadd.f32 %v3398, %v3527
  %v3592 = vadd.f32 %v3399, %v3528
  %v3593 = vadd.f32 %v3400, %v3529
  %v3594 = vadd.f32 %v3401, %v3530
  %v3595 = vadd.f32 %v3402, %v3531
  %v3596 = vadd.f32 %v3403, %v3532
  %v3597 = vadd.f32 %v3404, %v3533
  %v3598 = vadd.f32 %v3405, %v3534
  %v3599 = vadd.f32 %v3406, %v3535
  %v3600 = vadd.f32 %v3407, %v3536
  %v3601 = vadd.f32 %v3408, %v3537
  %v3602 = vadd.f32 %v3409, %v3538
  %v3603 = vadd.f32 %v3410, %v3539
  %v3604 = vadd.f32 %v3411, %v3540
  %v3605 = vadd.f32 %v3412, %v3541
  %v3606 = vadd.f32 %v3413, %v3542
  %v3607 = vadd.f32 %v3414, %v3543
  %v3608 = vadd.f32 %v3415, %v3544
  %v3609 = vadd.f32 %v3416, %v3545
  %v3610 = vadd.f32 %v3417, %v3546
  %v3611 = vadd.f32 %v3418, %v3547
  %v3612 = vadd.f32 %v3419, %v3548
  %s3613 = scalar_lea.vmem [#allocation2], 64
  %v3614 = vld [vmem:[%s3613 + $0x7] sm:$0xff]
  %v3615 = vld [vmem:[%s3613 + $0xf] sm:$0xff]
  %v3616 = vld [vmem:[%s3613 + $0x27] sm:$0xff]
  %v3617 = vld [vmem:[%s3613 + $0x2f] sm:$0xff]
  %v3618 = vld [vmem:[%s3613 + $0x47] sm:$0xff]
  %v3619 = vld [vmem:[%s3613 + $0x4f] sm:$0xff]
  %v3620 = vld [vmem:[%s3613 + $0x67] sm:$0xff]
  %v3621 = vld [vmem:[%s3613 + $0x6f] sm:$0xff]
  %v3622 = vld [vmem:[%s3613 + $0x87] sm:$0xff]
  %v3623 = vld [vmem:[%s3613 + $0x8f] sm:$0xff]
  %v3624 = vld [vmem:[%s3613 + $0xa7] sm:$0xff]
  %v3625 = vld [vmem:[%s3613 + $0xaf] sm:$0xff]
  %v3626 = vld [vmem:[%s3613 + $0xc7] sm:$0xff]
  %v3627 = vld [vmem:[%s3613 + $0xcf] sm:$0xff]
  %v3628 = vld [vmem:[%s3613 + $0xe7] sm:$0xff]
  %v3629 = vld [vmem:[%s3613 + $0xef] sm:$0xff]
  %v3630 = vld [vmem:[%s3613 + $0x107] sm:$0xff]
  %v3631 = vld [vmem:[%s3613 + $0x10f] sm:$0xff]
  %v3632 = vld [vmem:[%s3613 + $0x127] sm:$0xff]
  %v3633 = vld [vmem:[%s3613 + $0x12f] sm:$0xff]
  %v3634 = vld [vmem:[%s3613 + $0x147] sm:$0xff]
  %v3635 = vld [vmem:[%s3613 + $0x14f] sm:$0xff]
  %v3636 = vld [vmem:[%s3613 + $0x167] sm:$0xff]
  %v3637 = vld [vmem:[%s3613 + $0x16f] sm:$0xff]
  %v3638 = vld [vmem:[%s3613 + $0x187] sm:$0xff]
  %v3639 = vld [vmem:[%s3613 + $0x18f] sm:$0xff]
  %v3640 = vld [vmem:[%s3613 + $0x1a7] sm:$0xff]
  %v3641 = vld [vmem:[%s3613 + $0x1af] sm:$0xff]
  %v3642 = vld [vmem:[%s3613 + $0x1c7] sm:$0xff]
  %v3643 = vld [vmem:[%s3613 + $0x1cf] sm:$0xff]
  %v3644 = vld [vmem:[%s3613 + $0x1e7] sm:$0xff]
  %v3645 = vld [vmem:[%s3613 + $0x1ef] sm:$0xff]
  %v3646 = vld [vmem:[%s3613 + $0x247] sm:$0xff]
  %v3647 = vld [vmem:[%s3613 + $0x24f] sm:$0xff]
  %v3648 = vld [vmem:[%s3613 + $0x267] sm:$0xff]
  %v3649 = vld [vmem:[%s3613 + $0x26f] sm:$0xff]
  %v3650 = vld [vmem:[%s3613 + $0x287] sm:$0xff]
  %v3651 = vld [vmem:[%s3613 + $0x28f] sm:$0xff]
  %v3652 = vld [vmem:[%s3613 + $0x2a7] sm:$0xff]
  %v3653 = vld [vmem:[%s3613 + $0x2af] sm:$0xff]
  %v3654 = vld [vmem:[%s3613 + $0x2c7] sm:$0xff]
  %v3655 = vld [vmem:[%s3613 + $0x2cf] sm:$0xff]
  %v3656 = vld [vmem:[%s3613 + $0x2e7] sm:$0xff]
  %v3657 = vld [vmem:[%s3613 + $0x2ef] sm:$0xff]
  %v3658 = vld [vmem:[%s3613 + $0x307] sm:$0xff]
  %v3659 = vld [vmem:[%s3613 + $0x30f] sm:$0xff]
  %v3660 = vld [vmem:[%s3613 + $0x327] sm:$0xff]
  %v3661 = vld [vmem:[%s3613 + $0x32f] sm:$0xff]
  %v3662 = vld [vmem:[%s3613 + $0x347] sm:$0xff]
  %v3663 = vld [vmem:[%s3613 + $0x34f] sm:$0xff]
  %v3664 = vld [vmem:[%s3613 + $0x367] sm:$0xff]
  %v3665 = vld [vmem:[%s3613 + $0x36f] sm:$0xff]
  %v3666 = vld [vmem:[%s3613 + $0x387] sm:$0xff]
  %v3667 = vld [vmem:[%s3613 + $0x38f] sm:$0xff]
  %v3668 = vld [vmem:[%s3613 + $0x3a7] sm:$0xff]
  %v3669 = vld [vmem:[%s3613 + $0x3af] sm:$0xff]
  %v3670 = vld [vmem:[%s3613 + $0x3c7] sm:$0xff]
  %v3671 = vld [vmem:[%s3613 + $0x3cf] sm:$0xff]
  %v3672 = vld [vmem:[%s3613 + $0x3e7] sm:$0xff]
  %v3673 = vld [vmem:[%s3613 + $0x3ef] sm:$0xff]
  %v3674 = vld [vmem:[%s3613 + $0x407] sm:$0xff]
  %v3675 = vld [vmem:[%s3613 + $0x40f] sm:$0xff]
  %v3676 = vld [vmem:[%s3613 + $0x427] sm:$0xff]
  %v3677 = vld [vmem:[%s3613 + $0x42f] sm:$0xff]
  %v3678 = vperm.slane %v2453, 6
  %v3679 = vmul.f32 %v3614, %v3678
  %v3680 = vmul.f32 %v3615, %v3678
  %v3681 = vmul.f32 %v3616, %v3678
  %v3682 = vmul.f32 %v3617, %v3678
  %v3683 = vmul.f32 %v3618, %v3678
  %v3684 = vmul.f32 %v3619, %v3678
  %v3685 = vmul.f32 %v3620, %v3678
  %v3686 = vmul.f32 %v3621, %v3678
  %v3687 = vmul.f32 %v3622, %v3678
  %v3688 = vmul.f32 %v3623, %v3678
  %v3689 = vmul.f32 %v3624, %v3678
  %v3690 = vmul.f32 %v3625, %v3678
  %v3691 = vmul.f32 %v3626, %v3678
  %v3692 = vmul.f32 %v3627, %v3678
  %v3693 = vmul.f32 %v3628, %v3678
  %v3694 = vmul.f32 %v3629, %v3678
  %v3695 = vmul.f32 %v3630, %v3678
  %v3696 = vmul.f32 %v3631, %v3678
  %v3697 = vmul.f32 %v3632, %v3678
  %v3698 = vmul.f32 %v3633, %v3678
  %v3699 = vmul.f32 %v3634, %v3678
  %v3700 = vmul.f32 %v3635, %v3678
  %v3701 = vmul.f32 %v3636, %v3678
  %v3702 = vmul.f32 %v3637, %v3678
  %v3703 = vmul.f32 %v3638, %v3678
  %v3704 = vmul.f32 %v3639, %v3678
  %v3705 = vmul.f32 %v3640, %v3678
  %v3706 = vmul.f32 %v3641, %v3678
  %v3707 = vmul.f32 %v3642, %v3678
  %v3708 = vmul.f32 %v3643, %v3678
  %v3709 = vmul.f32 %v3644, %v3678
  %v3710 = vmul.f32 %v3645, %v3678
  %v3711 = vmul.f32 %v3646, %v3678
  %v3712 = vmul.f32 %v3647, %v3678
  %v3713 = vmul.f32 %v3648, %v3678
  %v3714 = vmul.f32 %v3649, %v3678
  %v3715 = vmul.f32 %v3650, %v3678
  %v3716 = vmul.f32 %v3651, %v3678
  %v3717 = vmul.f32 %v3652, %v3678
  %v3718 = vmul.f32 %v3653, %v3678
  %v3719 = vmul.f32 %v3654, %v3678
  %v3720 = vmul.f32 %v3655, %v3678
  %v3721 = vmul.f32 %v3656, %v3678
  %v3722 = vmul.f32 %v3657, %v3678
  %v3723 = vmul.f32 %v3658, %v3678
  %v3724 = vmul.f32 %v3659, %v3678
  %v3725 = vmul.f32 %v3660, %v3678
  %v3726 = vmul.f32 %v3661, %v3678
  %v3727 = vmul.f32 %v3662, %v3678
  %v3728 = vmul.f32 %v3663, %v3678
  %v3729 = vmul.f32 %v3664, %v3678
  %v3730 = vmul.f32 %v3665, %v3678
  %v3731 = vmul.f32 %v3666, %v3678
  %v3732 = vmul.f32 %v3667, %v3678
  %v3733 = vmul.f32 %v3668, %v3678
  %v3734 = vmul.f32 %v3669, %v3678
  %v3735 = vmul.f32 %v3670, %v3678
  %v3736 = vmul.f32 %v3671, %v3678
  %v3737 = vmul.f32 %v3672, %v3678
  %v3738 = vmul.f32 %v3673, %v3678
  %v3739 = vmul.f32 %v3674, %v3678
  %v3740 = vmul.f32 %v3675, %v3678
  %v3741 = vmul.f32 %v3676, %v3678
  %v3742 = vmul.f32 %v3677, %v3678
  %v3743 = vadd.f32 %v3549, %v3679
  %v3744 = vadd.f32 %v3550, %v3680
  %v3745 = vadd.f32 %v3551, %v3681
  %v3746 = vadd.f32 %v3552, %v3682
  %v3747 = vadd.f32 %v3553, %v3683
  %v3748 = vadd.f32 %v3554, %v3684
  %v3749 = vadd.f32 %v3555, %v3685
  %v3750 = vadd.f32 %v3556, %v3686
  %v3751 = vadd.f32 %v3557, %v3687
  %v3752 = vadd.f32 %v3558, %v3688
  %v3753 = vadd.f32 %v3559, %v3689
  %v3754 = vadd.f32 %v3560, %v3690
  %v3755 = vadd.f32 %v3561, %v3691
  %v3756 = vadd.f32 %v3562, %v3692
  %v3757 = vadd.f32 %v3563, %v3693
  %v3758 = vadd.f32 %v3564, %v3694
  %v3759 = vadd.f32 %v3565, %v3695
  %v3760 = vadd.f32 %v3566, %v3696
  %v3761 = vadd.f32 %v3567, %v3697
  %v3762 = vadd.f32 %v3568, %v3698
  %v3763 = vadd.f32 %v3569, %v3699
  %v3764 = vadd.f32 %v3570, %v3700
  %v3765 = vadd.f32 %v3571, %v3701
  %v3766 = vadd.f32 %v3572, %v3702
  %v3767 = vadd.f32 %v3573, %v3703
  %v3768 = vadd.f32 %v3574, %v3704
  %v3769 = vadd.f32 %v3575, %v3705
  %v3770 = vadd.f32 %v3576, %v3706
  %v3771 = vadd.f32 %v3577, %v3707
  %v3772 = vadd.f32 %v3578, %v3708
  %v3773 = vadd.f32 %v3579, %v3709
  %v3774 = vadd.f32 %v3580, %v3710
  %v3775 = vadd.f32 %v3581, %v3711
  %v3776 = vadd.f32 %v3582, %v3712
  %v3777 = vadd.f32 %v3583, %v3713
  %v3778 = vadd.f32 %v3584, %v3714
  %v3779 = vadd.f32 %v3585, %v3715
  %v3780 = vadd.f32 %v3586, %v3716
  %v3781 = vadd.f32 %v3587, %v3717
  %v3782 = vadd.f32 %v3588, %v3718
  %v3783 = vadd.f32 %v3589, %v3719
  %v3784 = vadd.f32 %v3590, %v3720
  %v3785 = vadd.f32 %v3591, %v3721
  %v3786 = vadd.f32 %v3592, %v3722
  %v3787 = vadd.f32 %v3593, %v3723
  %v3788 = vadd.f32 %v3594, %v3724
  %v3789 = vadd.f32 %v3595, %v3725
  %v3790 = vadd.f32 %v3596, %v3726
  %v3791 = vadd.f32 %v3597, %v3727
  %v3792 = vadd.f32 %v3598, %v3728
  %v3793 = vadd.f32 %v3599, %v3729
  %v3794 = vadd.f32 %v3600, %v3730
  %v3795 = vadd.f32 %v3601, %v3731
  %v3796 = vadd.f32 %v3602, %v3732
  %v3797 = vadd.f32 %v3603, %v3733
  %v3798 = vadd.f32 %v3604, %v3734
  %v3799 = vadd.f32 %v3605, %v3735
  %v3800 = vadd.f32 %v3606, %v3736
  %v3801 = vadd.f32 %v3607, %v3737
  %v3802 = vadd.f32 %v3608, %v3738
  %v3803 = vadd.f32 %v3609, %v3739
  %v3804 = vadd.f32 %v3610, %v3740
  %v3805 = vadd.f32 %v3611, %v3741
  %v3806 = vadd.f32 %v3612, %v3742
  %v3807 = vld [vmem:[%s3613 + $0x8] sm:$0xff]
  %v3808 = vld [vmem:[%s3613 + $0x10] sm:$0xff]
  %v3809 = vld [vmem:[%s3613 + $0x28] sm:$0xff]
  %v3810 = vld [vmem:[%s3613 + $0x30] sm:$0xff]
  %v3811 = vld [vmem:[%s3613 + $0x48] sm:$0xff]
  %v3812 = vld [vmem:[%s3613 + $0x50] sm:$0xff]
  %v3813 = vld [vmem:[%s3613 + $0x68] sm:$0xff]
  %v3814 = vld [vmem:[%s3613 + $0x70] sm:$0xff]
  %v3815 = vld [vmem:[%s3613 + $0x88] sm:$0xff]
  %v3816 = vld [vmem:[%s3613 + $0x90] sm:$0xff]
  %v3817 = vld [vmem:[%s3613 + $0xa8] sm:$0xff]
  %v3818 = vld [vmem:[%s3613 + $0xb0] sm:$0xff]
  %v3819 = vld [vmem:[%s3613 + $0xc8] sm:$0xff]
  %v3820 = vld [vmem:[%s3613 + $0xd0] sm:$0xff]
  %v3821 = vld [vmem:[%s3613 + $0xe8] sm:$0xff]
  %v3822 = vld [vmem:[%s3613 + $0xf0] sm:$0xff]
  %v3823 = vld [vmem:[%s3613 + $0x108] sm:$0xff]
  %v3824 = vld [vmem:[%s3613 + $0x110] sm:$0xff]
  %v3825 = vld [vmem:[%s3613 + $0x128] sm:$0xff]
  %v3826 = vld [vmem:[%s3613 + $0x130] sm:$0xff]
  %v3827 = vld [vmem:[%s3613 + $0x148] sm:$0xff]
  %v3828 = vld [vmem:[%s3613 + $0x150] sm:$0xff]
  %v3829 = vld [vmem:[%s3613 + $0x168] sm:$0xff]
  %v3830 = vld [vmem:[%s3613 + $0x170] sm:$0xff]
  %v3831 = vld [vmem:[%s3613 + $0x188] sm:$0xff]
  %v3832 = vld [vmem:[%s3613 + $0x190] sm:$0xff]
  %v3833 = vld [vmem:[%s3613 + $0x1a8] sm:$0xff]
  %v3834 = vld [vmem:[%s3613 + $0x1b0] sm:$0xff]
  %v3835 = vld [vmem:[%s3613 + $0x1c8] sm:$0xff]
  %v3836 = vld [vmem:[%s3613 + $0x1d0] sm:$0xff]
  %v3837 = vld [vmem:[%s3613 + $0x1e8] sm:$0xff]
  %v3838 = vld [vmem:[%s3613 + $0x1f0] sm:$0xff]
  %v3839 = vld [vmem:[%s3613 + $0x248] sm:$0xff]
  %v3840 = vld [vmem:[%s3613 + $0x250] sm:$0xff]
  %v3841 = vld [vmem:[%s3613 + $0x268] sm:$0xff]
  %v3842 = vld [vmem:[%s3613 + $0x270] sm:$0xff]
  %v3843 = vld [vmem:[%s3613 + $0x288] sm:$0xff]
  %v3844 = vld [vmem:[%s3613 + $0x290] sm:$0xff]
  %v3845 = vld [vmem:[%s3613 + $0x2a8] sm:$0xff]
  %v3846 = vld [vmem:[%s3613 + $0x2b0] sm:$0xff]
  %v3847 = vld [vmem:[%s3613 + $0x2c8] sm:$0xff]
  %v3848 = vld [vmem:[%s3613 + $0x2d0] sm:$0xff]
  %v3849 = vld [vmem:[%s3613 + $0x2e8] sm:$0xff]
  %v3850 = vld [vmem:[%s3613 + $0x2f0] sm:$0xff]
  %v3851 = vld [vmem:[%s3613 + $0x308] sm:$0xff]
  %v3852 = vld [vmem:[%s3613 + $0x310] sm:$0xff]
  %v3853 = vld [vmem:[%s3613 + $0x328] sm:$0xff]
  %v3854 = vld [vmem:[%s3613 + $0x330] sm:$0xff]
  %v3855 = vld [vmem:[%s3613 + $0x348] sm:$0xff]
  %v3856 = vld [vmem:[%s3613 + $0x350] sm:$0xff]
  %v3857 = vld [vmem:[%s3613 + $0x368] sm:$0xff]
  %v3858 = vld [vmem:[%s3613 + $0x370] sm:$0xff]
  %v3859 = vld [vmem:[%s3613 + $0x388] sm:$0xff]
  %v3860 = vld [vmem:[%s3613 + $0x390] sm:$0xff]
  %v3861 = vld [vmem:[%s3613 + $0x3a8] sm:$0xff]
  %v3862 = vld [vmem:[%s3613 + $0x3b0] sm:$0xff]
  %v3863 = vld [vmem:[%s3613 + $0x3c8] sm:$0xff]
  %v3864 = vld [vmem:[%s3613 + $0x3d0] sm:$0xff]
  %v3865 = vld [vmem:[%s3613 + $0x3e8] sm:$0xff]
  %v3866 = vld [vmem:[%s3613 + $0x3f0] sm:$0xff]
  %v3867 = vld [vmem:[%s3613 + $0x408] sm:$0xff]
  %v3868 = vld [vmem:[%s3613 + $0x410] sm:$0xff]
  %v3869 = vld [vmem:[%s3613 + $0x428] sm:$0xff]
  %v3870 = vld [vmem:[%s3613 + $0x430] sm:$0xff]
  %v3871 = vperm.slane %v2453, 7
  %v3872 = vmul.f32 %v3807, %v3871
  %v3873 = vmul.f32 %v3808, %v3871
  %v3874 = vmul.f32 %v3809, %v3871
  %v3875 = vmul.f32 %v3810, %v3871
  %v3876 = vmul.f32 %v3811, %v3871
  %v3877 = vmul.f32 %v3812, %v3871
  %v3878 = vmul.f32 %v3813, %v3871
  %v3879 = vmul.f32 %v3814, %v3871
  %v3880 = vmul.f32 %v3815, %v3871
  %v3881 = vmul.f32 %v3816, %v3871
  %v3882 = vmul.f32 %v3817, %v3871
  %v3883 = vmul.f32 %v3818, %v3871
  %v3884 = vmul.f32 %v3819, %v3871
  %v3885 = vmul.f32 %v3820, %v3871
  %v3886 = vmul.f32 %v3821, %v3871
  %v3887 = vmul.f32 %v3822, %v3871
  %v3888 = vmul.f32 %v3823, %v3871
  %v3889 = vmul.f32 %v3824, %v3871
  %v3890 = vmul.f32 %v3825, %v3871
  %v3891 = vmul.f32 %v3826, %v3871
  %v3892 = vmul.f32 %v3827, %v3871
  %v3893 = vmul.f32 %v3828, %v3871
  %v3894 = vmul.f32 %v3829, %v3871
  %v3895 = vmul.f32 %v3830, %v3871
  %v3896 = vmul.f32 %v3831, %v3871
  %v3897 = vmul.f32 %v3832, %v3871
  %v3898 = vmul.f32 %v3833, %v3871
  %v3899 = vmul.f32 %v3834, %v3871
  %v3900 = vmul.f32 %v3835, %v3871
  %v3901 = vmul.f32 %v3836, %v3871
  %v3902 = vmul.f32 %v3837, %v3871
  %v3903 = vmul.f32 %v3838, %v3871
  %v3904 = vmul.f32 %v3839, %v3871
  %v3905 = vmul.f32 %v3840, %v3871
  %v3906 = vmul.f32 %v3841, %v3871
  %v3907 = vmul.f32 %v3842, %v3871
  %v3908 = vmul.f32 %v3843, %v3871
  %v3909 = vmul.f32 %v3844, %v3871
  %v3910 = vmul.f32 %v3845, %v3871
  %v3911 = vmul.f32 %v3846, %v3871
  %v3912 = vmul.f32 %v3847, %v3871
  %v3913 = vmul.f32 %v3848, %v3871
  %v3914 = vmul.f32 %v3849, %v3871
  %v3915 = vmul.f32 %v3850, %v3871
  %v3916 = vmul.f32 %v3851, %v3871
  %v3917 = vmul.f32 %v3852, %v3871
  %v3918 = vmul.f32 %v3853, %v3871
  %v3919 = vmul.f32 %v3854, %v3871
  %v3920 = vmul.f32 %v3855, %v3871
  %v3921 = vmul.f32 %v3856, %v3871
  %v3922 = vmul.f32 %v3857, %v3871
  %v3923 = vmul.f32 %v3858, %v3871
  %v3924 = vmul.f32 %v3859, %v3871
  %v3925 = vmul.f32 %v3860, %v3871
  %v3926 = vmul.f32 %v3861, %v3871
  %v3927 = vmul.f32 %v3862, %v3871
  %v3928 = vmul.f32 %v3863, %v3871
  %v3929 = vmul.f32 %v3864, %v3871
  %v3930 = vmul.f32 %v3865, %v3871
  %v3931 = vmul.f32 %v3866, %v3871
  %v3932 = vmul.f32 %v3867, %v3871
  %v3933 = vmul.f32 %v3868, %v3871
  %v3934 = vmul.f32 %v3869, %v3871
  %v3935 = vmul.f32 %v3870, %v3871
  %v3936 = vadd.f32 %v3743, %v3872
  %v3937 = vadd.f32 %v3744, %v3873
  %v3938 = vadd.f32 %v3745, %v3874
  %v3939 = vadd.f32 %v3746, %v3875
  %v3940 = vadd.f32 %v3747, %v3876
  %v3941 = vadd.f32 %v3748, %v3877
  %v3942 = vadd.f32 %v3749, %v3878
  %v3943 = vadd.f32 %v3750, %v3879
  %v3944 = vadd.f32 %v3751, %v3880
  %v3945 = vadd.f32 %v3752, %v3881
  %v3946 = vadd.f32 %v3753, %v3882
  %v3947 = vadd.f32 %v3754, %v3883
  %v3948 = vadd.f32 %v3755, %v3884
  %v3949 = vadd.f32 %v3756, %v3885
  %v3950 = vadd.f32 %v3757, %v3886
  %v3951 = vadd.f32 %v3758, %v3887
  %v3952 = vadd.f32 %v3759, %v3888
  %v3953 = vadd.f32 %v3760, %v3889
  %v3954 = vadd.f32 %v3761, %v3890
  %v3955 = vadd.f32 %v3762, %v3891
  %v3956 = vadd.f32 %v3763, %v3892
  %v3957 = vadd.f32 %v3764, %v3893
  %v3958 = vadd.f32 %v3765, %v3894
  %v3959 = vadd.f32 %v3766, %v3895
  %v3960 = vadd.f32 %v3767, %v3896
  %v3961 = vadd.f32 %v3768, %v3897
  %v3962 = vadd.f32 %v3769, %v3898
  %v3963 = vadd.f32 %v3770, %v3899
  %v3964 = vadd.f32 %v3771, %v3900
  %v3965 = vadd.f32 %v3772, %v3901
  %v3966 = vadd.f32 %v3773, %v3902
  %v3967 = vadd.f32 %v3774, %v3903
  %v3968 = vadd.f32 %v3775, %v3904
  %v3969 = vadd.f32 %v3776, %v3905
  %v3970 = vadd.f32 %v3777, %v3906
  %v3971 = vadd.f32 %v3778, %v3907
  %v3972 = vadd.f32 %v3779, %v3908
  %v3973 = vadd.f32 %v3780, %v3909
  %v3974 = vadd.f32 %v3781, %v3910
  %v3975 = vadd.f32 %v3782, %v3911
  %v3976 = vadd.f32 %v3783, %v3912
  %v3977 = vadd.f32 %v3784, %v3913
  %v3978 = vadd.f32 %v3785, %v3914
  %v3979 = vadd.f32 %v3786, %v3915
  %v3980 = vadd.f32 %v3787, %v3916
  %v3981 = vadd.f32 %v3788, %v3917
  %v3982 = vadd.f32 %v3789, %v3918
  %v3983 = vadd.f32 %v3790, %v3919
  %v3984 = vadd.f32 %v3791, %v3920
  %v3985 = vadd.f32 %v3792, %v3921
  %v3986 = vadd.f32 %v3793, %v3922
  %v3987 = vadd.f32 %v3794, %v3923
  %v3988 = vadd.f32 %v3795, %v3924
  %v3989 = vadd.f32 %v3796, %v3925
  %v3990 = vadd.f32 %v3797, %v3926
  %v3991 = vadd.f32 %v3798, %v3927
  %v3992 = vadd.f32 %v3799, %v3928
  %v3993 = vadd.f32 %v3800, %v3929
  %v3994 = vadd.f32 %v3801, %v3930
  %v3995 = vadd.f32 %v3802, %v3931
  %v3996 = vadd.f32 %v3803, %v3932
  %v3997 = vadd.f32 %v3804, %v3933
  %v3998 = vadd.f32 %v3805, %v3934
  %v3999 = vadd.f32 %v3806, %v3935
  %v4000 = vld [vmem:[%s3613 + $0x9] sm:$0xff]
  %v4001 = vld [vmem:[%s3613 + $0x11] sm:$0xff]
  %v4002 = vld [vmem:[%s3613 + $0x29] sm:$0xff]
  %v4003 = vld [vmem:[%s3613 + $0x31] sm:$0xff]
  %v4004 = vld [vmem:[%s3613 + $0x49] sm:$0xff]
  %v4005 = vld [vmem:[%s3613 + $0x51] sm:$0xff]
  %v4006 = vld [vmem:[%s3613 + $0x69] sm:$0xff]
  %v4007 = vld [vmem:[%s3613 + $0x71] sm:$0xff]
  %v4008 = vld [vmem:[%s3613 + $0x89] sm:$0xff]
  %v4009 = vld [vmem:[%s3613 + $0x91] sm:$0xff]
  %v4010 = vld [vmem:[%s3613 + $0xa9] sm:$0xff]
  %v4011 = vld [vmem:[%s3613 + $0xb1] sm:$0xff]
  %v4012 = vld [vmem:[%s3613 + $0xc9] sm:$0xff]
  %v4013 = vld [vmem:[%s3613 + $0xd1] sm:$0xff]
  %v4014 = vld [vmem:[%s3613 + $0xe9] sm:$0xff]
  %v4015 = vld [vmem:[%s3613 + $0xf1] sm:$0xff]
  %v4016 = vld [vmem:[%s3613 + $0x109] sm:$0xff]
  %v4017 = vld [vmem:[%s3613 + $0x111] sm:$0xff]
  %v4018 = vld [vmem:[%s3613 + $0x129] sm:$0xff]
  %v4019 = vld [vmem:[%s3613 + $0x131] sm:$0xff]
  %v4020 = vld [vmem:[%s3613 + $0x149] sm:$0xff]
  %v4021 = vld [vmem:[%s3613 + $0x151] sm:$0xff]
  %v4022 = vld [vmem:[%s3613 + $0x169] sm:$0xff]
  %v4023 = vld [vmem:[%s3613 + $0x171] sm:$0xff]
  %v4024 = vld [vmem:[%s3613 + $0x189] sm:$0xff]
  %v4025 = vld [vmem:[%s3613 + $0x191] sm:$0xff]
  %v4026 = vld [vmem:[%s3613 + $0x1a9] sm:$0xff]
  %v4027 = vld [vmem:[%s3613 + $0x1b1] sm:$0xff]
  %v4028 = vld [vmem:[%s3613 + $0x1c9] sm:$0xff]
  %v4029 = vld [vmem:[%s3613 + $0x1d1] sm:$0xff]
  %v4030 = vld [vmem:[%s3613 + $0x1e9] sm:$0xff]
  %v4031 = vld [vmem:[%s3613 + $0x1f1] sm:$0xff]
  %v4032 = vld [vmem:[%s3613 + $0x249] sm:$0xff]
  %v4033 = vld [vmem:[%s3613 + $0x251] sm:$0xff]
  %v4034 = vld [vmem:[%s3613 + $0x269] sm:$0xff]
  %v4035 = vld [vmem:[%s3613 + $0x271] sm:$0xff]
  %v4036 = vld [vmem:[%s3613 + $0x289] sm:$0xff]
  %v4037 = vld [vmem:[%s3613 + $0x291] sm:$0xff]
  %v4038 = vld [vmem:[%s3613 + $0x2a9] sm:$0xff]
  %v4039 = vld [vmem:[%s3613 + $0x2b1] sm:$0xff]
  %v4040 = vld [vmem:[%s3613 + $0x2c9] sm:$0xff]
  %v4041 = vld [vmem:[%s3613 + $0x2d1] sm:$0xff]
  %v4042 = vld [vmem:[%s3613 + $0x2e9] sm:$0xff]
  %v4043 = vld [vmem:[%s3613 + $0x2f1] sm:$0xff]
  %v4044 = vld [vmem:[%s3613 + $0x309] sm:$0xff]
  %v4045 = vld [vmem:[%s3613 + $0x311] sm:$0xff]
  %v4046 = vld [vmem:[%s3613 + $0x329] sm:$0xff]
  %v4047 = vld [vmem:[%s3613 + $0x331] sm:$0xff]
  %v4048 = vld [vmem:[%s3613 + $0x349] sm:$0xff]
  %v4049 = vld [vmem:[%s3613 + $0x351] sm:$0xff]
  %v4050 = vld [vmem:[%s3613 + $0x369] sm:$0xff]
  %v4051 = vld [vmem:[%s3613 + $0x371] sm:$0xff]
  %v4052 = vld [vmem:[%s3613 + $0x389] sm:$0xff]
  %v4053 = vld [vmem:[%s3613 + $0x391] sm:$0xff]
  %v4054 = vld [vmem:[%s3613 + $0x3a9] sm:$0xff]
  %v4055 = vld [vmem:[%s3613 + $0x3b1] sm:$0xff]
  %v4056 = vld [vmem:[%s3613 + $0x3c9] sm:$0xff]
  %v4057 = vld [vmem:[%s3613 + $0x3d1] sm:$0xff]
  %v4058 = vld [vmem:[%s3613 + $0x3e9] sm:$0xff]
  %v4059 = vld [vmem:[%s3613 + $0x3f1] sm:$0xff]
  %v4060 = vld [vmem:[%s3613 + $0x409] sm:$0xff]
  %v4061 = vld [vmem:[%s3613 + $0x411] sm:$0xff]
  %v4062 = vld [vmem:[%s3613 + $0x429] sm:$0xff]
  %v4063 = vld [vmem:[%s3613 + $0x431] sm:$0xff]
  %v4064 = vperm.slane %v2454, 0
  %v4065 = vmul.f32 %v4000, %v4064
  %v4066 = vmul.f32 %v4001, %v4064
  %v4067 = vmul.f32 %v4002, %v4064
  %v4068 = vmul.f32 %v4003, %v4064
  %v4069 = vmul.f32 %v4004, %v4064
  %v4070 = vmul.f32 %v4005, %v4064
  %v4071 = vmul.f32 %v4006, %v4064
  %v4072 = vmul.f32 %v4007, %v4064
  %v4073 = vmul.f32 %v4008, %v4064
  %v4074 = vmul.f32 %v4009, %v4064
  %v4075 = vmul.f32 %v4010, %v4064
  %v4076 = vmul.f32 %v4011, %v4064
  %v4077 = vmul.f32 %v4012, %v4064
  %v4078 = vmul.f32 %v4013, %v4064
  %v4079 = vmul.f32 %v4014, %v4064
  %v4080 = vmul.f32 %v4015, %v4064
  %v4081 = vmul.f32 %v4016, %v4064
  %v4082 = vmul.f32 %v4017, %v4064
  %v4083 = vmul.f32 %v4018, %v4064
  %v4084 = vmul.f32 %v4019, %v4064
  %v4085 = vmul.f32 %v4020, %v4064
  %v4086 = vmul.f32 %v4021, %v4064
  %v4087 = vmul.f32 %v4022, %v4064
  %v4088 = vmul.f32 %v4023, %v4064
  %v4089 = vmul.f32 %v4024, %v4064
  %v4090 = vmul.f32 %v4025, %v4064
  %v4091 = vmul.f32 %v4026, %v4064
  %v4092 = vmul.f32 %v4027, %v4064
  %v4093 = vmul.f32 %v4028, %v4064
  %v4094 = vmul.f32 %v4029, %v4064
  %v4095 = vmul.f32 %v4030, %v4064
  %v4096 = vmul.f32 %v4031, %v4064
  %v4097 = vmul.f32 %v4032, %v4064
  %v4098 = vmul.f32 %v4033, %v4064
  %v4099 = vmul.f32 %v4034, %v4064
  %v4100 = vmul.f32 %v4035, %v4064
  %v4101 = vmul.f32 %v4036, %v4064
  %v4102 = vmul.f32 %v4037, %v4064
  %v4103 = vmul.f32 %v4038, %v4064
  %v4104 = vmul.f32 %v4039, %v4064
  %v4105 = vmul.f32 %v4040, %v4064
  %v4106 = vmul.f32 %v4041, %v4064
  %v4107 = vmul.f32 %v4042, %v4064
  %v4108 = vmul.f32 %v4043, %v4064
  %v4109 = vmul.f32 %v4044, %v4064
  %v4110 = vmul.f32 %v4045, %v4064
  %v4111 = vmul.f32 %v4046, %v4064
  %v4112 = vmul.f32 %v4047, %v4064
  %v4113 = vmul.f32 %v4048, %v4064
  %v4114 = vmul.f32 %v4049, %v4064
  %v4115 = vmul.f32 %v4050, %v4064
  %v4116 = vmul.f32 %v4051, %v4064
  %v4117 = vmul.f32 %v4052, %v4064
  %v4118 = vmul.f32 %v4053, %v4064
  %v4119 = vmul.f32 %v4054, %v4064
  %v4120 = vmul.f32 %v4055, %v4064
  %v4121 = vmul.f32 %v4056, %v4064
  %v4122 = vmul.f32 %v4057, %v4064
  %v4123 = vmul.f32 %v4058, %v4064
  %v4124 = vmul.f32 %v4059, %v4064
  %v4125 = vmul.f32 %v4060, %v4064
  %v4126 = vmul.f32 %v4061, %v4064
  %v4127 = vmul.f32 %v4062, %v4064
  %v4128 = vmul.f32 %v4063, %v4064
  %v4129 = vadd.f32 %v3936, %v4065
  %v4130 = vadd.f32 %v3937, %v4066
  %v4131 = vadd.f32 %v3938, %v4067
  %v4132 = vadd.f32 %v3939, %v4068
  %v4133 = vadd.f32 %v3940, %v4069
  %v4134 = vadd.f32 %v3941, %v4070
  %v4135 = vadd.f32 %v3942, %v4071
  %v4136 = vadd.f32 %v3943, %v4072
  %v4137 = vadd.f32 %v3944, %v4073
  %v4138 = vadd.f32 %v3945, %v4074
  %v4139 = vadd.f32 %v3946, %v4075
  %v4140 = vadd.f32 %v3947, %v4076
  %v4141 = vadd.f32 %v3948, %v4077
  %v4142 = vadd.f32 %v3949, %v4078
  %v4143 = vadd.f32 %v3950, %v4079
  %v4144 = vadd.f32 %v3951, %v4080
  %v4145 = vadd.f32 %v3952, %v4081
  %v4146 = vadd.f32 %v3953, %v4082
  %v4147 = vadd.f32 %v3954, %v4083
  %v4148 = vadd.f32 %v3955, %v4084
  %v4149 = vadd.f32 %v3956, %v4085
  %v4150 = vadd.f32 %v3957, %v4086
  %v4151 = vadd.f32 %v3958, %v4087
  %v4152 = vadd.f32 %v3959, %v4088
  %v4153 = vadd.f32 %v3960, %v4089
  %v4154 = vadd.f32 %v3961, %v4090
  %v4155 = vadd.f32 %v3962, %v4091
  %v4156 = vadd.f32 %v3963, %v4092
  %v4157 = vadd.f32 %v3964, %v4093
  %v4158 = vadd.f32 %v3965, %v4094
  %v4159 = vadd.f32 %v3966, %v4095
  %v4160 = vadd.f32 %v3967, %v4096
  %v4161 = vadd.f32 %v3968, %v4097
  %v4162 = vadd.f32 %v3969, %v4098
  %v4163 = vadd.f32 %v3970, %v4099
  %v4164 = vadd.f32 %v3971, %v4100
  %v4165 = vadd.f32 %v3972, %v4101
  %v4166 = vadd.f32 %v3973, %v4102
  %v4167 = vadd.f32 %v3974, %v4103
  %v4168 = vadd.f32 %v3975, %v4104
  %v4169 = vadd.f32 %v3976, %v4105
  %v4170 = vadd.f32 %v3977, %v4106
  %v4171 = vadd.f32 %v3978, %v4107
  %v4172 = vadd.f32 %v3979, %v4108
  %v4173 = vadd.f32 %v3980, %v4109
  %v4174 = vadd.f32 %v3981, %v4110
  %v4175 = vadd.f32 %v3982, %v4111
  %v4176 = vadd.f32 %v3983, %v4112
  %v4177 = vadd.f32 %v3984, %v4113
  %v4178 = vadd.f32 %v3985, %v4114
  %v4179 = vadd.f32 %v3986, %v4115
  %v4180 = vadd.f32 %v3987, %v4116
  %v4181 = vadd.f32 %v3988, %v4117
  %v4182 = vadd.f32 %v3989, %v4118
  %v4183 = vadd.f32 %v3990, %v4119
  %v4184 = vadd.f32 %v3991, %v4120
  %v4185 = vadd.f32 %v3992, %v4121
  %v4186 = vadd.f32 %v3993, %v4122
  %v4187 = vadd.f32 %v3994, %v4123
  %v4188 = vadd.f32 %v3995, %v4124
  %v4189 = vadd.f32 %v3996, %v4125
  %v4190 = vadd.f32 %v3997, %v4126
  %v4191 = vadd.f32 %v3998, %v4127
  %v4192 = vadd.f32 %v3999, %v4128
  %v4193 = vld [vmem:[%s5] sm:$0xff]
  %v4194 = vld [vmem:[%s6] sm:$0x1]
  %v4196 = vperm.slane %v4194, 0
  %v4199 = vsel %vm2242, %v4129, 0
  %v4202 = vsel %vm2242, %v4130, 0
  %v4205 = vsel %vm2242, %v4131, 0
  %v4208 = vsel %vm2242, %v4132, 0
  %v4211 = vsel %vm2242, %v4133, 0
  %v4214 = vsel %vm2242, %v4134, 0
  %v4217 = vsel %vm2242, %v4135, 0
  %v4220 = vsel %vm2242, %v4136, 0
  %v4223 = vsel %vm2242, %v4137, 0
  %v4226 = vsel %vm2242, %v4138, 0
  %v4229 = vsel %vm2242, %v4139, 0
  %v4232 = vsel %vm2242, %v4140, 0
  %v4235 = vsel %vm2242, %v4141, 0
  %v4238 = vsel %vm2242, %v4142, 0
  %v4241 = vsel %vm2242, %v4143, 0
  %v4244 = vsel %vm2242, %v4144, 0
  %v4247 = vsel %vm2242, %v4145, 0
  %v4250 = vsel %vm2242, %v4146, 0
  %v4253 = vsel %vm2242, %v4147, 0
  %v4256 = vsel %vm2242, %v4148, 0
  %v4259 = vsel %vm2242, %v4149, 0
  %v4262 = vsel %vm2242, %v4150, 0
  %v4265 = vsel %vm2242, %v4151, 0
  %v4268 = vsel %vm2242, %v4152, 0
  %v4271 = vsel %vm2242, %v4153, 0
  %v4274 = vsel %vm2242, %v4154, 0
  %v4277 = vsel %vm2242, %v4155, 0
  %v4280 = vsel %vm2242, %v4156, 0
  %v4283 = vsel %vm2242, %v4157, 0
  %v4286 = vsel %vm2242, %v4158, 0
  %v4289 = vsel %vm2242, %v4159, 0
  %v4292 = vsel %vm2242, %v4160, 0
  %v4295 = vsel %vm2242, %v4161, 0
  %v4298 = vsel %vm2242, %v4162, 0
  %v4301 = vsel %vm2242, %v4163, 0
  %v4304 = vsel %vm2242, %v4164, 0
  %v4307 = vsel %vm2242, %v4165, 0
  %v4310 = vsel %vm2242, %v4166, 0
  %v4313 = vsel %vm2242, %v4167, 0
  %v4316 = vsel %vm2242, %v4168, 0
  %v4319 = vsel %vm2242, %v4169, 0
  %v4322 = vsel %vm2242, %v4170, 0
  %v4325 = vsel %vm2242, %v4171, 0
  %v4328 = vsel %vm2242, %v4172, 0
  %v4331 = vsel %vm2242, %v4173, 0
  %v4334 = vsel %vm2242, %v4174, 0
  %v4337 = vsel %vm2242, %v4175, 0
  %v4340 = vsel %vm2242, %v4176, 0
  %v4343 = vsel %vm2242, %v4177, 0
  %v4346 = vsel %vm2242, %v4178, 0
  %v4349 = vsel %vm2242, %v4179, 0
  %v4352 = vsel %vm2242, %v4180, 0
  %v4355 = vsel %vm2242, %v4181, 0
  %v4358 = vsel %vm2242, %v4182, 0
  %v4361 = vsel %vm2242, %v4183, 0
  %v4364 = vsel %vm2242, %v4184, 0
  %v4367 = vsel %vm2242, %v4185, 0
  %v4370 = vsel %vm2242, %v4186, 0
  %v4373 = vsel %vm2242, %v4187, 0
  %v4376 = vsel %vm2242, %v4188, 0
  %v4379 = vsel %vm2242, %v4189, 0
  %v4382 = vsel %vm2242, %v4190, 0
  %v4385 = vsel %vm2242, %v4191, 0
  %v4388 = vsel %vm2242, %v4192, 0
  %4390 = vmatpush.msra.mxu0 0.0
  %4391 = vmatpush.msra.mxu0 0.0
  %4392 = vmatpush.msra.mxu0 0.0
  %4393 = vmatpush.msra.mxu0 0.0
  %4394 = vmatpush.msra.mxu0 0.0
  %4395 = vmatpush.msra.mxu0 0.0
  %4396 = vmatpush.msra.mxu0 0.0
  %4397 = vmatpush.msra.mxu0 0.0
  %4398 = vmatpush.msra.mxu0 0.0
  %4399 = vmatpush.msra.mxu0 0.0
  %4400 = vmatpush.msra.mxu0 0.0
  %4401 = vmatpush.msra.mxu0 0.0
  %4402 = vmatpush.msra.mxu0 0.0
  %4403 = vmatpush.msra.mxu0 0.0
  %4404 = vmatpush.msra.mxu0 0.0
  %4405 = vmatpush.msra.mxu0 %v4193
  %4406 = vmatmul.f32.gmra.mxu0 %v4199
  %v4407 = vpop.f32.mrf.mxu0
  %v4408 = vadd.f32 %v4196, %v4407
  %4409 = vmatmul.f32.gmra.mxu0 %v4202
  %v4410 = vpop.f32.mrf.mxu0
  %v4411 = vadd.f32 %v4196, %v4410
  %4412 = vmatmul.f32.gmra.mxu0 %v4205
  %v4413 = vpop.f32.mrf.mxu0
  %v4414 = vadd.f32 %v4196, %v4413
  %4415 = vmatmul.f32.gmra.mxu0 %v4208
  %v4416 = vpop.f32.mrf.mxu0
  %v4417 = vadd.f32 %v4196, %v4416
  %4418 = vmatmul.f32.gmra.mxu0 %v4211
  %v4419 = vpop.f32.mrf.mxu0
  %v4420 = vadd.f32 %v4196, %v4419
  %4421 = vmatmul.f32.gmra.mxu0 %v4214
  %v4422 = vpop.f32.mrf.mxu0
  %v4423 = vadd.f32 %v4196, %v4422
  %4424 = vmatmul.f32.gmra.mxu0 %v4217
  %v4425 = vpop.f32.mrf.mxu0
  %v4426 = vadd.f32 %v4196, %v4425
  %4427 = vmatmul.f32.gmra.mxu0 %v4220
  %v4428 = vpop.f32.mrf.mxu0
  %v4429 = vadd.f32 %v4196, %v4428
  %4430 = vmatmul.f32.gmra.mxu0 %v4223
  %v4431 = vpop.f32.mrf.mxu0
  %v4432 = vadd.f32 %v4196, %v4431
  %4433 = vmatmul.f32.gmra.mxu0 %v4226
  %v4434 = vpop.f32.mrf.mxu0
  %v4435 = vadd.f32 %v4196, %v4434
  %4436 = vmatmul.f32.gmra.mxu0 %v4229
  %v4437 = vpop.f32.mrf.mxu0
  %v4438 = vadd.f32 %v4196, %v4437
  %4439 = vmatmul.f32.gmra.mxu0 %v4232
  %v4440 = vpop.f32.mrf.mxu0
  %v4441 = vadd.f32 %v4196, %v4440
  %4442 = vmatmul.f32.gmra.mxu0 %v4235
  %v4443 = vpop.f32.mrf.mxu0
  %v4444 = vadd.f32 %v4196, %v4443
  %4445 = vmatmul.f32.gmra.mxu0 %v4238
  %v4446 = vpop.f32.mrf.mxu0
  %v4447 = vadd.f32 %v4196, %v4446
  %4448 = vmatmul.f32.gmra.mxu0 %v4241
  %v4449 = vpop.f32.mrf.mxu0
  %v4450 = vadd.f32 %v4196, %v4449
  %4451 = vmatmul.f32.gmra.mxu0 %v4244
  %v4452 = vpop.f32.mrf.mxu0
  %v4453 = vadd.f32 %v4196, %v4452
  %4454 = vmatmul.f32.gmra.mxu0 %v4247
  %v4455 = vpop.f32.mrf.mxu0
  %v4456 = vadd.f32 %v4196, %v4455
  %4457 = vmatmul.f32.gmra.mxu0 %v4250
  %v4458 = vpop.f32.mrf.mxu0
  %v4459 = vadd.f32 %v4196, %v4458
  %4460 = vmatmul.f32.gmra.mxu0 %v4253
  %v4461 = vpop.f32.mrf.mxu0
  %v4462 = vadd.f32 %v4196, %v4461
  %4463 = vmatmul.f32.gmra.mxu0 %v4256
  %v4464 = vpop.f32.mrf.mxu0
  %v4465 = vadd.f32 %v4196, %v4464
  %4466 = vmatmul.f32.gmra.mxu0 %v4259
  %v4467 = vpop.f32.mrf.mxu0
  %v4468 = vadd.f32 %v4196, %v4467
  %4469 = vmatmul.f32.gmra.mxu0 %v4262
  %v4470 = vpop.f32.mrf.mxu0
  %v4471 = vadd.f32 %v4196, %v4470
  %4472 = vmatmul.f32.gmra.mxu0 %v4265
  %v4473 = vpop.f32.mrf.mxu0
  %v4474 = vadd.f32 %v4196, %v4473
  %4475 = vmatmul.f32.gmra.mxu0 %v4268
  %v4476 = vpop.f32.mrf.mxu0
  %v4477 = vadd.f32 %v4196, %v4476
  %4478 = vmatmul.f32.gmra.mxu0 %v4271
  %v4479 = vpop.f32.mrf.mxu0
  %v4480 = vadd.f32 %v4196, %v4479
  %4481 = vmatmul.f32.gmra.mxu0 %v4274
  %v4482 = vpop.f32.mrf.mxu0
  %v4483 = vadd.f32 %v4196, %v4482
  %4484 = vmatmul.f32.gmra.mxu0 %v4277
  %v4485 = vpop.f32.mrf.mxu0
  %v4486 = vadd.f32 %v4196, %v4485
  %4487 = vmatmul.f32.gmra.mxu0 %v4280
  %v4488 = vpop.f32.mrf.mxu0
  %v4489 = vadd.f32 %v4196, %v4488
  %4490 = vmatmul.f32.gmra.mxu0 %v4283
  %v4491 = vpop.f32.mrf.mxu0
  %v4492 = vadd.f32 %v4196, %v4491
  %4493 = vmatmul.f32.gmra.mxu0 %v4286
  %v4494 = vpop.f32.mrf.mxu0
  %v4495 = vadd.f32 %v4196, %v4494
  %4496 = vmatmul.f32.gmra.mxu0 %v4289
  %v4497 = vpop.f32.mrf.mxu0
  %v4498 = vadd.f32 %v4196, %v4497
  %4499 = vmatmul.f32.gmra.mxu0 %v4292
  %v4500 = vpop.f32.mrf.mxu0
  %v4501 = vadd.f32 %v4196, %v4500
  %4502 = vmatmul.f32.gmra.mxu0 %v4295
  %v4503 = vpop.f32.mrf.mxu0
  %v4504 = vadd.f32 %v4196, %v4503
  %4505 = vmatmul.f32.gmra.mxu0 %v4298
  %v4506 = vpop.f32.mrf.mxu0
  %v4507 = vadd.f32 %v4196, %v4506
  %4508 = vmatmul.f32.gmra.mxu0 %v4301
  %v4509 = vpop.f32.mrf.mxu0
  %v4510 = vadd.f32 %v4196, %v4509
  %4511 = vmatmul.f32.gmra.mxu0 %v4304
  %v4512 = vpop.f32.mrf.mxu0
  %v4513 = vadd.f32 %v4196, %v4512
  %4514 = vmatmul.f32.gmra.mxu0 %v4307
  %v4515 = vpop.f32.mrf.mxu0
  %v4516 = vadd.f32 %v4196, %v4515
  %4517 = vmatmul.f32.gmra.mxu0 %v4310
  %v4518 = vpop.f32.mrf.mxu0
  %v4519 = vadd.f32 %v4196, %v4518
  %4520 = vmatmul.f32.gmra.mxu0 %v4313
  %v4521 = vpop.f32.mrf.mxu0
  %v4522 = vadd.f32 %v4196, %v4521
  %4523 = vmatmul.f32.gmra.mxu0 %v4316
  %v4524 = vpop.f32.mrf.mxu0
  %v4525 = vadd.f32 %v4196, %v4524
  %4526 = vmatmul.f32.gmra.mxu0 %v4319
  %v4527 = vpop.f32.mrf.mxu0
  %v4528 = vadd.f32 %v4196, %v4527
  %4529 = vmatmul.f32.gmra.mxu0 %v4322
  %v4530 = vpop.f32.mrf.mxu0
  %v4531 = vadd.f32 %v4196, %v4530
  %4532 = vmatmul.f32.gmra.mxu0 %v4325
  %v4533 = vpop.f32.mrf.mxu0
  %v4534 = vadd.f32 %v4196, %v4533
  %4535 = vmatmul.f32.gmra.mxu0 %v4328
  %v4536 = vpop.f32.mrf.mxu0
  %v4537 = vadd.f32 %v4196, %v4536
  %4538 = vmatmul.f32.gmra.mxu0 %v4331
  %v4539 = vpop.f32.mrf.mxu0
  %v4540 = vadd.f32 %v4196, %v4539
  %4541 = vmatmul.f32.gmra.mxu0 %v4334
  %v4542 = vpop.f32.mrf.mxu0
  %v4543 = vadd.f32 %v4196, %v4542
  %4544 = vmatmul.f32.gmra.mxu0 %v4337
  %v4545 = vpop.f32.mrf.mxu0
  %v4546 = vadd.f32 %v4196, %v4545
  %4547 = vmatmul.f32.gmra.mxu0 %v4340
  %v4548 = vpop.f32.mrf.mxu0
  %v4549 = vadd.f32 %v4196, %v4548
  %4550 = vmatmul.f32.gmra.mxu0 %v4343
  %v4551 = vpop.f32.mrf.mxu0
  %v4552 = vadd.f32 %v4196, %v4551
  %4553 = vmatmul.f32.gmra.mxu0 %v4346
  %v4554 = vpop.f32.mrf.mxu0
  %v4555 = vadd.f32 %v4196, %v4554
  %4556 = vmatmul.f32.gmra.mxu0 %v4349
  %v4557 = vpop.f32.mrf.mxu0
  %v4558 = vadd.f32 %v4196, %v4557
  %4559 = vmatmul.f32.gmra.mxu0 %v4352
  %v4560 = vpop.f32.mrf.mxu0
  %v4561 = vadd.f32 %v4196, %v4560
  %4562 = vmatmul.f32.gmra.mxu0 %v4355
  %v4563 = vpop.f32.mrf.mxu0
  %v4564 = vadd.f32 %v4196, %v4563
  %4565 = vmatmul.f32.gmra.mxu0 %v4358
  %v4566 = vpop.f32.mrf.mxu0
  %v4567 = vadd.f32 %v4196, %v4566
  %4568 = vmatmul.f32.gmra.mxu0 %v4361
  %v4569 = vpop.f32.mrf.mxu0
  %v4570 = vadd.f32 %v4196, %v4569
  %4571 = vmatmul.f32.gmra.mxu0 %v4364
  %v4572 = vpop.f32.mrf.mxu0
  %v4573 = vadd.f32 %v4196, %v4572
  %4574 = vmatmul.f32.gmra.mxu0 %v4367
  %v4575 = vpop.f32.mrf.mxu0
  %v4576 = vadd.f32 %v4196, %v4575
  %4577 = vmatmul.f32.gmra.mxu0 %v4370
  %v4578 = vpop.f32.mrf.mxu0
  %v4579 = vadd.f32 %v4196, %v4578
  %4580 = vmatmul.f32.gmra.mxu0 %v4373
  %v4581 = vpop.f32.mrf.mxu0
  %v4582 = vadd.f32 %v4196, %v4581
  %4583 = vmatmul.f32.gmra.mxu0 %v4376
  %v4584 = vpop.f32.mrf.mxu0
  %v4585 = vadd.f32 %v4196, %v4584
  %4586 = vmatmul.f32.gmra.mxu0 %v4379
  %v4587 = vpop.f32.mrf.mxu0
  %v4588 = vadd.f32 %v4196, %v4587
  %4589 = vmatmul.f32.gmra.mxu0 %v4382
  %v4590 = vpop.f32.mrf.mxu0
  %v4591 = vadd.f32 %v4196, %v4590
  %4592 = vmatmul.f32.gmra.mxu0 %v4385
  %v4593 = vpop.f32.mrf.mxu0
  %v4594 = vadd.f32 %v4196, %v4593
  %4595 = vmatmul.f32.gmra.mxu0 %v4388
  %v4596 = vpop.f32.mrf.mxu0
  %v4597 = vadd.f32 %v4196, %v4596
  %4598 = vdwg.mxu0
  %v4599 = vmax.f32 %v4408, 0.0
  %v4600 = vmax.f32 %v4411, 0.0
  %v4601 = vmax.f32 %v4414, 0.0
  %v4602 = vmax.f32 %v4417, 0.0
  %v4603 = vmax.f32 %v4420, 0.0
  %v4604 = vmax.f32 %v4423, 0.0
  %v4605 = vmax.f32 %v4426, 0.0
  %v4606 = vmax.f32 %v4429, 0.0
  %v4607 = vmax.f32 %v4432, 0.0
  %v4608 = vmax.f32 %v4435, 0.0
  %v4609 = vmax.f32 %v4438, 0.0
  %v4610 = vmax.f32 %v4441, 0.0
  %v4611 = vmax.f32 %v4444, 0.0
  %v4612 = vmax.f32 %v4447, 0.0
  %v4613 = vmax.f32 %v4450, 0.0
  %v4614 = vmax.f32 %v4453, 0.0
  %v4615 = vmax.f32 %v4456, 0.0
  %v4616 = vmax.f32 %v4459, 0.0
  %v4617 = vmax.f32 %v4462, 0.0
  %v4618 = vmax.f32 %v4465, 0.0
  %v4619 = vmax.f32 %v4468, 0.0
  %v4620 = vmax.f32 %v4471, 0.0
  %v4621 = vmax.f32 %v4474, 0.0
  %v4622 = vmax.f32 %v4477, 0.0
  %v4623 = vmax.f32 %v4480, 0.0
  %v4624 = vmax.f32 %v4483, 0.0
  %v4625 = vmax.f32 %v4486, 0.0
  %v4626 = vmax.f32 %v4489, 0.0
  %v4627 = vmax.f32 %v4492, 0.0
  %v4628 = vmax.f32 %v4495, 0.0
  %v4629 = vmax.f32 %v4498, 0.0
  %v4630 = vmax.f32 %v4501, 0.0
  %v4631 = vmax.f32 %v4504, 0.0
  %v4632 = vmax.f32 %v4507, 0.0
  %v4633 = vmax.f32 %v4510, 0.0
  %v4634 = vmax.f32 %v4513, 0.0
  %v4635 = vmax.f32 %v4516, 0.0
  %v4636 = vmax.f32 %v4519, 0.0
  %v4637 = vmax.f32 %v4522, 0.0
  %v4638 = vmax.f32 %v4525, 0.0
  %v4639 = vmax.f32 %v4528, 0.0
  %v4640 = vmax.f32 %v4531, 0.0
  %v4641 = vmax.f32 %v4534, 0.0
  %v4642 = vmax.f32 %v4537, 0.0
  %v4643 = vmax.f32 %v4540, 0.0
  %v4644 = vmax.f32 %v4543, 0.0
  %v4645 = vmax.f32 %v4546, 0.0
  %v4646 = vmax.f32 %v4549, 0.0
  %v4647 = vmax.f32 %v4552, 0.0
  %v4648 = vmax.f32 %v4555, 0.0
  %v4649 = vmax.f32 %v4558, 0.0
  %v4650 = vmax.f32 %v4561, 0.0
  %v4651 = vmax.f32 %v4564, 0.0
  %v4652 = vmax.f32 %v4567, 0.0
  %v4653 = vmax.f32 %v4570, 0.0
  %v4654 = vmax.f32 %v4573, 0.0
  %v4655 = vmax.f32 %v4576, 0.0
  %v4656 = vmax.f32 %v4579, 0.0
  %v4657 = vmax.f32 %v4582, 0.0
  %v4658 = vmax.f32 %v4585, 0.0
  %v4659 = vmax.f32 %v4588, 0.0
  %v4660 = vmax.f32 %v4591, 0.0
  %v4661 = vmax.f32 %v4594, 0.0
  %v4662 = vmax.f32 %v4597, 0.0
  %v4663 = vadd.f32 %v2178, %v4599
  %v4664 = vadd.f32 %v2179, %v4600
  %v4665 = vadd.f32 %v2180, %v4601
  %v4666 = vadd.f32 %v2181, %v4602
  %v4667 = vadd.f32 %v2182, %v4603
  %v4668 = vadd.f32 %v2183, %v4604
  %v4669 = vadd.f32 %v2184, %v4605
  %v4670 = vadd.f32 %v2185, %v4606
  %v4671 = vadd.f32 %v2186, %v4607
  %v4672 = vadd.f32 %v2187, %v4608
  %v4673 = vadd.f32 %v2188, %v4609
  %v4674 = vadd.f32 %v2189, %v4610
  %v4675 = vadd.f32 %v2190, %v4611
  %v4676 = vadd.f32 %v2191, %v4612
  %v4677 = vadd.f32 %v2192, %v4613
  %v4678 = vadd.f32 %v2193, %v4614
  %v4679 = vadd.f32 %v2194, %v4615
  %v4680 = vadd.f32 %v2195, %v4616
  %v4681 = vadd.f32 %v2196, %v4617
  %v4682 = vadd.f32 %v2197, %v4618
  %v4683 = vadd.f32 %v2198, %v4619
  %v4684 = vadd.f32 %v2199, %v4620
  %v4685 = vadd.f32 %v2200, %v4621
  %v4686 = vadd.f32 %v2201, %v4622
  %v4687 = vadd.f32 %v2202, %v4623
  %v4688 = vadd.f32 %v2203, %v4624
  %v4689 = vadd.f32 %v2204, %v4625
  %v4690 = vadd.f32 %v2205, %v4626
  %v4691 = vadd.f32 %v2206, %v4627
  %v4692 = vadd.f32 %v2207, %v4628
  %v4693 = vadd.f32 %v2208, %v4629
  %v4694 = vadd.f32 %v2209, %v4630
  %v4695 = vadd.f32 %v2210, %v4631
  %v4696 = vadd.f32 %v2211, %v4632
  %v4697 = vadd.f32 %v2212, %v4633
  %v4698 = vadd.f32 %v2213, %v4634
  %v4699 = vadd.f32 %v2214, %v4635
  %v4700 = vadd.f32 %v2215, %v4636
  %v4701 = vadd.f32 %v2216, %v4637
  %v4702 = vadd.f32 %v2217, %v4638
  %v4703 = vadd.f32 %v2218, %v4639
  %v4704 = vadd.f32 %v2219, %v4640
  %v4705 = vadd.f32 %v2220, %v4641
  %v4706 = vadd.f32 %v2221, %v4642
  %v4707 = vadd.f32 %v2222, %v4643
  %v4708 = vadd.f32 %v2223, %v4644
  %v4709 = vadd.f32 %v2224, %v4645
  %v4710 = vadd.f32 %v2225, %v4646
  %v4711 = vadd.f32 %v2226, %v4647
  %v4712 = vadd.f32 %v2227, %v4648
  %v4713 = vadd.f32 %v2228, %v4649
  %v4714 = vadd.f32 %v2229, %v4650
  %v4715 = vadd.f32 %v2230, %v4651
  %v4716 = vadd.f32 %v2231, %v4652
  %v4717 = vadd.f32 %v2232, %v4653
  %v4718 = vadd.f32 %v2233, %v4654
  %v4719 = vadd.f32 %v2234, %v4655
  %v4720 = vadd.f32 %v2235, %v4656
  %v4721 = vadd.f32 %v2236, %v4657
  %v4722 = vadd.f32 %v2237, %v4658
  %v4723 = vadd.f32 %v2238, %v4659
  %v4724 = vadd.f32 %v2239, %v4660
  %v4725 = vadd.f32 %v2240, %v4661
  %v4726 = vadd.f32 %v2241, %v4662
  %4727 = vst.msk [vmem:[%s7] sm:$0xff] %vm2242, %v4663
  %4728 = vst.msk [vmem:[%s7 + $0x8] sm:$0xff] %vm2242, %v4664
  %4729 = vst.msk [vmem:[%s7 + $0x10] sm:$0xff] %vm2242, %v4665
  %4730 = vst.msk [vmem:[%s7 + $0x18] sm:$0xff] %vm2242, %v4666
  %4731 = vst.msk [vmem:[%s7 + $0x20] sm:$0xff] %vm2242, %v4667
  %4732 = vst.msk [vmem:[%s7 + $0x28] sm:$0xff] %vm2242, %v4668
  %4733 = vst.msk [vmem:[%s7 + $0x30] sm:$0xff] %vm2242, %v4669
  %4734 = vst.msk [vmem:[%s7 + $0x38] sm:$0xff] %vm2242, %v4670
  %4735 = vst.msk [vmem:[%s7 + $0x40] sm:$0xff] %vm2242, %v4671
  %4736 = vst.msk [vmem:[%s7 + $0x48] sm:$0xff] %vm2242, %v4672
  %4737 = vst.msk [vmem:[%s7 + $0x50] sm:$0xff] %vm2242, %v4673
  %4738 = vst.msk [vmem:[%s7 + $0x58] sm:$0xff] %vm2242, %v4674
  %4739 = vst.msk [vmem:[%s7 + $0x60] sm:$0xff] %vm2242, %v4675
  %4740 = vst.msk [vmem:[%s7 + $0x68] sm:$0xff] %vm2242, %v4676
  %4741 = vst.msk [vmem:[%s7 + $0x70] sm:$0xff] %vm2242, %v4677
  %4742 = vst.msk [vmem:[%s7 + $0x78] sm:$0xff] %vm2242, %v4678
  %4743 = vst.msk [vmem:[%s7 + $0x80] sm:$0xff] %vm2242, %v4679
  %4744 = vst.msk [vmem:[%s7 + $0x88] sm:$0xff] %vm2242, %v4680
  %4745 = vst.msk [vmem:[%s7 + $0x90] sm:$0xff] %vm2242, %v4681
  %4746 = vst.msk [vmem:[%s7 + $0x98] sm:$0xff] %vm2242, %v4682
  %4747 = vst.msk [vmem:[%s7 + $0xa0] sm:$0xff] %vm2242, %v4683
  %4748 = vst.msk [vmem:[%s7 + $0xa8] sm:$0xff] %vm2242, %v4684
  %4749 = vst.msk [vmem:[%s7 + $0xb0] sm:$0xff] %vm2242, %v4685
  %4750 = vst.msk [vmem:[%s7 + $0xb8] sm:$0xff] %vm2242, %v4686
  %4751 = vst.msk [vmem:[%s7 + $0xc0] sm:$0xff] %vm2242, %v4687
  %4752 = vst.msk [vmem:[%s7 + $0xc8] sm:$0xff] %vm2242, %v4688
  %4753 = vst.msk [vmem:[%s7 + $0xd0] sm:$0xff] %vm2242, %v4689
  %4754 = vst.msk [vmem:[%s7 + $0xd8] sm:$0xff] %vm2242, %v4690
  %4755 = vst.msk [vmem:[%s7 + $0xe0] sm:$0xff] %vm2242, %v4691
  %4756 = vst.msk [vmem:[%s7 + $0xe8] sm:$0xff] %vm2242, %v4692
  %4757 = vst.msk [vmem:[%s7 + $0xf0] sm:$0xff] %vm2242, %v4693
  %4758 = vst.msk [vmem:[%s7 + $0xf8] sm:$0xff] %vm2242, %v4694
  %4759 = vst.msk [vmem:[%s7 + $0x100] sm:$0xff] %vm2242, %v4695
  %4760 = vst.msk [vmem:[%s7 + $0x108] sm:$0xff] %vm2242, %v4696
  %4761 = vst.msk [vmem:[%s7 + $0x110] sm:$0xff] %vm2242, %v4697
  %4762 = vst.msk [vmem:[%s7 + $0x118] sm:$0xff] %vm2242, %v4698
  %4763 = vst.msk [vmem:[%s7 + $0x120] sm:$0xff] %vm2242, %v4699
  %4764 = vst.msk [vmem:[%s7 + $0x128] sm:$0xff] %vm2242, %v4700
  %4765 = vst.msk [vmem:[%s7 + $0x130] sm:$0xff] %vm2242, %v4701
  %4766 = vst.msk [vmem:[%s7 + $0x138] sm:$0xff] %vm2242, %v4702
  %4767 = vst.msk [vmem:[%s7 + $0x140] sm:$0xff] %vm2242, %v4703
  %4768 = vst.msk [vmem:[%s7 + $0x148] sm:$0xff] %vm2242, %v4704
  %4769 = vst.msk [vmem:[%s7 + $0x150] sm:$0xff] %vm2242, %v4705
  %4770 = vst.msk [vmem:[%s7 + $0x158] sm:$0xff] %vm2242, %v4706
  %4771 = vst.msk [vmem:[%s7 + $0x160] sm:$0xff] %vm2242, %v4707
  %4772 = vst.msk [vmem:[%s7 + $0x168] sm:$0xff] %vm2242, %v4708
  %4773 = vst.msk [vmem:[%s7 + $0x170] sm:$0xff] %vm2242, %v4709
  %4774 = vst.msk [vmem:[%s7 + $0x178] sm:$0xff] %vm2242, %v4710
  %4775 = vst.msk [vmem:[%s7 + $0x180] sm:$0xff] %vm2242, %v4711
  %4776 = vst.msk [vmem:[%s7 + $0x188] sm:$0xff] %vm2242, %v4712
  %4777 = vst.msk [vmem:[%s7 + $0x190] sm:$0xff] %vm2242, %v4713
  %4778 = vst.msk [vmem:[%s7 + $0x198] sm:$0xff] %vm2242, %v4714
  %4779 = vst.msk [vmem:[%s7 + $0x1a0] sm:$0xff] %vm2242, %v4715
  %4780 = vst.msk [vmem:[%s7 + $0x1a8] sm:$0xff] %vm2242, %v4716
  %4781 = vst.msk [vmem:[%s7 + $0x1b0] sm:$0xff] %vm2242, %v4717
  %4782 = vst.msk [vmem:[%s7 + $0x1b8] sm:$0xff] %vm2242, %v4718
  %4783 = vst.msk [vmem:[%s7 + $0x1c0] sm:$0xff] %vm2242, %v4719
  %4784 = vst.msk [vmem:[%s7 + $0x1c8] sm:$0xff] %vm2242, %v4720
  %4785 = vst.msk [vmem:[%s7 + $0x1d0] sm:$0xff] %vm2242, %v4721
  %4786 = vst.msk [vmem:[%s7 + $0x1d8] sm:$0xff] %vm2242, %v4722
  %4787 = vst.msk [vmem:[%s7 + $0x1e0] sm:$0xff] %vm2242, %v4723
  %4788 = vst.msk [vmem:[%s7 + $0x1e8] sm:$0xff] %vm2242, %v4724
  %4789 = vst.msk [vmem:[%s7 + $0x1f0] sm:$0xff] %vm2242, %v4725
  %4790 = vst.msk [vmem:[%s7 + $0x1f8] sm:$0xff] %vm2242, %v4726
  // Predicated region
  $region30: #{separable_conv2d.1} parent=0 // pred_check
    _
  $region31: #{separable_conv2d.1} parent=0 // pred_check_branch
    %4792 = sbr.rel (0) target = $region33
  $region32: #{separable_conv2d.1} parent=0 // pred_region
    _
  $region33: #{separable_conv2d.1} parent=0 // pred_fallthru
    _
  // Predicated region
  $region34: #{separable_conv2d.1} parent=0 // pred_check
    _
  $region35: #{separable_conv2d.1} parent=0 // pred_check_branch
    %4794 = sbr.rel (0) target = $region37
  $region36: #{separable_conv2d.1} parent=0 // pred_region
    _
  $region37: #{separable_conv2d.1} parent=0 // pred_fallthru
    _

</llo_original>
